<compile_context>
chip_gen: v6e
topology: v6e:2x2x1
jax: 0.10.0
libtpu: 0.0.40
codegen_flags: <defaults>
</compile_context>

<pallas_src>
import functools

import jax
import jax.numpy as jnp
from jax.experimental import pallas as pl
from jax.experimental.pallas import tpu as pltpu


def _gap_kernel(*refs, n_tensors, inv_hw):
    """refs = (x_ref_0 .. x_ref_{T-1}, o_ref_0 .. o_ref_{T-1}).

    Each x_ref block: (tile_n, tile_c, HW); each o_ref block: (tile_n, tile_c).
    """
    x_refs = refs[:n_tensors]
    o_refs = refs[n_tensors:]
    for x_ref, o_ref in zip(x_refs, o_refs):
        x = x_ref[...].astype(jnp.float32)               # per-tile upcast only
        o_ref[...] = (jnp.sum(x, axis=-1) * inv_hw).astype(o_ref.dtype)


def _pick_channel_tile(c):
    # Multiple of 128 that divides C -> lane-dense output block and
    # (8,128)-friendly input block.  Fall back to full C (always legal).
    for cand in (512, 384, 256, 128):
        if cand <= c and c % cand == 0:
            return cand
    return c


def _pick_batch_tile(n, max_rows):
    # Multiples of 8 only (out block's second-to-last dim must be a multiple
    # of 8 or equal to full N).  Fall back to full N.
    for cand in (64, 32, 16, 8):
        if cand <= n and cand <= max_rows and n % cand == 0:
            return cand
    return n


# Per-tensor, per-buffer VMEM budget for the input block.  Double buffering
# plus the (tiny) output blocks stays well under v5e's 16 MiB scoped default.
_VMEM_BLOCK_BUDGET = 2 * 1024 * 1024


def _gap_call(xs):
    """xs: list of (N, C, HW) arrays, all with identical shape and dtype.

    Returns a tuple of (N, C) pooled arrays (one per input).
    """
    n_t = len(xs)
    N, C, HW = xs[0].shape
    dtype = xs[0].dtype
    itemsize = jnp.dtype(dtype).itemsize

    tile_c = _pick_channel_tile(C)

    per_buf_budget = max(_VMEM_BLOCK_BUDGET // n_t, 128 * 1024)
    max_rows = max(1, per_buf_budget // max(tile_c * HW * itemsize, 1))
    tile_n = _pick_batch_tile(N, max_rows)

    grid = (N // tile_n, C // tile_c)

    in_spec = pl.BlockSpec((tile_n, tile_c, HW), lambda i, j: (i, j, 0))
    out_spec = pl.BlockSpec((tile_n, tile_c), lambda i, j: (i, j))

    kernel = functools.partial(_gap_kernel, n_tensors=n_t, inv_hw=1.0 / HW)

    flops = n_t * N * C * HW
    bytes_accessed = n_t * (N * C * HW * itemsize + N * C * itemsize)

    outs = pl.pallas_call(
        kernel,
        out_shape=tuple(
            jax.ShapeDtypeStruct((N, C), dtype) for _ in range(n_t)
        ),
        grid=grid,
        in_specs=[in_spec] * n_t,
        out_specs=tuple(out_spec for _ in range(n_t)),
        compiler_params=pltpu.CompilerParams(
            dimension_semantics=("parallel", "parallel")
        ),
        cost_estimate=pl.CostEstimate(
            flops=flops, bytes_accessed=bytes_accessed, transcendentals=0
        ),
    )(*xs)

    if not isinstance(outs, (tuple, list)):
        outs = (outs,)
    return tuple(outs)


def _to_ncl(x):
    """NC... (any number of spatial dims, matching dim in {1,2,3}) -> (N, C, prod(spatial)).

    Contiguous reshape; no data movement."""
    N, C = x.shape[0], x.shape[1]
    return x.reshape(N, C, -1)


def unit_gcn_gap_single(x):
    """AdaptiveAvgPool(1...) + view(N, -1) on an (N, C, *spatial) tensor."""
    return _gap_call([_to_ncl(x)])[0]


def unit_gcn_gap(inputs):
    """Mirrors UnitGCNGAP.forward: accepts a tuple/list of NC... tensors (or a
    single tensor) and returns pooled + flattened (N, C) outputs."""
    if isinstance(inputs, (tuple, list)):
        xs = [_to_ncl(x) for x in inputs]
        same = all(
            x.shape == xs[0].shape and x.dtype == xs[0].dtype for x in xs
        )
        if same:
            # Single launch, multiple in/out refs: amortizes pallas_call
            # overhead with no extra HBM copy.
            return _gap_call(xs)
        return tuple(_gap_call([x])[0] for x in xs)
    return unit_gcn_gap_single(inputs)


if __name__ == "__main__":
    key = jax.random.PRNGKey(0)
    k1, k2 = jax.random.split(key)

    # Small shapes consistent with the module's documented (-1, 2560, 7, 7):
    # batch=2, channels=256 (lane-aligned), spatial 7x7.
    x1 = jax.random.normal(k1, (2, 256, 7, 7), dtype=jnp.float32)
    x2 = jax.random.normal(k2, (2, 256, 7, 7), dtype=jnp.float32)

    outs = unit_gcn_gap((x1, x2))
    outs = jax.block_until_ready(outs)

    # correctness check against plain-JAX AdaptiveAvgPool2d((1,1)).view(N,-1)
    for out, x in zip(outs, (x1, x2)):
        ref = jnp.mean(x, axis=(2, 3))  # (N, C)
        assert out.shape == (x.shape[0], x.shape[1])
        assert jnp.allclose(out, ref, atol=1e-5, rtol=1e-5)

    print("KERNEL_OK")
</pallas_src>

<mosaic_0001>
module attributes {stable_mosaic.version = 11 : i64} {
  func.func @_gap_kernel(%arg0: i32, %arg1: i32, %arg2: memref<2x256x49xf32, #tpu.memory_space<vmem>>, %arg3: memref<2x256x49xf32, #tpu.memory_space<vmem>>, %arg4: memref<2x256xf32, #tpu.memory_space<vmem>>, %arg5: memref<2x256xf32, #tpu.memory_space<vmem>>) attributes {dimension_semantics = [#tpu.dimension_semantics<parallel>, #tpu.dimension_semantics<parallel>], iteration_bounds = array<i64: 1, 1>, scalar_prefetch = 0 : i64, scratch_operands = 0 : i64, tpu.core_type = #tpu.core_type<tc>, window_params = [{transform_indices = @transform_0, window_bounds = array<i64: 2, 256, 49>}, {transform_indices = @transform_1, window_bounds = array<i64: 2, 256, 49>}, {transform_indices = @transform_2, window_bounds = array<i64: 2, 256>}, {transform_indices = @transform_3, window_bounds = array<i64: 2, 256>}]} {
    %c0 = arith.constant 0 : index
    %c0_0 = arith.constant 0 : index
    %c0_1 = arith.constant 0 : index
    %0 = vector.load %arg2[%c0, %c0_0, %c0_1] : memref<2x256x49xf32, #tpu.memory_space<vmem>>, vector<2x256x49xf32>
    %cst = arith.constant dense<0.000000e+00> : vector<2x256xf32>
    %1 = vector.multi_reduction <add>, %0, %cst [2] : vector<2x256x49xf32> to vector<2x256xf32>
    %cst_2 = arith.constant 0.0204081628 : f32
    %2 = vector.broadcast %cst_2 : f32 to vector<2x256xf32>
    %3 = arith.mulf %1, %2 : vector<2x256xf32>
    %c0_3 = arith.constant 0 : index
    %c0_4 = arith.constant 0 : index
    %4 = vector.load %arg4[%c0_3, %c0_4] : memref<2x256xf32, #tpu.memory_space<vmem>>, vector<2x256xf32>
    tpu.vector_store %arg4[%c0_3, %c0_4], %3 {strides = array<i32>} : memref<2x256xf32, #tpu.memory_space<vmem>>, vector<2x256xf32>,
    %c0_5 = arith.constant 0 : index
    %c0_6 = arith.constant 0 : index
    %c0_7 = arith.constant 0 : index
    %5 = vector.load %arg3[%c0_5, %c0_6, %c0_7] : memref<2x256x49xf32, #tpu.memory_space<vmem>>, vector<2x256x49xf32>
    %cst_8 = arith.constant dense<0.000000e+00> : vector<2x256xf32>
    %6 = vector.multi_reduction <add>, %5, %cst_8 [2] : vector<2x256x49xf32> to vector<2x256xf32>
    %cst_9 = arith.constant 0.0204081628 : f32
    %7 = vector.broadcast %cst_9 : f32 to vector<2x256xf32>
    %8 = arith.mulf %6, %7 : vector<2x256xf32>
    %c0_10 = arith.constant 0 : index
    %c0_11 = arith.constant 0 : index
    %9 = vector.load %arg5[%c0_10, %c0_11] : memref<2x256xf32, #tpu.memory_space<vmem>>, vector<2x256xf32>
    tpu.vector_store %arg5[%c0_10, %c0_11], %8 {strides = array<i32>} : memref<2x256xf32, #tpu.memory_space<vmem>>, vector<2x256xf32>,
    return
  }
  func.func @transform_0(%arg0: i32, %arg1: i32) -> (i32, i32, i32) {
    %c0_i32 = arith.constant 0 : i32
    %c0_i32_0 = arith.constant 0 : i32
    return %arg0, %arg1, %c0_i32 : i32, i32, i32
  }
  func.func @transform_1(%arg0: i32, %arg1: i32) -> (i32, i32, i32) {
    %c0_i32 = arith.constant 0 : i32
    %c0_i32_0 = arith.constant 0 : i32
    return %arg0, %arg1, %c0_i32 : i32, i32, i32
  }
  func.func @transform_2(%arg0: i32, %arg1: i32) -> (i32, i32) {
    %c0_i32 = arith.constant 0 : i32
    return %arg0, %arg1 : i32, i32
  }
  func.func @transform_3(%arg0: i32, %arg1: i32) -> (i32, i32) {
    %c0_i32 = arith.constant 0 : i32
    return %arg0, %arg1 : i32, i32
  }
}

</mosaic_0001>

<llo_original>
// kernel: tpu_custom_call.1
$region0: #{tpu_custom_call.1}
  #allocation0 [shape = 'u32[]', space=smem, size = 0x4, offset = 0x4, fixed_abs, tag = 'smem constant byte address 0x4 - core index']
  #allocation1 [shape = 'u32[144,128]{1,0:T(1,128)}', space=vmem, size = 0x12000, scoped, tag = 'internal scratch']
  %s0 = inlined_call_operand.vmem [shape: f32[2,256,49], index: 0, kind: input, shape index: {}]
  %s1 = inlined_call_operand.vmem [shape: f32[2,256,49], index: 1, kind: input, shape index: {}]
  %s2 = inlined_call_operand.hbm [shape: f32[2,256], index: 2, kind: output, shape index: {0}]
  %s3 = inlined_call_operand.hbm [shape: f32[2,256], index: 3, kind: output, shape index: {1}]
  %4 = xla_tuple %s2, %s3
  %s5 = sld [smem:[#allocation0]]
  $region26: #{tpu_custom_call.1} parent=0
    _
  %s7 = ssub.s32 1, %s5
  %s8 = scalar_select 0, %s7, %s5
  $region1: #{tpu_custom_call.1} parent=0
    #allocation2 [shape = 'u8[2048]{0}', space=vmem, size = 0x800, scoped, tag = 'output window, operand 0, single buffered']
    #allocation3 [shape = 's32[1]{0}', space=sflag, size = 0x4, scoped, tag = 'scoped memory for tpu_custom_call.1']
    #allocation4 [shape = 'u8[2048]{0}', space=vmem, size = 0x800, scoped, tag = 'output window, operand 1, single buffered']
    #allocation5 [shape = 's32[1]{0}', space=sflag, size = 0x4, scoped, tag = 'scoped memory for tpu_custom_call.1']
    %9 = vsyncpa [#allocation3], 0
    %10 = vsyncpa [#allocation5], 0
    // Predicated region
    $region2: #{tpu_custom_call.1} parent=1 // pred_check
      _
    $region3: #{tpu_custom_call.1} parent=1 // pred_check_branch
      %12 = sbr.rel (0) target = $region5
    $region4: #{tpu_custom_call.1} parent=1 // pred_region
      _
    $region5: #{tpu_custom_call.1} parent=1 // pred_fallthru
      _
    // Predicated region
    $region6: #{tpu_custom_call.1} parent=1 // pred_check
      _
    $region7: #{tpu_custom_call.1} parent=1 // pred_check_branch
      %14 = sbr.rel (0) target = $region9
    $region8: #{tpu_custom_call.1} parent=1 // pred_region
      _
    $region9: #{tpu_custom_call.1} parent=1 // pred_fallthru
      _
    %v15 = vld [vmem:[%s0] sm:$0xff]
    %v16 = vld [vmem:[%s0 + $0x8] sm:$0xff]
    %v17 = vld [vmem:[%s0 + $0x10] sm:$0xff]
    %v18 = vld [vmem:[%s0 + $0x18] sm:$0xff]
    %v19 = vld [vmem:[%s0 + $0x20] sm:$0xff]
    %v20 = vld [vmem:[%s0 + $0x28] sm:$0xff]
    %v21 = vld [vmem:[%s0 + $0x30] sm:$0xff]
    %v22 = vld [vmem:[%s0 + $0x38] sm:$0xff]
    %v23 = vld [vmem:[%s0 + $0x40] sm:$0xff]
    %v24 = vld [vmem:[%s0 + $0x48] sm:$0xff]
    %v25 = vld [vmem:[%s0 + $0x50] sm:$0xff]
    %v26 = vld [vmem:[%s0 + $0x58] sm:$0xff]
    %v27 = vld [vmem:[%s0 + $0x60] sm:$0xff]
    %v28 = vld [vmem:[%s0 + $0x68] sm:$0xff]
    %v29 = vld [vmem:[%s0 + $0x70] sm:$0xff]
    %v30 = vld [vmem:[%s0 + $0x78] sm:$0xff]
    %v31 = vld [vmem:[%s0 + $0x80] sm:$0xff]
    %v32 = vld [vmem:[%s0 + $0x88] sm:$0xff]
    %v33 = vld [vmem:[%s0 + $0x90] sm:$0xff]
    %v34 = vld [vmem:[%s0 + $0x98] sm:$0xff]
    %v35 = vld [vmem:[%s0 + $0xa0] sm:$0xff]
    %v36 = vld [vmem:[%s0 + $0xa8] sm:$0xff]
    %v37 = vld [vmem:[%s0 + $0xb0] sm:$0xff]
    %v38 = vld [vmem:[%s0 + $0xb8] sm:$0xff]
    %v39 = vld [vmem:[%s0 + $0xc0] sm:$0xff]
    %v40 = vld [vmem:[%s0 + $0xc8] sm:$0xff]
    %v41 = vld [vmem:[%s0 + $0xd0] sm:$0xff]
    %v42 = vld [vmem:[%s0 + $0xd8] sm:$0xff]
    %v43 = vld [vmem:[%s0 + $0xe0] sm:$0xff]
    %v44 = vld [vmem:[%s0 + $0xe8] sm:$0xff]
    %v45 = vld [vmem:[%s0 + $0xf0] sm:$0xff]
    %v46 = vld [vmem:[%s0 + $0xf8] sm:$0xff]
    %v47 = vld [vmem:[%s0 + $0x100] sm:$0xff]
    %v48 = vld [vmem:[%s0 + $0x108] sm:$0xff]
    %v49 = vld [vmem:[%s0 + $0x110] sm:$0xff]
    %v50 = vld [vmem:[%s0 + $0x118] sm:$0xff]
    %v51 = vld [vmem:[%s0 + $0x120] sm:$0xff]
    %v52 = vld [vmem:[%s0 + $0x128] sm:$0xff]
    %v53 = vld [vmem:[%s0 + $0x130] sm:$0xff]
    %v54 = vld [vmem:[%s0 + $0x138] sm:$0xff]
    %v55 = vld [vmem:[%s0 + $0x140] sm:$0xff]
    %v56 = vld [vmem:[%s0 + $0x148] sm:$0xff]
    %v57 = vld [vmem:[%s0 + $0x150] sm:$0xff]
    %v58 = vld [vmem:[%s0 + $0x158] sm:$0xff]
    %v59 = vld [vmem:[%s0 + $0x160] sm:$0xff]
    %v60 = vld [vmem:[%s0 + $0x168] sm:$0xff]
    %v61 = vld [vmem:[%s0 + $0x170] sm:$0xff]
    %v62 = vld [vmem:[%s0 + $0x178] sm:$0xff]
    %v63 = vld [vmem:[%s0 + $0x180] sm:$0xff]
    %v64 = vld [vmem:[%s0 + $0x188] sm:$0xff]
    %v65 = vld [vmem:[%s0 + $0x190] sm:$0xff]
    %v66 = vld [vmem:[%s0 + $0x198] sm:$0xff]
    %v67 = vld [vmem:[%s0 + $0x1a0] sm:$0xff]
    %v68 = vld [vmem:[%s0 + $0x1a8] sm:$0xff]
    %v69 = vld [vmem:[%s0 + $0x1b0] sm:$0xff]
    %v70 = vld [vmem:[%s0 + $0x1b8] sm:$0xff]
    %v71 = vld [vmem:[%s0 + $0x1c0] sm:$0xff]
    %v72 = vld [vmem:[%s0 + $0x1c8] sm:$0xff]
    %v73 = vld [vmem:[%s0 + $0x1d0] sm:$0xff]
    %v74 = vld [vmem:[%s0 + $0x1d8] sm:$0xff]
    %v75 = vld [vmem:[%s0 + $0x1e0] sm:$0xff]
    %v76 = vld [vmem:[%s0 + $0x1e8] sm:$0xff]
    %v77 = vld [vmem:[%s0 + $0x1f0] sm:$0xff]
    %v78 = vld [vmem:[%s0 + $0x1f8] sm:$0xff]
    %vm79 = vcmask 400384
    %v80 = vsel %vm79, %v15, 0.0
    %81 = vadd.xlane.f32.xlu0 %v80
    %v82 = vpop.xlane.xlu0 %81
    %v83 = vsel %vm79, %v16, 0.0
    %84 = vadd.xlane.f32.xlu0 %v83
    %v85 = vpop.xlane.xlu0 %84
    %v86 = vsel %vm79, %v17, 0.0
    %87 = vadd.xlane.f32.xlu0 %v86
    %v88 = vpop.xlane.xlu0 %87
    %v89 = vsel %vm79, %v18, 0.0
    %90 = vadd.xlane.f32.xlu0 %v89
    %v91 = vpop.xlane.xlu0 %90
    %v92 = vsel %vm79, %v19, 0.0
    %93 = vadd.xlane.f32.xlu0 %v92
    %v94 = vpop.xlane.xlu0 %93
    %v95 = vsel %vm79, %v20, 0.0
    %96 = vadd.xlane.f32.xlu0 %v95
    %v97 = vpop.xlane.xlu0 %96
    %v98 = vsel %vm79, %v21, 0.0
    %99 = vadd.xlane.f32.xlu0 %v98
    %v100 = vpop.xlane.xlu0 %99
    %v101 = vsel %vm79, %v22, 0.0
    %102 = vadd.xlane.f32.xlu0 %v101
    %v103 = vpop.xlane.xlu0 %102
    %v104 = vsel %vm79, %v23, 0.0
    %105 = vadd.xlane.f32.xlu0 %v104
    %v106 = vpop.xlane.xlu0 %105
    %v107 = vsel %vm79, %v24, 0.0
    %108 = vadd.xlane.f32.xlu0 %v107
    %v109 = vpop.xlane.xlu0 %108
    %v110 = vsel %vm79, %v25, 0.0
    %111 = vadd.xlane.f32.xlu0 %v110
    %v112 = vpop.xlane.xlu0 %111
    %v113 = vsel %vm79, %v26, 0.0
    %114 = vadd.xlane.f32.xlu0 %v113
    %v115 = vpop.xlane.xlu0 %114
    %v116 = vsel %vm79, %v27, 0.0
    %117 = vadd.xlane.f32.xlu0 %v116
    %v118 = vpop.xlane.xlu0 %117
    %v119 = vsel %vm79, %v28, 0.0
    %120 = vadd.xlane.f32.xlu0 %v119
    %v121 = vpop.xlane.xlu0 %120
    %v122 = vsel %vm79, %v29, 0.0
    %123 = vadd.xlane.f32.xlu0 %v122
    %v124 = vpop.xlane.xlu0 %123
    %v125 = vsel %vm79, %v30, 0.0
    %126 = vadd.xlane.f32.xlu0 %v125
    %v127 = vpop.xlane.xlu0 %126
    %v128 = vsel %vm79, %v31, 0.0
    %129 = vadd.xlane.f32.xlu0 %v128
    %v130 = vpop.xlane.xlu0 %129
    %v131 = vsel %vm79, %v32, 0.0
    %132 = vadd.xlane.f32.xlu0 %v131
    %v133 = vpop.xlane.xlu0 %132
    %v134 = vsel %vm79, %v33, 0.0
    %135 = vadd.xlane.f32.xlu0 %v134
    %v136 = vpop.xlane.xlu0 %135
    %v137 = vsel %vm79, %v34, 0.0
    %138 = vadd.xlane.f32.xlu0 %v137
    %v139 = vpop.xlane.xlu0 %138
    %v140 = vsel %vm79, %v35, 0.0
    %141 = vadd.xlane.f32.xlu0 %v140
    %v142 = vpop.xlane.xlu0 %141
    %v143 = vsel %vm79, %v36, 0.0
    %144 = vadd.xlane.f32.xlu0 %v143
    %v145 = vpop.xlane.xlu0 %144
    %v146 = vsel %vm79, %v37, 0.0
    %147 = vadd.xlane.f32.xlu0 %v146
    %v148 = vpop.xlane.xlu0 %147
    %v149 = vsel %vm79, %v38, 0.0
    %150 = vadd.xlane.f32.xlu0 %v149
    %v151 = vpop.xlane.xlu0 %150
    %v152 = vsel %vm79, %v39, 0.0
    %153 = vadd.xlane.f32.xlu0 %v152
    %v154 = vpop.xlane.xlu0 %153
    %v155 = vsel %vm79, %v40, 0.0
    %156 = vadd.xlane.f32.xlu0 %v155
    %v157 = vpop.xlane.xlu0 %156
    %v158 = vsel %vm79, %v41, 0.0
    %159 = vadd.xlane.f32.xlu0 %v158
    %v160 = vpop.xlane.xlu0 %159
    %v161 = vsel %vm79, %v42, 0.0
    %162 = vadd.xlane.f32.xlu0 %v161
    %v163 = vpop.xlane.xlu0 %162
    %v164 = vsel %vm79, %v43, 0.0
    %165 = vadd.xlane.f32.xlu0 %v164
    %v166 = vpop.xlane.xlu0 %165
    %v167 = vsel %vm79, %v44, 0.0
    %168 = vadd.xlane.f32.xlu0 %v167
    %v169 = vpop.xlane.xlu0 %168
    %v170 = vsel %vm79, %v45, 0.0
    %171 = vadd.xlane.f32.xlu0 %v170
    %v172 = vpop.xlane.xlu0 %171
    %v173 = vsel %vm79, %v46, 0.0
    %174 = vadd.xlane.f32.xlu0 %v173
    %v175 = vpop.xlane.xlu0 %174
    %v176 = vsel %vm79, %v47, 0.0
    %177 = vadd.xlane.f32.xlu0 %v176
    %v178 = vpop.xlane.xlu0 %177
    %v179 = vsel %vm79, %v48, 0.0
    %180 = vadd.xlane.f32.xlu0 %v179
    %v181 = vpop.xlane.xlu0 %180
    %v182 = vsel %vm79, %v49, 0.0
    %183 = vadd.xlane.f32.xlu0 %v182
    %v184 = vpop.xlane.xlu0 %183
    %v185 = vsel %vm79, %v50, 0.0
    %186 = vadd.xlane.f32.xlu0 %v185
    %v187 = vpop.xlane.xlu0 %186
    %v188 = vsel %vm79, %v51, 0.0
    %189 = vadd.xlane.f32.xlu0 %v188
    %v190 = vpop.xlane.xlu0 %189
    %v191 = vsel %vm79, %v52, 0.0
    %192 = vadd.xlane.f32.xlu0 %v191
    %v193 = vpop.xlane.xlu0 %192
    %v194 = vsel %vm79, %v53, 0.0
    %195 = vadd.xlane.f32.xlu0 %v194
    %v196 = vpop.xlane.xlu0 %195
    %v197 = vsel %vm79, %v54, 0.0
    %198 = vadd.xlane.f32.xlu0 %v197
    %v199 = vpop.xlane.xlu0 %198
    %v200 = vsel %vm79, %v55, 0.0
    %201 = vadd.xlane.f32.xlu0 %v200
    %v202 = vpop.xlane.xlu0 %201
    %v203 = vsel %vm79, %v56, 0.0
    %204 = vadd.xlane.f32.xlu0 %v203
    %v205 = vpop.xlane.xlu0 %204
    %v206 = vsel %vm79, %v57, 0.0
    %207 = vadd.xlane.f32.xlu0 %v206
    %v208 = vpop.xlane.xlu0 %207
    %v209 = vsel %vm79, %v58, 0.0
    %210 = vadd.xlane.f32.xlu0 %v209
    %v211 = vpop.xlane.xlu0 %210
    %v212 = vsel %vm79, %v59, 0.0
    %213 = vadd.xlane.f32.xlu0 %v212
    %v214 = vpop.xlane.xlu0 %213
    %v215 = vsel %vm79, %v60, 0.0
    %216 = vadd.xlane.f32.xlu0 %v215
    %v217 = vpop.xlane.xlu0 %216
    %v218 = vsel %vm79, %v61, 0.0
    %219 = vadd.xlane.f32.xlu0 %v218
    %v220 = vpop.xlane.xlu0 %219
    %v221 = vsel %vm79, %v62, 0.0
    %222 = vadd.xlane.f32.xlu0 %v221
    %v223 = vpop.xlane.xlu0 %222
    %v224 = vsel %vm79, %v63, 0.0
    %225 = vadd.xlane.f32.xlu0 %v224
    %v226 = vpop.xlane.xlu0 %225
    %v227 = vsel %vm79, %v64, 0.0
    %228 = vadd.xlane.f32.xlu0 %v227
    %v229 = vpop.xlane.xlu0 %228
    %v230 = vsel %vm79, %v65, 0.0
    %231 = vadd.xlane.f32.xlu0 %v230
    %v232 = vpop.xlane.xlu0 %231
    %v233 = vsel %vm79, %v66, 0.0
    %234 = vadd.xlane.f32.xlu0 %v233
    %v235 = vpop.xlane.xlu0 %234
    %v236 = vsel %vm79, %v67, 0.0
    %237 = vadd.xlane.f32.xlu0 %v236
    %v238 = vpop.xlane.xlu0 %237
    %v239 = vsel %vm79, %v68, 0.0
    %240 = vadd.xlane.f32.xlu0 %v239
    %v241 = vpop.xlane.xlu0 %240
    %v242 = vsel %vm79, %v69, 0.0
    %243 = vadd.xlane.f32.xlu0 %v242
    %v244 = vpop.xlane.xlu0 %243
    %v245 = vsel %vm79, %v70, 0.0
    %246 = vadd.xlane.f32.xlu0 %v245
    %v247 = vpop.xlane.xlu0 %246
    %v248 = vsel %vm79, %v71, 0.0
    %249 = vadd.xlane.f32.xlu0 %v248
    %v250 = vpop.xlane.xlu0 %249
    %v251 = vsel %vm79, %v72, 0.0
    %252 = vadd.xlane.f32.xlu0 %v251
    %v253 = vpop.xlane.xlu0 %252
    %v254 = vsel %vm79, %v73, 0.0
    %255 = vadd.xlane.f32.xlu0 %v254
    %v256 = vpop.xlane.xlu0 %255
    %v257 = vsel %vm79, %v74, 0.0
    %258 = vadd.xlane.f32.xlu0 %v257
    %v259 = vpop.xlane.xlu0 %258
    %v260 = vsel %vm79, %v75, 0.0
    %261 = vadd.xlane.f32.xlu0 %v260
    %v262 = vpop.xlane.xlu0 %261
    %v263 = vsel %vm79, %v76, 0.0
    %264 = vadd.xlane.f32.xlu0 %v263
    %v265 = vpop.xlane.xlu0 %264
    %v266 = vsel %vm79, %v77, 0.0
    %267 = vadd.xlane.f32.xlu0 %v266
    %v268 = vpop.xlane.xlu0 %267
    %v269 = vsel %vm79, %v78, 0.0
    %270 = vadd.xlane.f32.xlu0 %v269
    %v271 = vpop.xlane.xlu0 %270
    %v272 = vmul.f32 %v82, 0.020408163
    %v273 = vmul.f32 %v85, 0.020408163
    %v274 = vmul.f32 %v88, 0.020408163
    %v275 = vmul.f32 %v91, 0.020408163
    %v276 = vmul.f32 %v94, 0.020408163
    %v277 = vmul.f32 %v97, 0.020408163
    %v278 = vmul.f32 %v100, 0.020408163
    %v279 = vmul.f32 %v103, 0.020408163
    %v280 = vmul.f32 %v106, 0.020408163
    %v281 = vmul.f32 %v109, 0.020408163
    %v282 = vmul.f32 %v112, 0.020408163
    %v283 = vmul.f32 %v115, 0.020408163
    %v284 = vmul.f32 %v118, 0.020408163
    %v285 = vmul.f32 %v121, 0.020408163
    %v286 = vmul.f32 %v124, 0.020408163
    %v287 = vmul.f32 %v127, 0.020408163
    %v288 = vmul.f32 %v130, 0.020408163
    %v289 = vmul.f32 %v133, 0.020408163
    %v290 = vmul.f32 %v136, 0.020408163
    %v291 = vmul.f32 %v139, 0.020408163
    %v292 = vmul.f32 %v142, 0.020408163
    %v293 = vmul.f32 %v145, 0.020408163
    %v294 = vmul.f32 %v148, 0.020408163
    %v295 = vmul.f32 %v151, 0.020408163
    %v296 = vmul.f32 %v154, 0.020408163
    %v297 = vmul.f32 %v157, 0.020408163
    %v298 = vmul.f32 %v160, 0.020408163
    %v299 = vmul.f32 %v163, 0.020408163
    %v300 = vmul.f32 %v166, 0.020408163
    %v301 = vmul.f32 %v169, 0.020408163
    %v302 = vmul.f32 %v172, 0.020408163
    %v303 = vmul.f32 %v175, 0.020408163
    %v304 = vmul.f32 %v178, 0.020408163
    %v305 = vmul.f32 %v181, 0.020408163
    %v306 = vmul.f32 %v184, 0.020408163
    %v307 = vmul.f32 %v187, 0.020408163
    %v308 = vmul.f32 %v190, 0.020408163
    %v309 = vmul.f32 %v193, 0.020408163
    %v310 = vmul.f32 %v196, 0.020408163
    %v311 = vmul.f32 %v199, 0.020408163
    %v312 = vmul.f32 %v202, 0.020408163
    %v313 = vmul.f32 %v205, 0.020408163
    %v314 = vmul.f32 %v208, 0.020408163
    %v315 = vmul.f32 %v211, 0.020408163
    %v316 = vmul.f32 %v214, 0.020408163
    %v317 = vmul.f32 %v217, 0.020408163
    %v318 = vmul.f32 %v220, 0.020408163
    %v319 = vmul.f32 %v223, 0.020408163
    %v320 = vmul.f32 %v226, 0.020408163
    %v321 = vmul.f32 %v229, 0.020408163
    %v322 = vmul.f32 %v232, 0.020408163
    %v323 = vmul.f32 %v235, 0.020408163
    %v324 = vmul.f32 %v238, 0.020408163
    %v325 = vmul.f32 %v241, 0.020408163
    %v326 = vmul.f32 %v244, 0.020408163
    %v327 = vmul.f32 %v247, 0.020408163
    %v328 = vmul.f32 %v250, 0.020408163
    %v329 = vmul.f32 %v253, 0.020408163
    %v330 = vmul.f32 %v256, 0.020408163
    %v331 = vmul.f32 %v259, 0.020408163
    %v332 = vmul.f32 %v262, 0.020408163
    %v333 = vmul.f32 %v265, 0.020408163
    %v334 = vmul.f32 %v268, 0.020408163
    %v335 = vmul.f32 %v271, 0.020408163
    %v401 = vunpack.c.l.s4 269488144
    %v402 = vunpack.c.0.s8 %v401
    %v403 = vlaneseq
    %v404 = vshrl.u32 %v403, 7
    %v405 = vsub.s32 %v402, %v404
    %v406 = vrot.slane %v272, %v405
    %v408 = vunpack.c.l.s4 842150450
    %v409 = vunpack.c.0.s8 %v408
    %v410 = vlaneseq
    %v411 = vshrl.u32 %v410, 7
    %v412 = vsub.s32 %v409, %v411
    %v413 = vrot.slane %v272, %v412
    %v415 = vunpack.c.l.s4 1414812756
    %v416 = vunpack.c.0.s8 %v415
    %v417 = vlaneseq
    %v418 = vshrl.u32 %v417, 7
    %v419 = vsub.s32 %v416, %v418
    %v420 = vrot.slane %v272, %v419
    %v422 = vunpack.c.l.s4 1987475062
    %v423 = vunpack.c.0.s8 %v422
    %v424 = vlaneseq
    %v425 = vshrl.u32 %v424, 7
    %v426 = vsub.s32 %v423, %v425
    %v427 = vrot.slane %v272, %v426
    %v429 = vunpack.c.l.s4 269488144
    %v430 = vunpack.c.0.s8 %v429
    %v431 = vlaneseq
    %v432 = vshrl.u32 %v431, 7
    %v433 = vsub.s32 %v430, %v432
    %v434 = vrot.slane %v273, %v433
    %v436 = vunpack.c.l.s4 842150450
    %v437 = vunpack.c.0.s8 %v436
    %v438 = vlaneseq
    %v439 = vshrl.u32 %v438, 7
    %v440 = vsub.s32 %v437, %v439
    %v441 = vrot.slane %v273, %v440
    %v443 = vunpack.c.l.s4 1414812756
    %v444 = vunpack.c.0.s8 %v443
    %v445 = vlaneseq
    %v446 = vshrl.u32 %v445, 7
    %v447 = vsub.s32 %v444, %v446
    %v448 = vrot.slane %v273, %v447
    %v450 = vunpack.c.l.s4 1987475062
    %v451 = vunpack.c.0.s8 %v450
    %v452 = vlaneseq
    %v453 = vshrl.u32 %v452, 7
    %v454 = vsub.s32 %v451, %v453
    %v455 = vrot.slane %v273, %v454
    %v457 = vunpack.c.l.s4 269488144
    %v458 = vunpack.c.0.s8 %v457
    %v459 = vlaneseq
    %v460 = vshrl.u32 %v459, 7
    %v461 = vsub.s32 %v458, %v460
    %v462 = vrot.slane %v274, %v461
    %v464 = vunpack.c.l.s4 842150450
    %v465 = vunpack.c.0.s8 %v464
    %v466 = vlaneseq
    %v467 = vshrl.u32 %v466, 7
    %v468 = vsub.s32 %v465, %v467
    %v469 = vrot.slane %v274, %v468
    %v471 = vunpack.c.l.s4 1414812756
    %v472 = vunpack.c.0.s8 %v471
    %v473 = vlaneseq
    %v474 = vshrl.u32 %v473, 7
    %v475 = vsub.s32 %v472, %v474
    %v476 = vrot.slane %v274, %v475
    %v478 = vunpack.c.l.s4 1987475062
    %v479 = vunpack.c.0.s8 %v478
    %v480 = vlaneseq
    %v481 = vshrl.u32 %v480, 7
    %v482 = vsub.s32 %v479, %v481
    %v483 = vrot.slane %v274, %v482
    %v485 = vunpack.c.l.s4 269488144
    %v486 = vunpack.c.0.s8 %v485
    %v487 = vlaneseq
    %v488 = vshrl.u32 %v487, 7
    %v489 = vsub.s32 %v486, %v488
    %v490 = vrot.slane %v275, %v489
    %v492 = vunpack.c.l.s4 842150450
    %v493 = vunpack.c.0.s8 %v492
    %v494 = vlaneseq
    %v495 = vshrl.u32 %v494, 7
    %v496 = vsub.s32 %v493, %v495
    %v497 = vrot.slane %v275, %v496
    %v499 = vunpack.c.l.s4 1414812756
    %v500 = vunpack.c.0.s8 %v499
    %v501 = vlaneseq
    %v502 = vshrl.u32 %v501, 7
    %v503 = vsub.s32 %v500, %v502
    %v504 = vrot.slane %v275, %v503
    %v506 = vunpack.c.l.s4 1987475062
    %v507 = vunpack.c.0.s8 %v506
    %v508 = vlaneseq
    %v509 = vshrl.u32 %v508, 7
    %v510 = vsub.s32 %v507, %v509
    %v511 = vrot.slane %v275, %v510
    %v513 = vunpack.c.l.s4 269488144
    %v514 = vunpack.c.0.s8 %v513
    %v515 = vlaneseq
    %v516 = vshrl.u32 %v515, 7
    %v517 = vsub.s32 %v514, %v516
    %v518 = vrot.slane %v276, %v517
    %v520 = vunpack.c.l.s4 842150450
    %v521 = vunpack.c.0.s8 %v520
    %v522 = vlaneseq
    %v523 = vshrl.u32 %v522, 7
    %v524 = vsub.s32 %v521, %v523
    %v525 = vrot.slane %v276, %v524
    %v527 = vunpack.c.l.s4 1414812756
    %v528 = vunpack.c.0.s8 %v527
    %v529 = vlaneseq
    %v530 = vshrl.u32 %v529, 7
    %v531 = vsub.s32 %v528, %v530
    %v532 = vrot.slane %v276, %v531
    %v534 = vunpack.c.l.s4 1987475062
    %v535 = vunpack.c.0.s8 %v534
    %v536 = vlaneseq
    %v537 = vshrl.u32 %v536, 7
    %v538 = vsub.s32 %v535, %v537
    %v539 = vrot.slane %v276, %v538
    %v541 = vunpack.c.l.s4 269488144
    %v542 = vunpack.c.0.s8 %v541
    %v543 = vlaneseq
    %v544 = vshrl.u32 %v543, 7
    %v545 = vsub.s32 %v542, %v544
    %v546 = vrot.slane %v277, %v545
    %v548 = vunpack.c.l.s4 842150450
    %v549 = vunpack.c.0.s8 %v548
    %v550 = vlaneseq
    %v551 = vshrl.u32 %v550, 7
    %v552 = vsub.s32 %v549, %v551
    %v553 = vrot.slane %v277, %v552
    %v555 = vunpack.c.l.s4 1414812756
    %v556 = vunpack.c.0.s8 %v555
    %v557 = vlaneseq
    %v558 = vshrl.u32 %v557, 7
    %v559 = vsub.s32 %v556, %v558
    %v560 = vrot.slane %v277, %v559
    %v562 = vunpack.c.l.s4 1987475062
    %v563 = vunpack.c.0.s8 %v562
    %v564 = vlaneseq
    %v565 = vshrl.u32 %v564, 7
    %v566 = vsub.s32 %v563, %v565
    %v567 = vrot.slane %v277, %v566
    %v569 = vunpack.c.l.s4 269488144
    %v570 = vunpack.c.0.s8 %v569
    %v571 = vlaneseq
    %v572 = vshrl.u32 %v571, 7
    %v573 = vsub.s32 %v570, %v572
    %v574 = vrot.slane %v278, %v573
    %v576 = vunpack.c.l.s4 842150450
    %v577 = vunpack.c.0.s8 %v576
    %v578 = vlaneseq
    %v579 = vshrl.u32 %v578, 7
    %v580 = vsub.s32 %v577, %v579
    %v581 = vrot.slane %v278, %v580
    %v583 = vunpack.c.l.s4 1414812756
    %v584 = vunpack.c.0.s8 %v583
    %v585 = vlaneseq
    %v586 = vshrl.u32 %v585, 7
    %v587 = vsub.s32 %v584, %v586
    %v588 = vrot.slane %v278, %v587
    %v590 = vunpack.c.l.s4 1987475062
    %v591 = vunpack.c.0.s8 %v590
    %v592 = vlaneseq
    %v593 = vshrl.u32 %v592, 7
    %v594 = vsub.s32 %v591, %v593
    %v595 = vrot.slane %v278, %v594
    %v597 = vunpack.c.l.s4 269488144
    %v598 = vunpack.c.0.s8 %v597
    %v599 = vlaneseq
    %v600 = vshrl.u32 %v599, 7
    %v601 = vsub.s32 %v598, %v600
    %v602 = vrot.slane %v279, %v601
    %v604 = vunpack.c.l.s4 842150450
    %v605 = vunpack.c.0.s8 %v604
    %v606 = vlaneseq
    %v607 = vshrl.u32 %v606, 7
    %v608 = vsub.s32 %v605, %v607
    %v609 = vrot.slane %v279, %v608
    %v611 = vunpack.c.l.s4 1414812756
    %v612 = vunpack.c.0.s8 %v611
    %v613 = vlaneseq
    %v614 = vshrl.u32 %v613, 7
    %v615 = vsub.s32 %v612, %v614
    %v616 = vrot.slane %v279, %v615
    %v618 = vunpack.c.l.s4 1987475062
    %v619 = vunpack.c.0.s8 %v618
    %v620 = vlaneseq
    %v621 = vshrl.u32 %v620, 7
    %v622 = vsub.s32 %v619, %v621
    %v623 = vrot.slane %v279, %v622
    %v625 = vunpack.c.l.s4 269488144
    %v626 = vunpack.c.0.s8 %v625
    %v627 = vlaneseq
    %v628 = vshrl.u32 %v627, 7
    %v629 = vsub.s32 %v626, %v628
    %v630 = vrot.slane %v280, %v629
    %v632 = vunpack.c.l.s4 842150450
    %v633 = vunpack.c.0.s8 %v632
    %v634 = vlaneseq
    %v635 = vshrl.u32 %v634, 7
    %v636 = vsub.s32 %v633, %v635
    %v637 = vrot.slane %v280, %v636
    %v639 = vunpack.c.l.s4 1414812756
    %v640 = vunpack.c.0.s8 %v639
    %v641 = vlaneseq
    %v642 = vshrl.u32 %v641, 7
    %v643 = vsub.s32 %v640, %v642
    %v644 = vrot.slane %v280, %v643
    %v646 = vunpack.c.l.s4 1987475062
    %v647 = vunpack.c.0.s8 %v646
    %v648 = vlaneseq
    %v649 = vshrl.u32 %v648, 7
    %v650 = vsub.s32 %v647, %v649
    %v651 = vrot.slane %v280, %v650
    %v653 = vunpack.c.l.s4 269488144
    %v654 = vunpack.c.0.s8 %v653
    %v655 = vlaneseq
    %v656 = vshrl.u32 %v655, 7
    %v657 = vsub.s32 %v654, %v656
    %v658 = vrot.slane %v281, %v657
    %v660 = vunpack.c.l.s4 842150450
    %v661 = vunpack.c.0.s8 %v660
    %v662 = vlaneseq
    %v663 = vshrl.u32 %v662, 7
    %v664 = vsub.s32 %v661, %v663
    %v665 = vrot.slane %v281, %v664
    %v667 = vunpack.c.l.s4 1414812756
    %v668 = vunpack.c.0.s8 %v667
    %v669 = vlaneseq
    %v670 = vshrl.u32 %v669, 7
    %v671 = vsub.s32 %v668, %v670
    %v672 = vrot.slane %v281, %v671
    %v674 = vunpack.c.l.s4 1987475062
    %v675 = vunpack.c.0.s8 %v674
    %v676 = vlaneseq
    %v677 = vshrl.u32 %v676, 7
    %v678 = vsub.s32 %v675, %v677
    %v679 = vrot.slane %v281, %v678
    %v681 = vunpack.c.l.s4 269488144
    %v682 = vunpack.c.0.s8 %v681
    %v683 = vlaneseq
    %v684 = vshrl.u32 %v683, 7
    %v685 = vsub.s32 %v682, %v684
    %v686 = vrot.slane %v282, %v685
    %v688 = vunpack.c.l.s4 842150450
    %v689 = vunpack.c.0.s8 %v688
    %v690 = vlaneseq
    %v691 = vshrl.u32 %v690, 7
    %v692 = vsub.s32 %v689, %v691
    %v693 = vrot.slane %v282, %v692
    %v695 = vunpack.c.l.s4 1414812756
    %v696 = vunpack.c.0.s8 %v695
    %v697 = vlaneseq
    %v698 = vshrl.u32 %v697, 7
    %v699 = vsub.s32 %v696, %v698
    %v700 = vrot.slane %v282, %v699
    %v702 = vunpack.c.l.s4 1987475062
    %v703 = vunpack.c.0.s8 %v702
    %v704 = vlaneseq
    %v705 = vshrl.u32 %v704, 7
    %v706 = vsub.s32 %v703, %v705
    %v707 = vrot.slane %v282, %v706
    %v709 = vunpack.c.l.s4 269488144
    %v710 = vunpack.c.0.s8 %v709
    %v711 = vlaneseq
    %v712 = vshrl.u32 %v711, 7
    %v713 = vsub.s32 %v710, %v712
    %v714 = vrot.slane %v283, %v713
    %v716 = vunpack.c.l.s4 842150450
    %v717 = vunpack.c.0.s8 %v716
    %v718 = vlaneseq
    %v719 = vshrl.u32 %v718, 7
    %v720 = vsub.s32 %v717, %v719
    %v721 = vrot.slane %v283, %v720
    %v723 = vunpack.c.l.s4 1414812756
    %v724 = vunpack.c.0.s8 %v723
    %v725 = vlaneseq
    %v726 = vshrl.u32 %v725, 7
    %v727 = vsub.s32 %v724, %v726
    %v728 = vrot.slane %v283, %v727
    %v730 = vunpack.c.l.s4 1987475062
    %v731 = vunpack.c.0.s8 %v730
    %v732 = vlaneseq
    %v733 = vshrl.u32 %v732, 7
    %v734 = vsub.s32 %v731, %v733
    %v735 = vrot.slane %v283, %v734
    %v737 = vunpack.c.l.s4 269488144
    %v738 = vunpack.c.0.s8 %v737
    %v739 = vlaneseq
    %v740 = vshrl.u32 %v739, 7
    %v741 = vsub.s32 %v738, %v740
    %v742 = vrot.slane %v284, %v741
    %v744 = vunpack.c.l.s4 842150450
    %v745 = vunpack.c.0.s8 %v744
    %v746 = vlaneseq
    %v747 = vshrl.u32 %v746, 7
    %v748 = vsub.s32 %v745, %v747
    %v749 = vrot.slane %v284, %v748
    %v751 = vunpack.c.l.s4 1414812756
    %v752 = vunpack.c.0.s8 %v751
    %v753 = vlaneseq
    %v754 = vshrl.u32 %v753, 7
    %v755 = vsub.s32 %v752, %v754
    %v756 = vrot.slane %v284, %v755
    %v758 = vunpack.c.l.s4 1987475062
    %v759 = vunpack.c.0.s8 %v758
    %v760 = vlaneseq
    %v761 = vshrl.u32 %v760, 7
    %v762 = vsub.s32 %v759, %v761
    %v763 = vrot.slane %v284, %v762
    %v765 = vunpack.c.l.s4 269488144
    %v766 = vunpack.c.0.s8 %v765
    %v767 = vlaneseq
    %v768 = vshrl.u32 %v767, 7
    %v769 = vsub.s32 %v766, %v768
    %v770 = vrot.slane %v285, %v769
    %v772 = vunpack.c.l.s4 842150450
    %v773 = vunpack.c.0.s8 %v772
    %v774 = vlaneseq
    %v775 = vshrl.u32 %v774, 7
    %v776 = vsub.s32 %v773, %v775
    %v777 = vrot.slane %v285, %v776
    %v779 = vunpack.c.l.s4 1414812756
    %v780 = vunpack.c.0.s8 %v779
    %v781 = vlaneseq
    %v782 = vshrl.u32 %v781, 7
    %v783 = vsub.s32 %v780, %v782
    %v784 = vrot.slane %v285, %v783
    %v786 = vunpack.c.l.s4 1987475062
    %v787 = vunpack.c.0.s8 %v786
    %v788 = vlaneseq
    %v789 = vshrl.u32 %v788, 7
    %v790 = vsub.s32 %v787, %v789
    %v791 = vrot.slane %v285, %v790
    %v793 = vunpack.c.l.s4 269488144
    %v794 = vunpack.c.0.s8 %v793
    %v795 = vlaneseq
    %v796 = vshrl.u32 %v795, 7
    %v797 = vsub.s32 %v794, %v796
    %v798 = vrot.slane %v286, %v797
    %v800 = vunpack.c.l.s4 842150450
    %v801 = vunpack.c.0.s8 %v800
    %v802 = vlaneseq
    %v803 = vshrl.u32 %v802, 7
    %v804 = vsub.s32 %v801, %v803
    %v805 = vrot.slane %v286, %v804
    %v807 = vunpack.c.l.s4 1414812756
    %v808 = vunpack.c.0.s8 %v807
    %v809 = vlaneseq
    %v810 = vshrl.u32 %v809, 7
    %v811 = vsub.s32 %v808, %v810
    %v812 = vrot.slane %v286, %v811
    %v814 = vunpack.c.l.s4 1987475062
    %v815 = vunpack.c.0.s8 %v814
    %v816 = vlaneseq
    %v817 = vshrl.u32 %v816, 7
    %v818 = vsub.s32 %v815, %v817
    %v819 = vrot.slane %v286, %v818
    %v821 = vunpack.c.l.s4 269488144
    %v822 = vunpack.c.0.s8 %v821
    %v823 = vlaneseq
    %v824 = vshrl.u32 %v823, 7
    %v825 = vsub.s32 %v822, %v824
    %v826 = vrot.slane %v287, %v825
    %v828 = vunpack.c.l.s4 842150450
    %v829 = vunpack.c.0.s8 %v828
    %v830 = vlaneseq
    %v831 = vshrl.u32 %v830, 7
    %v832 = vsub.s32 %v829, %v831
    %v833 = vrot.slane %v287, %v832
    %v835 = vunpack.c.l.s4 1414812756
    %v836 = vunpack.c.0.s8 %v835
    %v837 = vlaneseq
    %v838 = vshrl.u32 %v837, 7
    %v839 = vsub.s32 %v836, %v838
    %v840 = vrot.slane %v287, %v839
    %v842 = vunpack.c.l.s4 1987475062
    %v843 = vunpack.c.0.s8 %v842
    %v844 = vlaneseq
    %v845 = vshrl.u32 %v844, 7
    %v846 = vsub.s32 %v843, %v845
    %v847 = vrot.slane %v287, %v846
    %v849 = vunpack.c.l.s4 269488144
    %v850 = vunpack.c.0.s8 %v849
    %v851 = vlaneseq
    %v852 = vshrl.u32 %v851, 7
    %v853 = vsub.s32 %v850, %v852
    %v854 = vrot.slane %v288, %v853
    %v856 = vunpack.c.l.s4 842150450
    %v857 = vunpack.c.0.s8 %v856
    %v858 = vlaneseq
    %v859 = vshrl.u32 %v858, 7
    %v860 = vsub.s32 %v857, %v859
    %v861 = vrot.slane %v288, %v860
    %v863 = vunpack.c.l.s4 1414812756
    %v864 = vunpack.c.0.s8 %v863
    %v865 = vlaneseq
    %v866 = vshrl.u32 %v865, 7
    %v867 = vsub.s32 %v864, %v866
    %v868 = vrot.slane %v288, %v867
    %v870 = vunpack.c.l.s4 1987475062
    %v871 = vunpack.c.0.s8 %v870
    %v872 = vlaneseq
    %v873 = vshrl.u32 %v872, 7
    %v874 = vsub.s32 %v871, %v873
    %v875 = vrot.slane %v288, %v874
    %v877 = vunpack.c.l.s4 269488144
    %v878 = vunpack.c.0.s8 %v877
    %v879 = vlaneseq
    %v880 = vshrl.u32 %v879, 7
    %v881 = vsub.s32 %v878, %v880
    %v882 = vrot.slane %v289, %v881
    %v884 = vunpack.c.l.s4 842150450
    %v885 = vunpack.c.0.s8 %v884
    %v886 = vlaneseq
    %v887 = vshrl.u32 %v886, 7
    %v888 = vsub.s32 %v885, %v887
    %v889 = vrot.slane %v289, %v888
    %v891 = vunpack.c.l.s4 1414812756
    %v892 = vunpack.c.0.s8 %v891
    %v893 = vlaneseq
    %v894 = vshrl.u32 %v893, 7
    %v895 = vsub.s32 %v892, %v894
    %v896 = vrot.slane %v289, %v895
    %v898 = vunpack.c.l.s4 1987475062
    %v899 = vunpack.c.0.s8 %v898
    %v900 = vlaneseq
    %v901 = vshrl.u32 %v900, 7
    %v902 = vsub.s32 %v899, %v901
    %v903 = vrot.slane %v289, %v902
    %v905 = vunpack.c.l.s4 269488144
    %v906 = vunpack.c.0.s8 %v905
    %v907 = vlaneseq
    %v908 = vshrl.u32 %v907, 7
    %v909 = vsub.s32 %v906, %v908
    %v910 = vrot.slane %v290, %v909
    %v912 = vunpack.c.l.s4 842150450
    %v913 = vunpack.c.0.s8 %v912
    %v914 = vlaneseq
    %v915 = vshrl.u32 %v914, 7
    %v916 = vsub.s32 %v913, %v915
    %v917 = vrot.slane %v290, %v916
    %v919 = vunpack.c.l.s4 1414812756
    %v920 = vunpack.c.0.s8 %v919
    %v921 = vlaneseq
    %v922 = vshrl.u32 %v921, 7
    %v923 = vsub.s32 %v920, %v922
    %v924 = vrot.slane %v290, %v923
    %v926 = vunpack.c.l.s4 1987475062
    %v927 = vunpack.c.0.s8 %v926
    %v928 = vlaneseq
    %v929 = vshrl.u32 %v928, 7
    %v930 = vsub.s32 %v927, %v929
    %v931 = vrot.slane %v290, %v930
    %v933 = vunpack.c.l.s4 269488144
    %v934 = vunpack.c.0.s8 %v933
    %v935 = vlaneseq
    %v936 = vshrl.u32 %v935, 7
    %v937 = vsub.s32 %v934, %v936
    %v938 = vrot.slane %v291, %v937
    %v940 = vunpack.c.l.s4 842150450
    %v941 = vunpack.c.0.s8 %v940
    %v942 = vlaneseq
    %v943 = vshrl.u32 %v942, 7
    %v944 = vsub.s32 %v941, %v943
    %v945 = vrot.slane %v291, %v944
    %v947 = vunpack.c.l.s4 1414812756
    %v948 = vunpack.c.0.s8 %v947
    %v949 = vlaneseq
    %v950 = vshrl.u32 %v949, 7
    %v951 = vsub.s32 %v948, %v950
    %v952 = vrot.slane %v291, %v951
    %v954 = vunpack.c.l.s4 1987475062
    %v955 = vunpack.c.0.s8 %v954
    %v956 = vlaneseq
    %v957 = vshrl.u32 %v956, 7
    %v958 = vsub.s32 %v955, %v957
    %v959 = vrot.slane %v291, %v958
    %v961 = vunpack.c.l.s4 269488144
    %v962 = vunpack.c.0.s8 %v961
    %v963 = vlaneseq
    %v964 = vshrl.u32 %v963, 7
    %v965 = vsub.s32 %v962, %v964
    %v966 = vrot.slane %v292, %v965
    %v968 = vunpack.c.l.s4 842150450
    %v969 = vunpack.c.0.s8 %v968
    %v970 = vlaneseq
    %v971 = vshrl.u32 %v970, 7
    %v972 = vsub.s32 %v969, %v971
    %v973 = vrot.slane %v292, %v972
    %v975 = vunpack.c.l.s4 1414812756
    %v976 = vunpack.c.0.s8 %v975
    %v977 = vlaneseq
    %v978 = vshrl.u32 %v977, 7
    %v979 = vsub.s32 %v976, %v978
    %v980 = vrot.slane %v292, %v979
    %v982 = vunpack.c.l.s4 1987475062
    %v983 = vunpack.c.0.s8 %v982
    %v984 = vlaneseq
    %v985 = vshrl.u32 %v984, 7
    %v986 = vsub.s32 %v983, %v985
    %v987 = vrot.slane %v292, %v986
    %v989 = vunpack.c.l.s4 269488144
    %v990 = vunpack.c.0.s8 %v989
    %v991 = vlaneseq
    %v992 = vshrl.u32 %v991, 7
    %v993 = vsub.s32 %v990, %v992
    %v994 = vrot.slane %v293, %v993
    %v996 = vunpack.c.l.s4 842150450
    %v997 = vunpack.c.0.s8 %v996
    %v998 = vlaneseq
    %v999 = vshrl.u32 %v998, 7
    %v1000 = vsub.s32 %v997, %v999
    %v1001 = vrot.slane %v293, %v1000
    %v1003 = vunpack.c.l.s4 1414812756
    %v1004 = vunpack.c.0.s8 %v1003
    %v1005 = vlaneseq
    %v1006 = vshrl.u32 %v1005, 7
    %v1007 = vsub.s32 %v1004, %v1006
    %v1008 = vrot.slane %v293, %v1007
    %v1010 = vunpack.c.l.s4 1987475062
    %v1011 = vunpack.c.0.s8 %v1010
    %v1012 = vlaneseq
    %v1013 = vshrl.u32 %v1012, 7
    %v1014 = vsub.s32 %v1011, %v1013
    %v1015 = vrot.slane %v293, %v1014
    %v1017 = vunpack.c.l.s4 269488144
    %v1018 = vunpack.c.0.s8 %v1017
    %v1019 = vlaneseq
    %v1020 = vshrl.u32 %v1019, 7
    %v1021 = vsub.s32 %v1018, %v1020
    %v1022 = vrot.slane %v294, %v1021
    %v1024 = vunpack.c.l.s4 842150450
    %v1025 = vunpack.c.0.s8 %v1024
    %v1026 = vlaneseq
    %v1027 = vshrl.u32 %v1026, 7
    %v1028 = vsub.s32 %v1025, %v1027
    %v1029 = vrot.slane %v294, %v1028
    %v1031 = vunpack.c.l.s4 1414812756
    %v1032 = vunpack.c.0.s8 %v1031
    %v1033 = vlaneseq
    %v1034 = vshrl.u32 %v1033, 7
    %v1035 = vsub.s32 %v1032, %v1034
    %v1036 = vrot.slane %v294, %v1035
    %v1038 = vunpack.c.l.s4 1987475062
    %v1039 = vunpack.c.0.s8 %v1038
    %v1040 = vlaneseq
    %v1041 = vshrl.u32 %v1040, 7
    %v1042 = vsub.s32 %v1039, %v1041
    %v1043 = vrot.slane %v294, %v1042
    %v1045 = vunpack.c.l.s4 269488144
    %v1046 = vunpack.c.0.s8 %v1045
    %v1047 = vlaneseq
    %v1048 = vshrl.u32 %v1047, 7
    %v1049 = vsub.s32 %v1046, %v1048
    %v1050 = vrot.slane %v295, %v1049
    %v1052 = vunpack.c.l.s4 842150450
    %v1053 = vunpack.c.0.s8 %v1052
    %v1054 = vlaneseq
    %v1055 = vshrl.u32 %v1054, 7
    %v1056 = vsub.s32 %v1053, %v1055
    %v1057 = vrot.slane %v295, %v1056
    %v1059 = vunpack.c.l.s4 1414812756
    %v1060 = vunpack.c.0.s8 %v1059
    %v1061 = vlaneseq
    %v1062 = vshrl.u32 %v1061, 7
    %v1063 = vsub.s32 %v1060, %v1062
    %v1064 = vrot.slane %v295, %v1063
    %v1066 = vunpack.c.l.s4 1987475062
    %v1067 = vunpack.c.0.s8 %v1066
    %v1068 = vlaneseq
    %v1069 = vshrl.u32 %v1068, 7
    %v1070 = vsub.s32 %v1067, %v1069
    %v1071 = vrot.slane %v295, %v1070
    %v1073 = vunpack.c.l.s4 269488144
    %v1074 = vunpack.c.0.s8 %v1073
    %v1075 = vlaneseq
    %v1076 = vshrl.u32 %v1075, 7
    %v1077 = vsub.s32 %v1074, %v1076
    %v1078 = vrot.slane %v296, %v1077
    %v1080 = vunpack.c.l.s4 842150450
    %v1081 = vunpack.c.0.s8 %v1080
    %v1082 = vlaneseq
    %v1083 = vshrl.u32 %v1082, 7
    %v1084 = vsub.s32 %v1081, %v1083
    %v1085 = vrot.slane %v296, %v1084
    %v1087 = vunpack.c.l.s4 1414812756
    %v1088 = vunpack.c.0.s8 %v1087
    %v1089 = vlaneseq
    %v1090 = vshrl.u32 %v1089, 7
    %v1091 = vsub.s32 %v1088, %v1090
    %v1092 = vrot.slane %v296, %v1091
    %v1094 = vunpack.c.l.s4 1987475062
    %v1095 = vunpack.c.0.s8 %v1094
    %v1096 = vlaneseq
    %v1097 = vshrl.u32 %v1096, 7
    %v1098 = vsub.s32 %v1095, %v1097
    %v1099 = vrot.slane %v296, %v1098
    %v1101 = vunpack.c.l.s4 269488144
    %v1102 = vunpack.c.0.s8 %v1101
    %v1103 = vlaneseq
    %v1104 = vshrl.u32 %v1103, 7
    %v1105 = vsub.s32 %v1102, %v1104
    %v1106 = vrot.slane %v297, %v1105
    %v1108 = vunpack.c.l.s4 842150450
    %v1109 = vunpack.c.0.s8 %v1108
    %v1110 = vlaneseq
    %v1111 = vshrl.u32 %v1110, 7
    %v1112 = vsub.s32 %v1109, %v1111
    %v1113 = vrot.slane %v297, %v1112
    %v1115 = vunpack.c.l.s4 1414812756
    %v1116 = vunpack.c.0.s8 %v1115
    %v1117 = vlaneseq
    %v1118 = vshrl.u32 %v1117, 7
    %v1119 = vsub.s32 %v1116, %v1118
    %v1120 = vrot.slane %v297, %v1119
    %v1122 = vunpack.c.l.s4 1987475062
    %v1123 = vunpack.c.0.s8 %v1122
    %v1124 = vlaneseq
    %v1125 = vshrl.u32 %v1124, 7
    %v1126 = vsub.s32 %v1123, %v1125
    %v1127 = vrot.slane %v297, %v1126
    %v1129 = vunpack.c.l.s4 269488144
    %v1130 = vunpack.c.0.s8 %v1129
    %v1131 = vlaneseq
    %v1132 = vshrl.u32 %v1131, 7
    %v1133 = vsub.s32 %v1130, %v1132
    %v1134 = vrot.slane %v298, %v1133
    %v1136 = vunpack.c.l.s4 842150450
    %v1137 = vunpack.c.0.s8 %v1136
    %v1138 = vlaneseq
    %v1139 = vshrl.u32 %v1138, 7
    %v1140 = vsub.s32 %v1137, %v1139
    %v1141 = vrot.slane %v298, %v1140
    %v1143 = vunpack.c.l.s4 1414812756
    %v1144 = vunpack.c.0.s8 %v1143
    %v1145 = vlaneseq
    %v1146 = vshrl.u32 %v1145, 7
    %v1147 = vsub.s32 %v1144, %v1146
    %v1148 = vrot.slane %v298, %v1147
    %v1150 = vunpack.c.l.s4 1987475062
    %v1151 = vunpack.c.0.s8 %v1150
    %v1152 = vlaneseq
    %v1153 = vshrl.u32 %v1152, 7
    %v1154 = vsub.s32 %v1151, %v1153
    %v1155 = vrot.slane %v298, %v1154
    %v1157 = vunpack.c.l.s4 269488144
    %v1158 = vunpack.c.0.s8 %v1157
    %v1159 = vlaneseq
    %v1160 = vshrl.u32 %v1159, 7
    %v1161 = vsub.s32 %v1158, %v1160
    %v1162 = vrot.slane %v299, %v1161
    %v1164 = vunpack.c.l.s4 842150450
    %v1165 = vunpack.c.0.s8 %v1164
    %v1166 = vlaneseq
    %v1167 = vshrl.u32 %v1166, 7
    %v1168 = vsub.s32 %v1165, %v1167
    %v1169 = vrot.slane %v299, %v1168
    %v1171 = vunpack.c.l.s4 1414812756
    %v1172 = vunpack.c.0.s8 %v1171
    %v1173 = vlaneseq
    %v1174 = vshrl.u32 %v1173, 7
    %v1175 = vsub.s32 %v1172, %v1174
    %v1176 = vrot.slane %v299, %v1175
    %v1178 = vunpack.c.l.s4 1987475062
    %v1179 = vunpack.c.0.s8 %v1178
    %v1180 = vlaneseq
    %v1181 = vshrl.u32 %v1180, 7
    %v1182 = vsub.s32 %v1179, %v1181
    %v1183 = vrot.slane %v299, %v1182
    %v1185 = vunpack.c.l.s4 269488144
    %v1186 = vunpack.c.0.s8 %v1185
    %v1187 = vlaneseq
    %v1188 = vshrl.u32 %v1187, 7
    %v1189 = vsub.s32 %v1186, %v1188
    %v1190 = vrot.slane %v300, %v1189
    %v1192 = vunpack.c.l.s4 842150450
    %v1193 = vunpack.c.0.s8 %v1192
    %v1194 = vlaneseq
    %v1195 = vshrl.u32 %v1194, 7
    %v1196 = vsub.s32 %v1193, %v1195
    %v1197 = vrot.slane %v300, %v1196
    %v1199 = vunpack.c.l.s4 1414812756
    %v1200 = vunpack.c.0.s8 %v1199
    %v1201 = vlaneseq
    %v1202 = vshrl.u32 %v1201, 7
    %v1203 = vsub.s32 %v1200, %v1202
    %v1204 = vrot.slane %v300, %v1203
    %v1206 = vunpack.c.l.s4 1987475062
    %v1207 = vunpack.c.0.s8 %v1206
    %v1208 = vlaneseq
    %v1209 = vshrl.u32 %v1208, 7
    %v1210 = vsub.s32 %v1207, %v1209
    %v1211 = vrot.slane %v300, %v1210
    %v1213 = vunpack.c.l.s4 269488144
    %v1214 = vunpack.c.0.s8 %v1213
    %v1215 = vlaneseq
    %v1216 = vshrl.u32 %v1215, 7
    %v1217 = vsub.s32 %v1214, %v1216
    %v1218 = vrot.slane %v301, %v1217
    %v1220 = vunpack.c.l.s4 842150450
    %v1221 = vunpack.c.0.s8 %v1220
    %v1222 = vlaneseq
    %v1223 = vshrl.u32 %v1222, 7
    %v1224 = vsub.s32 %v1221, %v1223
    %v1225 = vrot.slane %v301, %v1224
    %v1227 = vunpack.c.l.s4 1414812756
    %v1228 = vunpack.c.0.s8 %v1227
    %v1229 = vlaneseq
    %v1230 = vshrl.u32 %v1229, 7
    %v1231 = vsub.s32 %v1228, %v1230
    %v1232 = vrot.slane %v301, %v1231
    %v1234 = vunpack.c.l.s4 1987475062
    %v1235 = vunpack.c.0.s8 %v1234
    %v1236 = vlaneseq
    %v1237 = vshrl.u32 %v1236, 7
    %v1238 = vsub.s32 %v1235, %v1237
    %v1239 = vrot.slane %v301, %v1238
    %v1241 = vunpack.c.l.s4 269488144
    %v1242 = vunpack.c.0.s8 %v1241
    %v1243 = vlaneseq
    %v1244 = vshrl.u32 %v1243, 7
    %v1245 = vsub.s32 %v1242, %v1244
    %v1246 = vrot.slane %v302, %v1245
    %v1248 = vunpack.c.l.s4 842150450
    %v1249 = vunpack.c.0.s8 %v1248
    %v1250 = vlaneseq
    %v1251 = vshrl.u32 %v1250, 7
    %v1252 = vsub.s32 %v1249, %v1251
    %v1253 = vrot.slane %v302, %v1252
    %v1255 = vunpack.c.l.s4 1414812756
    %v1256 = vunpack.c.0.s8 %v1255
    %v1257 = vlaneseq
    %v1258 = vshrl.u32 %v1257, 7
    %v1259 = vsub.s32 %v1256, %v1258
    %v1260 = vrot.slane %v302, %v1259
    %v1262 = vunpack.c.l.s4 1987475062
    %v1263 = vunpack.c.0.s8 %v1262
    %v1264 = vlaneseq
    %v1265 = vshrl.u32 %v1264, 7
    %v1266 = vsub.s32 %v1263, %v1265
    %v1267 = vrot.slane %v302, %v1266
    %v1269 = vunpack.c.l.s4 269488144
    %v1270 = vunpack.c.0.s8 %v1269
    %v1271 = vlaneseq
    %v1272 = vshrl.u32 %v1271, 7
    %v1273 = vsub.s32 %v1270, %v1272
    %v1274 = vrot.slane %v303, %v1273
    %v1276 = vunpack.c.l.s4 842150450
    %v1277 = vunpack.c.0.s8 %v1276
    %v1278 = vlaneseq
    %v1279 = vshrl.u32 %v1278, 7
    %v1280 = vsub.s32 %v1277, %v1279
    %v1281 = vrot.slane %v303, %v1280
    %v1283 = vunpack.c.l.s4 1414812756
    %v1284 = vunpack.c.0.s8 %v1283
    %v1285 = vlaneseq
    %v1286 = vshrl.u32 %v1285, 7
    %v1287 = vsub.s32 %v1284, %v1286
    %v1288 = vrot.slane %v303, %v1287
    %v1290 = vunpack.c.l.s4 1987475062
    %v1291 = vunpack.c.0.s8 %v1290
    %v1292 = vlaneseq
    %v1293 = vshrl.u32 %v1292, 7
    %v1294 = vsub.s32 %v1291, %v1293
    %v1295 = vrot.slane %v303, %v1294
    %v1297 = vunpack.c.l.s4 269488144
    %v1298 = vunpack.c.0.s8 %v1297
    %v1299 = vlaneseq
    %v1300 = vshrl.u32 %v1299, 7
    %v1301 = vsub.s32 %v1298, %v1300
    %v1302 = vrot.slane %v304, %v1301
    %v1304 = vunpack.c.l.s4 842150450
    %v1305 = vunpack.c.0.s8 %v1304
    %v1306 = vlaneseq
    %v1307 = vshrl.u32 %v1306, 7
    %v1308 = vsub.s32 %v1305, %v1307
    %v1309 = vrot.slane %v304, %v1308
    %v1311 = vunpack.c.l.s4 1414812756
    %v1312 = vunpack.c.0.s8 %v1311
    %v1313 = vlaneseq
    %v1314 = vshrl.u32 %v1313, 7
    %v1315 = vsub.s32 %v1312, %v1314
    %v1316 = vrot.slane %v304, %v1315
    %v1318 = vunpack.c.l.s4 1987475062
    %v1319 = vunpack.c.0.s8 %v1318
    %v1320 = vlaneseq
    %v1321 = vshrl.u32 %v1320, 7
    %v1322 = vsub.s32 %v1319, %v1321
    %v1323 = vrot.slane %v304, %v1322
    %v1325 = vunpack.c.l.s4 269488144
    %v1326 = vunpack.c.0.s8 %v1325
    %v1327 = vlaneseq
    %v1328 = vshrl.u32 %v1327, 7
    %v1329 = vsub.s32 %v1326, %v1328
    %v1330 = vrot.slane %v305, %v1329
    %v1332 = vunpack.c.l.s4 842150450
    %v1333 = vunpack.c.0.s8 %v1332
    %v1334 = vlaneseq
    %v1335 = vshrl.u32 %v1334, 7
    %v1336 = vsub.s32 %v1333, %v1335
    %v1337 = vrot.slane %v305, %v1336
    %v1339 = vunpack.c.l.s4 1414812756
    %v1340 = vunpack.c.0.s8 %v1339
    %v1341 = vlaneseq
    %v1342 = vshrl.u32 %v1341, 7
    %v1343 = vsub.s32 %v1340, %v1342
    %v1344 = vrot.slane %v305, %v1343
    %v1346 = vunpack.c.l.s4 1987475062
    %v1347 = vunpack.c.0.s8 %v1346
    %v1348 = vlaneseq
    %v1349 = vshrl.u32 %v1348, 7
    %v1350 = vsub.s32 %v1347, %v1349
    %v1351 = vrot.slane %v305, %v1350
    %v1353 = vunpack.c.l.s4 269488144
    %v1354 = vunpack.c.0.s8 %v1353
    %v1355 = vlaneseq
    %v1356 = vshrl.u32 %v1355, 7
    %v1357 = vsub.s32 %v1354, %v1356
    %v1358 = vrot.slane %v306, %v1357
    %v1360 = vunpack.c.l.s4 842150450
    %v1361 = vunpack.c.0.s8 %v1360
    %v1362 = vlaneseq
    %v1363 = vshrl.u32 %v1362, 7
    %v1364 = vsub.s32 %v1361, %v1363
    %v1365 = vrot.slane %v306, %v1364
    %v1367 = vunpack.c.l.s4 1414812756
    %v1368 = vunpack.c.0.s8 %v1367
    %v1369 = vlaneseq
    %v1370 = vshrl.u32 %v1369, 7
    %v1371 = vsub.s32 %v1368, %v1370
    %v1372 = vrot.slane %v306, %v1371
    %v1374 = vunpack.c.l.s4 1987475062
    %v1375 = vunpack.c.0.s8 %v1374
    %v1376 = vlaneseq
    %v1377 = vshrl.u32 %v1376, 7
    %v1378 = vsub.s32 %v1375, %v1377
    %v1379 = vrot.slane %v306, %v1378
    %v1381 = vunpack.c.l.s4 269488144
    %v1382 = vunpack.c.0.s8 %v1381
    %v1383 = vlaneseq
    %v1384 = vshrl.u32 %v1383, 7
    %v1385 = vsub.s32 %v1382, %v1384
    %v1386 = vrot.slane %v307, %v1385
    %v1388 = vunpack.c.l.s4 842150450
    %v1389 = vunpack.c.0.s8 %v1388
    %v1390 = vlaneseq
    %v1391 = vshrl.u32 %v1390, 7
    %v1392 = vsub.s32 %v1389, %v1391
    %v1393 = vrot.slane %v307, %v1392
    %v1395 = vunpack.c.l.s4 1414812756
    %v1396 = vunpack.c.0.s8 %v1395
    %v1397 = vlaneseq
    %v1398 = vshrl.u32 %v1397, 7
    %v1399 = vsub.s32 %v1396, %v1398
    %v1400 = vrot.slane %v307, %v1399
    %v1402 = vunpack.c.l.s4 1987475062
    %v1403 = vunpack.c.0.s8 %v1402
    %v1404 = vlaneseq
    %v1405 = vshrl.u32 %v1404, 7
    %v1406 = vsub.s32 %v1403, %v1405
    %v1407 = vrot.slane %v307, %v1406
    %v1409 = vunpack.c.l.s4 269488144
    %v1410 = vunpack.c.0.s8 %v1409
    %v1411 = vlaneseq
    %v1412 = vshrl.u32 %v1411, 7
    %v1413 = vsub.s32 %v1410, %v1412
    %v1414 = vrot.slane %v308, %v1413
    %v1416 = vunpack.c.l.s4 842150450
    %v1417 = vunpack.c.0.s8 %v1416
    %v1418 = vlaneseq
    %v1419 = vshrl.u32 %v1418, 7
    %v1420 = vsub.s32 %v1417, %v1419
    %v1421 = vrot.slane %v308, %v1420
    %v1423 = vunpack.c.l.s4 1414812756
    %v1424 = vunpack.c.0.s8 %v1423
    %v1425 = vlaneseq
    %v1426 = vshrl.u32 %v1425, 7
    %v1427 = vsub.s32 %v1424, %v1426
    %v1428 = vrot.slane %v308, %v1427
    %v1430 = vunpack.c.l.s4 1987475062
    %v1431 = vunpack.c.0.s8 %v1430
    %v1432 = vlaneseq
    %v1433 = vshrl.u32 %v1432, 7
    %v1434 = vsub.s32 %v1431, %v1433
    %v1435 = vrot.slane %v308, %v1434
    %v1437 = vunpack.c.l.s4 269488144
    %v1438 = vunpack.c.0.s8 %v1437
    %v1439 = vlaneseq
    %v1440 = vshrl.u32 %v1439, 7
    %v1441 = vsub.s32 %v1438, %v1440
    %v1442 = vrot.slane %v309, %v1441
    %v1444 = vunpack.c.l.s4 842150450
    %v1445 = vunpack.c.0.s8 %v1444
    %v1446 = vlaneseq
    %v1447 = vshrl.u32 %v1446, 7
    %v1448 = vsub.s32 %v1445, %v1447
    %v1449 = vrot.slane %v309, %v1448
    %v1451 = vunpack.c.l.s4 1414812756
    %v1452 = vunpack.c.0.s8 %v1451
    %v1453 = vlaneseq
    %v1454 = vshrl.u32 %v1453, 7
    %v1455 = vsub.s32 %v1452, %v1454
    %v1456 = vrot.slane %v309, %v1455
    %v1458 = vunpack.c.l.s4 1987475062
    %v1459 = vunpack.c.0.s8 %v1458
    %v1460 = vlaneseq
    %v1461 = vshrl.u32 %v1460, 7
    %v1462 = vsub.s32 %v1459, %v1461
    %v1463 = vrot.slane %v309, %v1462
    %v1465 = vunpack.c.l.s4 269488144
    %v1466 = vunpack.c.0.s8 %v1465
    %v1467 = vlaneseq
    %v1468 = vshrl.u32 %v1467, 7
    %v1469 = vsub.s32 %v1466, %v1468
    %v1470 = vrot.slane %v310, %v1469
    %v1472 = vunpack.c.l.s4 842150450
    %v1473 = vunpack.c.0.s8 %v1472
    %v1474 = vlaneseq
    %v1475 = vshrl.u32 %v1474, 7
    %v1476 = vsub.s32 %v1473, %v1475
    %v1477 = vrot.slane %v310, %v1476
    %v1479 = vunpack.c.l.s4 1414812756
    %v1480 = vunpack.c.0.s8 %v1479
    %v1481 = vlaneseq
    %v1482 = vshrl.u32 %v1481, 7
    %v1483 = vsub.s32 %v1480, %v1482
    %v1484 = vrot.slane %v310, %v1483
    %v1486 = vunpack.c.l.s4 1987475062
    %v1487 = vunpack.c.0.s8 %v1486
    %v1488 = vlaneseq
    %v1489 = vshrl.u32 %v1488, 7
    %v1490 = vsub.s32 %v1487, %v1489
    %v1491 = vrot.slane %v310, %v1490
    %v1493 = vunpack.c.l.s4 269488144
    %v1494 = vunpack.c.0.s8 %v1493
    %v1495 = vlaneseq
    %v1496 = vshrl.u32 %v1495, 7
    %v1497 = vsub.s32 %v1494, %v1496
    %v1498 = vrot.slane %v311, %v1497
    %v1500 = vunpack.c.l.s4 842150450
    %v1501 = vunpack.c.0.s8 %v1500
    %v1502 = vlaneseq
    %v1503 = vshrl.u32 %v1502, 7
    %v1504 = vsub.s32 %v1501, %v1503
    %v1505 = vrot.slane %v311, %v1504
    %v1507 = vunpack.c.l.s4 1414812756
    %v1508 = vunpack.c.0.s8 %v1507
    %v1509 = vlaneseq
    %v1510 = vshrl.u32 %v1509, 7
    %v1511 = vsub.s32 %v1508, %v1510
    %v1512 = vrot.slane %v311, %v1511
    %v1514 = vunpack.c.l.s4 1987475062
    %v1515 = vunpack.c.0.s8 %v1514
    %v1516 = vlaneseq
    %v1517 = vshrl.u32 %v1516, 7
    %v1518 = vsub.s32 %v1515, %v1517
    %v1519 = vrot.slane %v311, %v1518
    %v1521 = vunpack.c.l.s4 269488144
    %v1522 = vunpack.c.0.s8 %v1521
    %v1523 = vlaneseq
    %v1524 = vshrl.u32 %v1523, 7
    %v1525 = vsub.s32 %v1522, %v1524
    %v1526 = vrot.slane %v312, %v1525
    %v1528 = vunpack.c.l.s4 842150450
    %v1529 = vunpack.c.0.s8 %v1528
    %v1530 = vlaneseq
    %v1531 = vshrl.u32 %v1530, 7
    %v1532 = vsub.s32 %v1529, %v1531
    %v1533 = vrot.slane %v312, %v1532
    %v1535 = vunpack.c.l.s4 1414812756
    %v1536 = vunpack.c.0.s8 %v1535
    %v1537 = vlaneseq
    %v1538 = vshrl.u32 %v1537, 7
    %v1539 = vsub.s32 %v1536, %v1538
    %v1540 = vrot.slane %v312, %v1539
    %v1542 = vunpack.c.l.s4 1987475062
    %v1543 = vunpack.c.0.s8 %v1542
    %v1544 = vlaneseq
    %v1545 = vshrl.u32 %v1544, 7
    %v1546 = vsub.s32 %v1543, %v1545
    %v1547 = vrot.slane %v312, %v1546
    %v1549 = vunpack.c.l.s4 269488144
    %v1550 = vunpack.c.0.s8 %v1549
    %v1551 = vlaneseq
    %v1552 = vshrl.u32 %v1551, 7
    %v1553 = vsub.s32 %v1550, %v1552
    %v1554 = vrot.slane %v313, %v1553
    %v1556 = vunpack.c.l.s4 842150450
    %v1557 = vunpack.c.0.s8 %v1556
    %v1558 = vlaneseq
    %v1559 = vshrl.u32 %v1558, 7
    %v1560 = vsub.s32 %v1557, %v1559
    %v1561 = vrot.slane %v313, %v1560
    %v1563 = vunpack.c.l.s4 1414812756
    %v1564 = vunpack.c.0.s8 %v1563
    %v1565 = vlaneseq
    %v1566 = vshrl.u32 %v1565, 7
    %v1567 = vsub.s32 %v1564, %v1566
    %v1568 = vrot.slane %v313, %v1567
    %v1570 = vunpack.c.l.s4 1987475062
    %v1571 = vunpack.c.0.s8 %v1570
    %v1572 = vlaneseq
    %v1573 = vshrl.u32 %v1572, 7
    %v1574 = vsub.s32 %v1571, %v1573
    %v1575 = vrot.slane %v313, %v1574
    %v1577 = vunpack.c.l.s4 269488144
    %v1578 = vunpack.c.0.s8 %v1577
    %v1579 = vlaneseq
    %v1580 = vshrl.u32 %v1579, 7
    %v1581 = vsub.s32 %v1578, %v1580
    %v1582 = vrot.slane %v314, %v1581
    %v1584 = vunpack.c.l.s4 842150450
    %v1585 = vunpack.c.0.s8 %v1584
    %v1586 = vlaneseq
    %v1587 = vshrl.u32 %v1586, 7
    %v1588 = vsub.s32 %v1585, %v1587
    %v1589 = vrot.slane %v314, %v1588
    %v1591 = vunpack.c.l.s4 1414812756
    %v1592 = vunpack.c.0.s8 %v1591
    %v1593 = vlaneseq
    %v1594 = vshrl.u32 %v1593, 7
    %v1595 = vsub.s32 %v1592, %v1594
    %v1596 = vrot.slane %v314, %v1595
    %v1598 = vunpack.c.l.s4 1987475062
    %v1599 = vunpack.c.0.s8 %v1598
    %v1600 = vlaneseq
    %v1601 = vshrl.u32 %v1600, 7
    %v1602 = vsub.s32 %v1599, %v1601
    %v1603 = vrot.slane %v314, %v1602
    %v1605 = vunpack.c.l.s4 269488144
    %v1606 = vunpack.c.0.s8 %v1605
    %v1607 = vlaneseq
    %v1608 = vshrl.u32 %v1607, 7
    %v1609 = vsub.s32 %v1606, %v1608
    %v1610 = vrot.slane %v315, %v1609
    %v1612 = vunpack.c.l.s4 842150450
    %v1613 = vunpack.c.0.s8 %v1612
    %v1614 = vlaneseq
    %v1615 = vshrl.u32 %v1614, 7
    %v1616 = vsub.s32 %v1613, %v1615
    %v1617 = vrot.slane %v315, %v1616
    %v1619 = vunpack.c.l.s4 1414812756
    %v1620 = vunpack.c.0.s8 %v1619
    %v1621 = vlaneseq
    %v1622 = vshrl.u32 %v1621, 7
    %v1623 = vsub.s32 %v1620, %v1622
    %v1624 = vrot.slane %v315, %v1623
    %v1626 = vunpack.c.l.s4 1987475062
    %v1627 = vunpack.c.0.s8 %v1626
    %v1628 = vlaneseq
    %v1629 = vshrl.u32 %v1628, 7
    %v1630 = vsub.s32 %v1627, %v1629
    %v1631 = vrot.slane %v315, %v1630
    %v1633 = vunpack.c.l.s4 269488144
    %v1634 = vunpack.c.0.s8 %v1633
    %v1635 = vlaneseq
    %v1636 = vshrl.u32 %v1635, 7
    %v1637 = vsub.s32 %v1634, %v1636
    %v1638 = vrot.slane %v316, %v1637
    %v1640 = vunpack.c.l.s4 842150450
    %v1641 = vunpack.c.0.s8 %v1640
    %v1642 = vlaneseq
    %v1643 = vshrl.u32 %v1642, 7
    %v1644 = vsub.s32 %v1641, %v1643
    %v1645 = vrot.slane %v316, %v1644
    %v1647 = vunpack.c.l.s4 1414812756
    %v1648 = vunpack.c.0.s8 %v1647
    %v1649 = vlaneseq
    %v1650 = vshrl.u32 %v1649, 7
    %v1651 = vsub.s32 %v1648, %v1650
    %v1652 = vrot.slane %v316, %v1651
    %v1654 = vunpack.c.l.s4 1987475062
    %v1655 = vunpack.c.0.s8 %v1654
    %v1656 = vlaneseq
    %v1657 = vshrl.u32 %v1656, 7
    %v1658 = vsub.s32 %v1655, %v1657
    %v1659 = vrot.slane %v316, %v1658
    %v1661 = vunpack.c.l.s4 269488144
    %v1662 = vunpack.c.0.s8 %v1661
    %v1663 = vlaneseq
    %v1664 = vshrl.u32 %v1663, 7
    %v1665 = vsub.s32 %v1662, %v1664
    %v1666 = vrot.slane %v317, %v1665
    %v1668 = vunpack.c.l.s4 842150450
    %v1669 = vunpack.c.0.s8 %v1668
    %v1670 = vlaneseq
    %v1671 = vshrl.u32 %v1670, 7
    %v1672 = vsub.s32 %v1669, %v1671
    %v1673 = vrot.slane %v317, %v1672
    %v1675 = vunpack.c.l.s4 1414812756
    %v1676 = vunpack.c.0.s8 %v1675
    %v1677 = vlaneseq
    %v1678 = vshrl.u32 %v1677, 7
    %v1679 = vsub.s32 %v1676, %v1678
    %v1680 = vrot.slane %v317, %v1679
    %v1682 = vunpack.c.l.s4 1987475062
    %v1683 = vunpack.c.0.s8 %v1682
    %v1684 = vlaneseq
    %v1685 = vshrl.u32 %v1684, 7
    %v1686 = vsub.s32 %v1683, %v1685
    %v1687 = vrot.slane %v317, %v1686
    %v1689 = vunpack.c.l.s4 269488144
    %v1690 = vunpack.c.0.s8 %v1689
    %v1691 = vlaneseq
    %v1692 = vshrl.u32 %v1691, 7
    %v1693 = vsub.s32 %v1690, %v1692
    %v1694 = vrot.slane %v318, %v1693
    %v1696 = vunpack.c.l.s4 842150450
    %v1697 = vunpack.c.0.s8 %v1696
    %v1698 = vlaneseq
    %v1699 = vshrl.u32 %v1698, 7
    %v1700 = vsub.s32 %v1697, %v1699
    %v1701 = vrot.slane %v318, %v1700
    %v1703 = vunpack.c.l.s4 1414812756
    %v1704 = vunpack.c.0.s8 %v1703
    %v1705 = vlaneseq
    %v1706 = vshrl.u32 %v1705, 7
    %v1707 = vsub.s32 %v1704, %v1706
    %v1708 = vrot.slane %v318, %v1707
    %v1710 = vunpack.c.l.s4 1987475062
    %v1711 = vunpack.c.0.s8 %v1710
    %v1712 = vlaneseq
    %v1713 = vshrl.u32 %v1712, 7
    %v1714 = vsub.s32 %v1711, %v1713
    %v1715 = vrot.slane %v318, %v1714
    %v1717 = vunpack.c.l.s4 269488144
    %v1718 = vunpack.c.0.s8 %v1717
    %v1719 = vlaneseq
    %v1720 = vshrl.u32 %v1719, 7
    %v1721 = vsub.s32 %v1718, %v1720
    %v1722 = vrot.slane %v319, %v1721
    %v1724 = vunpack.c.l.s4 842150450
    %v1725 = vunpack.c.0.s8 %v1724
    %v1726 = vlaneseq
    %v1727 = vshrl.u32 %v1726, 7
    %v1728 = vsub.s32 %v1725, %v1727
    %v1729 = vrot.slane %v319, %v1728
    %v1731 = vunpack.c.l.s4 1414812756
    %v1732 = vunpack.c.0.s8 %v1731
    %v1733 = vlaneseq
    %v1734 = vshrl.u32 %v1733, 7
    %v1735 = vsub.s32 %v1732, %v1734
    %v1736 = vrot.slane %v319, %v1735
    %v1738 = vunpack.c.l.s4 1987475062
    %v1739 = vunpack.c.0.s8 %v1738
    %v1740 = vlaneseq
    %v1741 = vshrl.u32 %v1740, 7
    %v1742 = vsub.s32 %v1739, %v1741
    %v1743 = vrot.slane %v319, %v1742
    %v1745 = vunpack.c.l.s4 269488144
    %v1746 = vunpack.c.0.s8 %v1745
    %v1747 = vlaneseq
    %v1748 = vshrl.u32 %v1747, 7
    %v1749 = vsub.s32 %v1746, %v1748
    %v1750 = vrot.slane %v320, %v1749
    %v1752 = vunpack.c.l.s4 842150450
    %v1753 = vunpack.c.0.s8 %v1752
    %v1754 = vlaneseq
    %v1755 = vshrl.u32 %v1754, 7
    %v1756 = vsub.s32 %v1753, %v1755
    %v1757 = vrot.slane %v320, %v1756
    %v1759 = vunpack.c.l.s4 1414812756
    %v1760 = vunpack.c.0.s8 %v1759
    %v1761 = vlaneseq
    %v1762 = vshrl.u32 %v1761, 7
    %v1763 = vsub.s32 %v1760, %v1762
    %v1764 = vrot.slane %v320, %v1763
    %v1766 = vunpack.c.l.s4 1987475062
    %v1767 = vunpack.c.0.s8 %v1766
    %v1768 = vlaneseq
    %v1769 = vshrl.u32 %v1768, 7
    %v1770 = vsub.s32 %v1767, %v1769
    %v1771 = vrot.slane %v320, %v1770
    %v1773 = vunpack.c.l.s4 269488144
    %v1774 = vunpack.c.0.s8 %v1773
    %v1775 = vlaneseq
    %v1776 = vshrl.u32 %v1775, 7
    %v1777 = vsub.s32 %v1774, %v1776
    %v1778 = vrot.slane %v321, %v1777
    %v1780 = vunpack.c.l.s4 842150450
    %v1781 = vunpack.c.0.s8 %v1780
    %v1782 = vlaneseq
    %v1783 = vshrl.u32 %v1782, 7
    %v1784 = vsub.s32 %v1781, %v1783
    %v1785 = vrot.slane %v321, %v1784
    %v1787 = vunpack.c.l.s4 1414812756
    %v1788 = vunpack.c.0.s8 %v1787
    %v1789 = vlaneseq
    %v1790 = vshrl.u32 %v1789, 7
    %v1791 = vsub.s32 %v1788, %v1790
    %v1792 = vrot.slane %v321, %v1791
    %v1794 = vunpack.c.l.s4 1987475062
    %v1795 = vunpack.c.0.s8 %v1794
    %v1796 = vlaneseq
    %v1797 = vshrl.u32 %v1796, 7
    %v1798 = vsub.s32 %v1795, %v1797
    %v1799 = vrot.slane %v321, %v1798
    %v1801 = vunpack.c.l.s4 269488144
    %v1802 = vunpack.c.0.s8 %v1801
    %v1803 = vlaneseq
    %v1804 = vshrl.u32 %v1803, 7
    %v1805 = vsub.s32 %v1802, %v1804
    %v1806 = vrot.slane %v322, %v1805
    %v1808 = vunpack.c.l.s4 842150450
    %v1809 = vunpack.c.0.s8 %v1808
    %v1810 = vlaneseq
    %v1811 = vshrl.u32 %v1810, 7
    %v1812 = vsub.s32 %v1809, %v1811
    %v1813 = vrot.slane %v322, %v1812
    %v1815 = vunpack.c.l.s4 1414812756
    %v1816 = vunpack.c.0.s8 %v1815
    %v1817 = vlaneseq
    %v1818 = vshrl.u32 %v1817, 7
    %v1819 = vsub.s32 %v1816, %v1818
    %v1820 = vrot.slane %v322, %v1819
    %v1822 = vunpack.c.l.s4 1987475062
    %v1823 = vunpack.c.0.s8 %v1822
    %v1824 = vlaneseq
    %v1825 = vshrl.u32 %v1824, 7
    %v1826 = vsub.s32 %v1823, %v1825
    %v1827 = vrot.slane %v322, %v1826
    %v1829 = vunpack.c.l.s4 269488144
    %v1830 = vunpack.c.0.s8 %v1829
    %v1831 = vlaneseq
    %v1832 = vshrl.u32 %v1831, 7
    %v1833 = vsub.s32 %v1830, %v1832
    %v1834 = vrot.slane %v323, %v1833
    %v1836 = vunpack.c.l.s4 842150450
    %v1837 = vunpack.c.0.s8 %v1836
    %v1838 = vlaneseq
    %v1839 = vshrl.u32 %v1838, 7
    %v1840 = vsub.s32 %v1837, %v1839
    %v1841 = vrot.slane %v323, %v1840
    %v1843 = vunpack.c.l.s4 1414812756
    %v1844 = vunpack.c.0.s8 %v1843
    %v1845 = vlaneseq
    %v1846 = vshrl.u32 %v1845, 7
    %v1847 = vsub.s32 %v1844, %v1846
    %v1848 = vrot.slane %v323, %v1847
    %v1850 = vunpack.c.l.s4 1987475062
    %v1851 = vunpack.c.0.s8 %v1850
    %v1852 = vlaneseq
    %v1853 = vshrl.u32 %v1852, 7
    %v1854 = vsub.s32 %v1851, %v1853
    %v1855 = vrot.slane %v323, %v1854
    %v1857 = vunpack.c.l.s4 269488144
    %v1858 = vunpack.c.0.s8 %v1857
    %v1859 = vlaneseq
    %v1860 = vshrl.u32 %v1859, 7
    %v1861 = vsub.s32 %v1858, %v1860
    %v1862 = vrot.slane %v324, %v1861
    %v1864 = vunpack.c.l.s4 842150450
    %v1865 = vunpack.c.0.s8 %v1864
    %v1866 = vlaneseq
    %v1867 = vshrl.u32 %v1866, 7
    %v1868 = vsub.s32 %v1865, %v1867
    %v1869 = vrot.slane %v324, %v1868
    %v1871 = vunpack.c.l.s4 1414812756
    %v1872 = vunpack.c.0.s8 %v1871
    %v1873 = vlaneseq
    %v1874 = vshrl.u32 %v1873, 7
    %v1875 = vsub.s32 %v1872, %v1874
    %v1876 = vrot.slane %v324, %v1875
    %v1878 = vunpack.c.l.s4 1987475062
    %v1879 = vunpack.c.0.s8 %v1878
    %v1880 = vlaneseq
    %v1881 = vshrl.u32 %v1880, 7
    %v1882 = vsub.s32 %v1879, %v1881
    %v1883 = vrot.slane %v324, %v1882
    %v1885 = vunpack.c.l.s4 269488144
    %v1886 = vunpack.c.0.s8 %v1885
    %v1887 = vlaneseq
    %v1888 = vshrl.u32 %v1887, 7
    %v1889 = vsub.s32 %v1886, %v1888
    %v1890 = vrot.slane %v325, %v1889
    %v1892 = vunpack.c.l.s4 842150450
    %v1893 = vunpack.c.0.s8 %v1892
    %v1894 = vlaneseq
    %v1895 = vshrl.u32 %v1894, 7
    %v1896 = vsub.s32 %v1893, %v1895
    %v1897 = vrot.slane %v325, %v1896
    %v1899 = vunpack.c.l.s4 1414812756
    %v1900 = vunpack.c.0.s8 %v1899
    %v1901 = vlaneseq
    %v1902 = vshrl.u32 %v1901, 7
    %v1903 = vsub.s32 %v1900, %v1902
    %v1904 = vrot.slane %v325, %v1903
    %v1906 = vunpack.c.l.s4 1987475062
    %v1907 = vunpack.c.0.s8 %v1906
    %v1908 = vlaneseq
    %v1909 = vshrl.u32 %v1908, 7
    %v1910 = vsub.s32 %v1907, %v1909
    %v1911 = vrot.slane %v325, %v1910
    %v1913 = vunpack.c.l.s4 269488144
    %v1914 = vunpack.c.0.s8 %v1913
    %v1915 = vlaneseq
    %v1916 = vshrl.u32 %v1915, 7
    %v1917 = vsub.s32 %v1914, %v1916
    %v1918 = vrot.slane %v326, %v1917
    %v1920 = vunpack.c.l.s4 842150450
    %v1921 = vunpack.c.0.s8 %v1920
    %v1922 = vlaneseq
    %v1923 = vshrl.u32 %v1922, 7
    %v1924 = vsub.s32 %v1921, %v1923
    %v1925 = vrot.slane %v326, %v1924
    %v1927 = vunpack.c.l.s4 1414812756
    %v1928 = vunpack.c.0.s8 %v1927
    %v1929 = vlaneseq
    %v1930 = vshrl.u32 %v1929, 7
    %v1931 = vsub.s32 %v1928, %v1930
    %v1932 = vrot.slane %v326, %v1931
    %v1934 = vunpack.c.l.s4 1987475062
    %v1935 = vunpack.c.0.s8 %v1934
    %v1936 = vlaneseq
    %v1937 = vshrl.u32 %v1936, 7
    %v1938 = vsub.s32 %v1935, %v1937
    %v1939 = vrot.slane %v326, %v1938
    %v1941 = vunpack.c.l.s4 269488144
    %v1942 = vunpack.c.0.s8 %v1941
    %v1943 = vlaneseq
    %v1944 = vshrl.u32 %v1943, 7
    %v1945 = vsub.s32 %v1942, %v1944
    %v1946 = vrot.slane %v327, %v1945
    %v1948 = vunpack.c.l.s4 842150450
    %v1949 = vunpack.c.0.s8 %v1948
    %v1950 = vlaneseq
    %v1951 = vshrl.u32 %v1950, 7
    %v1952 = vsub.s32 %v1949, %v1951
    %v1953 = vrot.slane %v327, %v1952
    %v1955 = vunpack.c.l.s4 1414812756
    %v1956 = vunpack.c.0.s8 %v1955
    %v1957 = vlaneseq
    %v1958 = vshrl.u32 %v1957, 7
    %v1959 = vsub.s32 %v1956, %v1958
    %v1960 = vrot.slane %v327, %v1959
    %v1962 = vunpack.c.l.s4 1987475062
    %v1963 = vunpack.c.0.s8 %v1962
    %v1964 = vlaneseq
    %v1965 = vshrl.u32 %v1964, 7
    %v1966 = vsub.s32 %v1963, %v1965
    %v1967 = vrot.slane %v327, %v1966
    %v1969 = vunpack.c.l.s4 269488144
    %v1970 = vunpack.c.0.s8 %v1969
    %v1971 = vlaneseq
    %v1972 = vshrl.u32 %v1971, 7
    %v1973 = vsub.s32 %v1970, %v1972
    %v1974 = vrot.slane %v328, %v1973
    %v1976 = vunpack.c.l.s4 842150450
    %v1977 = vunpack.c.0.s8 %v1976
    %v1978 = vlaneseq
    %v1979 = vshrl.u32 %v1978, 7
    %v1980 = vsub.s32 %v1977, %v1979
    %v1981 = vrot.slane %v328, %v1980
    %v1983 = vunpack.c.l.s4 1414812756
    %v1984 = vunpack.c.0.s8 %v1983
    %v1985 = vlaneseq
    %v1986 = vshrl.u32 %v1985, 7
    %v1987 = vsub.s32 %v1984, %v1986
    %v1988 = vrot.slane %v328, %v1987
    %v1990 = vunpack.c.l.s4 1987475062
    %v1991 = vunpack.c.0.s8 %v1990
    %v1992 = vlaneseq
    %v1993 = vshrl.u32 %v1992, 7
    %v1994 = vsub.s32 %v1991, %v1993
    %v1995 = vrot.slane %v328, %v1994
    %v1997 = vunpack.c.l.s4 269488144
    %v1998 = vunpack.c.0.s8 %v1997
    %v1999 = vlaneseq
    %v2000 = vshrl.u32 %v1999, 7
    %v2001 = vsub.s32 %v1998, %v2000
    %v2002 = vrot.slane %v329, %v2001
    %v2004 = vunpack.c.l.s4 842150450
    %v2005 = vunpack.c.0.s8 %v2004
    %v2006 = vlaneseq
    %v2007 = vshrl.u32 %v2006, 7
    %v2008 = vsub.s32 %v2005, %v2007
    %v2009 = vrot.slane %v329, %v2008
    %v2011 = vunpack.c.l.s4 1414812756
    %v2012 = vunpack.c.0.s8 %v2011
    %v2013 = vlaneseq
    %v2014 = vshrl.u32 %v2013, 7
    %v2015 = vsub.s32 %v2012, %v2014
    %v2016 = vrot.slane %v329, %v2015
    %v2018 = vunpack.c.l.s4 1987475062
    %v2019 = vunpack.c.0.s8 %v2018
    %v2020 = vlaneseq
    %v2021 = vshrl.u32 %v2020, 7
    %v2022 = vsub.s32 %v2019, %v2021
    %v2023 = vrot.slane %v329, %v2022
    %v2025 = vunpack.c.l.s4 269488144
    %v2026 = vunpack.c.0.s8 %v2025
    %v2027 = vlaneseq
    %v2028 = vshrl.u32 %v2027, 7
    %v2029 = vsub.s32 %v2026, %v2028
    %v2030 = vrot.slane %v330, %v2029
    %v2032 = vunpack.c.l.s4 842150450
    %v2033 = vunpack.c.0.s8 %v2032
    %v2034 = vlaneseq
    %v2035 = vshrl.u32 %v2034, 7
    %v2036 = vsub.s32 %v2033, %v2035
    %v2037 = vrot.slane %v330, %v2036
    %v2039 = vunpack.c.l.s4 1414812756
    %v2040 = vunpack.c.0.s8 %v2039
    %v2041 = vlaneseq
    %v2042 = vshrl.u32 %v2041, 7
    %v2043 = vsub.s32 %v2040, %v2042
    %v2044 = vrot.slane %v330, %v2043
    %v2046 = vunpack.c.l.s4 1987475062
    %v2047 = vunpack.c.0.s8 %v2046
    %v2048 = vlaneseq
    %v2049 = vshrl.u32 %v2048, 7
    %v2050 = vsub.s32 %v2047, %v2049
    %v2051 = vrot.slane %v330, %v2050
    %v2053 = vunpack.c.l.s4 269488144
    %v2054 = vunpack.c.0.s8 %v2053
    %v2055 = vlaneseq
    %v2056 = vshrl.u32 %v2055, 7
    %v2057 = vsub.s32 %v2054, %v2056
    %v2058 = vrot.slane %v331, %v2057
    %v2060 = vunpack.c.l.s4 842150450
    %v2061 = vunpack.c.0.s8 %v2060
    %v2062 = vlaneseq
    %v2063 = vshrl.u32 %v2062, 7
    %v2064 = vsub.s32 %v2061, %v2063
    %v2065 = vrot.slane %v331, %v2064
    %v2067 = vunpack.c.l.s4 1414812756
    %v2068 = vunpack.c.0.s8 %v2067
    %v2069 = vlaneseq
    %v2070 = vshrl.u32 %v2069, 7
    %v2071 = vsub.s32 %v2068, %v2070
    %v2072 = vrot.slane %v331, %v2071
    %v2074 = vunpack.c.l.s4 1987475062
    %v2075 = vunpack.c.0.s8 %v2074
    %v2076 = vlaneseq
    %v2077 = vshrl.u32 %v2076, 7
    %v2078 = vsub.s32 %v2075, %v2077
    %v2079 = vrot.slane %v331, %v2078
    %v2081 = vunpack.c.l.s4 269488144
    %v2082 = vunpack.c.0.s8 %v2081
    %v2083 = vlaneseq
    %v2084 = vshrl.u32 %v2083, 7
    %v2085 = vsub.s32 %v2082, %v2084
    %v2086 = vrot.slane %v332, %v2085
    %v2088 = vunpack.c.l.s4 842150450
    %v2089 = vunpack.c.0.s8 %v2088
    %v2090 = vlaneseq
    %v2091 = vshrl.u32 %v2090, 7
    %v2092 = vsub.s32 %v2089, %v2091
    %v2093 = vrot.slane %v332, %v2092
    %v2095 = vunpack.c.l.s4 1414812756
    %v2096 = vunpack.c.0.s8 %v2095
    %v2097 = vlaneseq
    %v2098 = vshrl.u32 %v2097, 7
    %v2099 = vsub.s32 %v2096, %v2098
    %v2100 = vrot.slane %v332, %v2099
    %v2102 = vunpack.c.l.s4 1987475062
    %v2103 = vunpack.c.0.s8 %v2102
    %v2104 = vlaneseq
    %v2105 = vshrl.u32 %v2104, 7
    %v2106 = vsub.s32 %v2103, %v2105
    %v2107 = vrot.slane %v332, %v2106
    %v2109 = vunpack.c.l.s4 269488144
    %v2110 = vunpack.c.0.s8 %v2109
    %v2111 = vlaneseq
    %v2112 = vshrl.u32 %v2111, 7
    %v2113 = vsub.s32 %v2110, %v2112
    %v2114 = vrot.slane %v333, %v2113
    %v2116 = vunpack.c.l.s4 842150450
    %v2117 = vunpack.c.0.s8 %v2116
    %v2118 = vlaneseq
    %v2119 = vshrl.u32 %v2118, 7
    %v2120 = vsub.s32 %v2117, %v2119
    %v2121 = vrot.slane %v333, %v2120
    %v2123 = vunpack.c.l.s4 1414812756
    %v2124 = vunpack.c.0.s8 %v2123
    %v2125 = vlaneseq
    %v2126 = vshrl.u32 %v2125, 7
    %v2127 = vsub.s32 %v2124, %v2126
    %v2128 = vrot.slane %v333, %v2127
    %v2130 = vunpack.c.l.s4 1987475062
    %v2131 = vunpack.c.0.s8 %v2130
    %v2132 = vlaneseq
    %v2133 = vshrl.u32 %v2132, 7
    %v2134 = vsub.s32 %v2131, %v2133
    %v2135 = vrot.slane %v333, %v2134
    %v2137 = vunpack.c.l.s4 269488144
    %v2138 = vunpack.c.0.s8 %v2137
    %v2139 = vlaneseq
    %v2140 = vshrl.u32 %v2139, 7
    %v2141 = vsub.s32 %v2138, %v2140
    %v2142 = vrot.slane %v334, %v2141
    %v2144 = vunpack.c.l.s4 842150450
    %v2145 = vunpack.c.0.s8 %v2144
    %v2146 = vlaneseq
    %v2147 = vshrl.u32 %v2146, 7
    %v2148 = vsub.s32 %v2145, %v2147
    %v2149 = vrot.slane %v334, %v2148
    %v2151 = vunpack.c.l.s4 1414812756
    %v2152 = vunpack.c.0.s8 %v2151
    %v2153 = vlaneseq
    %v2154 = vshrl.u32 %v2153, 7
    %v2155 = vsub.s32 %v2152, %v2154
    %v2156 = vrot.slane %v334, %v2155
    %v2158 = vunpack.c.l.s4 1987475062
    %v2159 = vunpack.c.0.s8 %v2158
    %v2160 = vlaneseq
    %v2161 = vshrl.u32 %v2160, 7
    %v2162 = vsub.s32 %v2159, %v2161
    %v2163 = vrot.slane %v334, %v2162
    %v2165 = vunpack.c.l.s4 269488144
    %v2166 = vunpack.c.0.s8 %v2165
    %v2167 = vlaneseq
    %v2168 = vshrl.u32 %v2167, 7
    %v2169 = vsub.s32 %v2166, %v2168
    %v2170 = vrot.slane %v335, %v2169
    %v2172 = vunpack.c.l.s4 842150450
    %v2173 = vunpack.c.0.s8 %v2172
    %v2174 = vlaneseq
    %v2175 = vshrl.u32 %v2174, 7
    %v2176 = vsub.s32 %v2173, %v2175
    %v2177 = vrot.slane %v335, %v2176
    %v2179 = vunpack.c.l.s4 1414812756
    %v2180 = vunpack.c.0.s8 %v2179
    %v2181 = vlaneseq
    %v2182 = vshrl.u32 %v2181, 7
    %v2183 = vsub.s32 %v2180, %v2182
    %v2184 = vrot.slane %v335, %v2183
    %v2186 = vunpack.c.l.s4 1987475062
    %v2187 = vunpack.c.0.s8 %v2186
    %v2188 = vlaneseq
    %v2189 = vshrl.u32 %v2188, 7
    %v2190 = vsub.s32 %v2187, %v2189
    %v2191 = vrot.slane %v335, %v2190
    %v2192 = vcombine.low %v406, %v413
    %v2193 = vcombine.low %v420, %v427
    %v2195 = vunpack.c.l.s4 1983009808
    %v2196 = vunpack.c.0.s8 %v2195
    %v2197 = vlaneseq
    %v2198 = vshrl.u32 %v2197, 7
    %v2199 = vsub.s32 %v2196, %v2198
    %v2200 = vrot.slane %v2192, %v2199
    %v2202 = vunpack.c.l.s4 1983009808
    %v2203 = vunpack.c.0.s8 %v2202
    %v2204 = vlaneseq
    %v2205 = vshrl.u32 %v2204, 7
    %v2206 = vsub.s32 %v2203, %v2205
    %v2207 = vrot.slane %v2193, %v2206
    %v2208 = vcombine.low %v2200, %v2207
    %v2209 = vcombine.low %v434, %v441
    %v2210 = vcombine.low %v448, %v455
    %v2212 = vunpack.c.l.s4 1983009808
    %v2213 = vunpack.c.0.s8 %v2212
    %v2214 = vlaneseq
    %v2215 = vshrl.u32 %v2214, 7
    %v2216 = vsub.s32 %v2213, %v2215
    %v2217 = vrot.slane %v2209, %v2216
    %v2219 = vunpack.c.l.s4 1983009808
    %v2220 = vunpack.c.0.s8 %v2219
    %v2221 = vlaneseq
    %v2222 = vshrl.u32 %v2221, 7
    %v2223 = vsub.s32 %v2220, %v2222
    %v2224 = vrot.slane %v2210, %v2223
    %v2225 = vcombine.low %v2217, %v2224
    %v2226 = vcombine.low %v462, %v469
    %v2227 = vcombine.low %v476, %v483
    %v2229 = vunpack.c.l.s4 1983009808
    %v2230 = vunpack.c.0.s8 %v2229
    %v2231 = vlaneseq
    %v2232 = vshrl.u32 %v2231, 7
    %v2233 = vsub.s32 %v2230, %v2232
    %v2234 = vrot.slane %v2226, %v2233
    %v2236 = vunpack.c.l.s4 1983009808
    %v2237 = vunpack.c.0.s8 %v2236
    %v2238 = vlaneseq
    %v2239 = vshrl.u32 %v2238, 7
    %v2240 = vsub.s32 %v2237, %v2239
    %v2241 = vrot.slane %v2227, %v2240
    %v2242 = vcombine.low %v2234, %v2241
    %v2243 = vcombine.low %v490, %v497
    %v2244 = vcombine.low %v504, %v511
    %v2246 = vunpack.c.l.s4 1983009808
    %v2247 = vunpack.c.0.s8 %v2246
    %v2248 = vlaneseq
    %v2249 = vshrl.u32 %v2248, 7
    %v2250 = vsub.s32 %v2247, %v2249
    %v2251 = vrot.slane %v2243, %v2250
    %v2253 = vunpack.c.l.s4 1983009808
    %v2254 = vunpack.c.0.s8 %v2253
    %v2255 = vlaneseq
    %v2256 = vshrl.u32 %v2255, 7
    %v2257 = vsub.s32 %v2254, %v2256
    %v2258 = vrot.slane %v2244, %v2257
    %v2259 = vcombine.low %v2251, %v2258
    %v2260 = vcombine.low %v518, %v525
    %v2261 = vcombine.low %v532, %v539
    %v2263 = vunpack.c.l.s4 1983009808
    %v2264 = vunpack.c.0.s8 %v2263
    %v2265 = vlaneseq
    %v2266 = vshrl.u32 %v2265, 7
    %v2267 = vsub.s32 %v2264, %v2266
    %v2268 = vrot.slane %v2260, %v2267
    %v2270 = vunpack.c.l.s4 1983009808
    %v2271 = vunpack.c.0.s8 %v2270
    %v2272 = vlaneseq
    %v2273 = vshrl.u32 %v2272, 7
    %v2274 = vsub.s32 %v2271, %v2273
    %v2275 = vrot.slane %v2261, %v2274
    %v2276 = vcombine.low %v2268, %v2275
    %v2277 = vcombine.low %v546, %v553
    %v2278 = vcombine.low %v560, %v567
    %v2280 = vunpack.c.l.s4 1983009808
    %v2281 = vunpack.c.0.s8 %v2280
    %v2282 = vlaneseq
    %v2283 = vshrl.u32 %v2282, 7
    %v2284 = vsub.s32 %v2281, %v2283
    %v2285 = vrot.slane %v2277, %v2284
    %v2287 = vunpack.c.l.s4 1983009808
    %v2288 = vunpack.c.0.s8 %v2287
    %v2289 = vlaneseq
    %v2290 = vshrl.u32 %v2289, 7
    %v2291 = vsub.s32 %v2288, %v2290
    %v2292 = vrot.slane %v2278, %v2291
    %v2293 = vcombine.low %v2285, %v2292
    %v2294 = vcombine.low %v574, %v581
    %v2295 = vcombine.low %v588, %v595
    %v2297 = vunpack.c.l.s4 1983009808
    %v2298 = vunpack.c.0.s8 %v2297
    %v2299 = vlaneseq
    %v2300 = vshrl.u32 %v2299, 7
    %v2301 = vsub.s32 %v2298, %v2300
    %v2302 = vrot.slane %v2294, %v2301
    %v2304 = vunpack.c.l.s4 1983009808
    %v2305 = vunpack.c.0.s8 %v2304
    %v2306 = vlaneseq
    %v2307 = vshrl.u32 %v2306, 7
    %v2308 = vsub.s32 %v2305, %v2307
    %v2309 = vrot.slane %v2295, %v2308
    %v2310 = vcombine.low %v2302, %v2309
    %v2311 = vcombine.low %v602, %v609
    %v2312 = vcombine.low %v616, %v623
    %v2314 = vunpack.c.l.s4 1983009808
    %v2315 = vunpack.c.0.s8 %v2314
    %v2316 = vlaneseq
    %v2317 = vshrl.u32 %v2316, 7
    %v2318 = vsub.s32 %v2315, %v2317
    %v2319 = vrot.slane %v2311, %v2318
    %v2321 = vunpack.c.l.s4 1983009808
    %v2322 = vunpack.c.0.s8 %v2321
    %v2323 = vlaneseq
    %v2324 = vshrl.u32 %v2323, 7
    %v2325 = vsub.s32 %v2322, %v2324
    %v2326 = vrot.slane %v2312, %v2325
    %v2327 = vcombine.low %v2319, %v2326
    %v2328 = vcombine.low %v630, %v637
    %v2329 = vcombine.low %v644, %v651
    %v2331 = vunpack.c.l.s4 1983009808
    %v2332 = vunpack.c.0.s8 %v2331
    %v2333 = vlaneseq
    %v2334 = vshrl.u32 %v2333, 7
    %v2335 = vsub.s32 %v2332, %v2334
    %v2336 = vrot.slane %v2328, %v2335
    %v2338 = vunpack.c.l.s4 1983009808
    %v2339 = vunpack.c.0.s8 %v2338
    %v2340 = vlaneseq
    %v2341 = vshrl.u32 %v2340, 7
    %v2342 = vsub.s32 %v2339, %v2341
    %v2343 = vrot.slane %v2329, %v2342
    %v2344 = vcombine.low %v2336, %v2343
    %v2345 = vcombine.low %v658, %v665
    %v2346 = vcombine.low %v672, %v679
    %v2348 = vunpack.c.l.s4 1983009808
    %v2349 = vunpack.c.0.s8 %v2348
    %v2350 = vlaneseq
    %v2351 = vshrl.u32 %v2350, 7
    %v2352 = vsub.s32 %v2349, %v2351
    %v2353 = vrot.slane %v2345, %v2352
    %v2355 = vunpack.c.l.s4 1983009808
    %v2356 = vunpack.c.0.s8 %v2355
    %v2357 = vlaneseq
    %v2358 = vshrl.u32 %v2357, 7
    %v2359 = vsub.s32 %v2356, %v2358
    %v2360 = vrot.slane %v2346, %v2359
    %v2361 = vcombine.low %v2353, %v2360
    %v2362 = vcombine.low %v686, %v693
    %v2363 = vcombine.low %v700, %v707
    %v2365 = vunpack.c.l.s4 1983009808
    %v2366 = vunpack.c.0.s8 %v2365
    %v2367 = vlaneseq
    %v2368 = vshrl.u32 %v2367, 7
    %v2369 = vsub.s32 %v2366, %v2368
    %v2370 = vrot.slane %v2362, %v2369
    %v2372 = vunpack.c.l.s4 1983009808
    %v2373 = vunpack.c.0.s8 %v2372
    %v2374 = vlaneseq
    %v2375 = vshrl.u32 %v2374, 7
    %v2376 = vsub.s32 %v2373, %v2375
    %v2377 = vrot.slane %v2363, %v2376
    %v2378 = vcombine.low %v2370, %v2377
    %v2379 = vcombine.low %v714, %v721
    %v2380 = vcombine.low %v728, %v735
    %v2382 = vunpack.c.l.s4 1983009808
    %v2383 = vunpack.c.0.s8 %v2382
    %v2384 = vlaneseq
    %v2385 = vshrl.u32 %v2384, 7
    %v2386 = vsub.s32 %v2383, %v2385
    %v2387 = vrot.slane %v2379, %v2386
    %v2389 = vunpack.c.l.s4 1983009808
    %v2390 = vunpack.c.0.s8 %v2389
    %v2391 = vlaneseq
    %v2392 = vshrl.u32 %v2391, 7
    %v2393 = vsub.s32 %v2390, %v2392
    %v2394 = vrot.slane %v2380, %v2393
    %v2395 = vcombine.low %v2387, %v2394
    %v2396 = vcombine.low %v742, %v749
    %v2397 = vcombine.low %v756, %v763
    %v2399 = vunpack.c.l.s4 1983009808
    %v2400 = vunpack.c.0.s8 %v2399
    %v2401 = vlaneseq
    %v2402 = vshrl.u32 %v2401, 7
    %v2403 = vsub.s32 %v2400, %v2402
    %v2404 = vrot.slane %v2396, %v2403
    %v2406 = vunpack.c.l.s4 1983009808
    %v2407 = vunpack.c.0.s8 %v2406
    %v2408 = vlaneseq
    %v2409 = vshrl.u32 %v2408, 7
    %v2410 = vsub.s32 %v2407, %v2409
    %v2411 = vrot.slane %v2397, %v2410
    %v2412 = vcombine.low %v2404, %v2411
    %v2413 = vcombine.low %v770, %v777
    %v2414 = vcombine.low %v784, %v791
    %v2416 = vunpack.c.l.s4 1983009808
    %v2417 = vunpack.c.0.s8 %v2416
    %v2418 = vlaneseq
    %v2419 = vshrl.u32 %v2418, 7
    %v2420 = vsub.s32 %v2417, %v2419
    %v2421 = vrot.slane %v2413, %v2420
    %v2423 = vunpack.c.l.s4 1983009808
    %v2424 = vunpack.c.0.s8 %v2423
    %v2425 = vlaneseq
    %v2426 = vshrl.u32 %v2425, 7
    %v2427 = vsub.s32 %v2424, %v2426
    %v2428 = vrot.slane %v2414, %v2427
    %v2429 = vcombine.low %v2421, %v2428
    %v2430 = vcombine.low %v798, %v805
    %v2431 = vcombine.low %v812, %v819
    %v2433 = vunpack.c.l.s4 1983009808
    %v2434 = vunpack.c.0.s8 %v2433
    %v2435 = vlaneseq
    %v2436 = vshrl.u32 %v2435, 7
    %v2437 = vsub.s32 %v2434, %v2436
    %v2438 = vrot.slane %v2430, %v2437
    %v2440 = vunpack.c.l.s4 1983009808
    %v2441 = vunpack.c.0.s8 %v2440
    %v2442 = vlaneseq
    %v2443 = vshrl.u32 %v2442, 7
    %v2444 = vsub.s32 %v2441, %v2443
    %v2445 = vrot.slane %v2431, %v2444
    %v2446 = vcombine.low %v2438, %v2445
    %v2447 = vcombine.low %v826, %v833
    %v2448 = vcombine.low %v840, %v847
    %v2450 = vunpack.c.l.s4 1983009808
    %v2451 = vunpack.c.0.s8 %v2450
    %v2452 = vlaneseq
    %v2453 = vshrl.u32 %v2452, 7
    %v2454 = vsub.s32 %v2451, %v2453
    %v2455 = vrot.slane %v2447, %v2454
    %v2457 = vunpack.c.l.s4 1983009808
    %v2458 = vunpack.c.0.s8 %v2457
    %v2459 = vlaneseq
    %v2460 = vshrl.u32 %v2459, 7
    %v2461 = vsub.s32 %v2458, %v2460
    %v2462 = vrot.slane %v2448, %v2461
    %v2463 = vcombine.low %v2455, %v2462
    %v2464 = vcombine.low %v854, %v861
    %v2465 = vcombine.low %v868, %v875
    %v2467 = vunpack.c.l.s4 1983009808
    %v2468 = vunpack.c.0.s8 %v2467
    %v2469 = vlaneseq
    %v2470 = vshrl.u32 %v2469, 7
    %v2471 = vsub.s32 %v2468, %v2470
    %v2472 = vrot.slane %v2464, %v2471
    %v2474 = vunpack.c.l.s4 1983009808
    %v2475 = vunpack.c.0.s8 %v2474
    %v2476 = vlaneseq
    %v2477 = vshrl.u32 %v2476, 7
    %v2478 = vsub.s32 %v2475, %v2477
    %v2479 = vrot.slane %v2465, %v2478
    %v2480 = vcombine.low %v2472, %v2479
    %v2481 = vcombine.low %v882, %v889
    %v2482 = vcombine.low %v896, %v903
    %v2484 = vunpack.c.l.s4 1983009808
    %v2485 = vunpack.c.0.s8 %v2484
    %v2486 = vlaneseq
    %v2487 = vshrl.u32 %v2486, 7
    %v2488 = vsub.s32 %v2485, %v2487
    %v2489 = vrot.slane %v2481, %v2488
    %v2491 = vunpack.c.l.s4 1983009808
    %v2492 = vunpack.c.0.s8 %v2491
    %v2493 = vlaneseq
    %v2494 = vshrl.u32 %v2493, 7
    %v2495 = vsub.s32 %v2492, %v2494
    %v2496 = vrot.slane %v2482, %v2495
    %v2497 = vcombine.low %v2489, %v2496
    %v2498 = vcombine.low %v910, %v917
    %v2499 = vcombine.low %v924, %v931
    %v2501 = vunpack.c.l.s4 1983009808
    %v2502 = vunpack.c.0.s8 %v2501
    %v2503 = vlaneseq
    %v2504 = vshrl.u32 %v2503, 7
    %v2505 = vsub.s32 %v2502, %v2504
    %v2506 = vrot.slane %v2498, %v2505
    %v2508 = vunpack.c.l.s4 1983009808
    %v2509 = vunpack.c.0.s8 %v2508
    %v2510 = vlaneseq
    %v2511 = vshrl.u32 %v2510, 7
    %v2512 = vsub.s32 %v2509, %v2511
    %v2513 = vrot.slane %v2499, %v2512
    %v2514 = vcombine.low %v2506, %v2513
    %v2515 = vcombine.low %v938, %v945
    %v2516 = vcombine.low %v952, %v959
    %v2518 = vunpack.c.l.s4 1983009808
    %v2519 = vunpack.c.0.s8 %v2518
    %v2520 = vlaneseq
    %v2521 = vshrl.u32 %v2520, 7
    %v2522 = vsub.s32 %v2519, %v2521
    %v2523 = vrot.slane %v2515, %v2522
    %v2525 = vunpack.c.l.s4 1983009808
    %v2526 = vunpack.c.0.s8 %v2525
    %v2527 = vlaneseq
    %v2528 = vshrl.u32 %v2527, 7
    %v2529 = vsub.s32 %v2526, %v2528
    %v2530 = vrot.slane %v2516, %v2529
    %v2531 = vcombine.low %v2523, %v2530
    %v2532 = vcombine.low %v966, %v973
    %v2533 = vcombine.low %v980, %v987
    %v2535 = vunpack.c.l.s4 1983009808
    %v2536 = vunpack.c.0.s8 %v2535
    %v2537 = vlaneseq
    %v2538 = vshrl.u32 %v2537, 7
    %v2539 = vsub.s32 %v2536, %v2538
    %v2540 = vrot.slane %v2532, %v2539
    %v2542 = vunpack.c.l.s4 1983009808
    %v2543 = vunpack.c.0.s8 %v2542
    %v2544 = vlaneseq
    %v2545 = vshrl.u32 %v2544, 7
    %v2546 = vsub.s32 %v2543, %v2545
    %v2547 = vrot.slane %v2533, %v2546
    %v2548 = vcombine.low %v2540, %v2547
    %v2549 = vcombine.low %v994, %v1001
    %v2550 = vcombine.low %v1008, %v1015
    %v2552 = vunpack.c.l.s4 1983009808
    %v2553 = vunpack.c.0.s8 %v2552
    %v2554 = vlaneseq
    %v2555 = vshrl.u32 %v2554, 7
    %v2556 = vsub.s32 %v2553, %v2555
    %v2557 = vrot.slane %v2549, %v2556
    %v2559 = vunpack.c.l.s4 1983009808
    %v2560 = vunpack.c.0.s8 %v2559
    %v2561 = vlaneseq
    %v2562 = vshrl.u32 %v2561, 7
    %v2563 = vsub.s32 %v2560, %v2562
    %v2564 = vrot.slane %v2550, %v2563
    %v2565 = vcombine.low %v2557, %v2564
    %v2566 = vcombine.low %v1022, %v1029
    %v2567 = vcombine.low %v1036, %v1043
    %v2569 = vunpack.c.l.s4 1983009808
    %v2570 = vunpack.c.0.s8 %v2569
    %v2571 = vlaneseq
    %v2572 = vshrl.u32 %v2571, 7
    %v2573 = vsub.s32 %v2570, %v2572
    %v2574 = vrot.slane %v2566, %v2573
    %v2576 = vunpack.c.l.s4 1983009808
    %v2577 = vunpack.c.0.s8 %v2576
    %v2578 = vlaneseq
    %v2579 = vshrl.u32 %v2578, 7
    %v2580 = vsub.s32 %v2577, %v2579
    %v2581 = vrot.slane %v2567, %v2580
    %v2582 = vcombine.low %v2574, %v2581
    %v2583 = vcombine.low %v1050, %v1057
    %v2584 = vcombine.low %v1064, %v1071
    %v2586 = vunpack.c.l.s4 1983009808
    %v2587 = vunpack.c.0.s8 %v2586
    %v2588 = vlaneseq
    %v2589 = vshrl.u32 %v2588, 7
    %v2590 = vsub.s32 %v2587, %v2589
    %v2591 = vrot.slane %v2583, %v2590
    %v2593 = vunpack.c.l.s4 1983009808
    %v2594 = vunpack.c.0.s8 %v2593
    %v2595 = vlaneseq
    %v2596 = vshrl.u32 %v2595, 7
    %v2597 = vsub.s32 %v2594, %v2596
    %v2598 = vrot.slane %v2584, %v2597
    %v2599 = vcombine.low %v2591, %v2598
    %v2600 = vcombine.low %v1078, %v1085
    %v2601 = vcombine.low %v1092, %v1099
    %v2603 = vunpack.c.l.s4 1983009808
    %v2604 = vunpack.c.0.s8 %v2603
    %v2605 = vlaneseq
    %v2606 = vshrl.u32 %v2605, 7
    %v2607 = vsub.s32 %v2604, %v2606
    %v2608 = vrot.slane %v2600, %v2607
    %v2610 = vunpack.c.l.s4 1983009808
    %v2611 = vunpack.c.0.s8 %v2610
    %v2612 = vlaneseq
    %v2613 = vshrl.u32 %v2612, 7
    %v2614 = vsub.s32 %v2611, %v2613
    %v2615 = vrot.slane %v2601, %v2614
    %v2616 = vcombine.low %v2608, %v2615
    %v2617 = vcombine.low %v1106, %v1113
    %v2618 = vcombine.low %v1120, %v1127
    %v2620 = vunpack.c.l.s4 1983009808
    %v2621 = vunpack.c.0.s8 %v2620
    %v2622 = vlaneseq
    %v2623 = vshrl.u32 %v2622, 7
    %v2624 = vsub.s32 %v2621, %v2623
    %v2625 = vrot.slane %v2617, %v2624
    %v2627 = vunpack.c.l.s4 1983009808
    %v2628 = vunpack.c.0.s8 %v2627
    %v2629 = vlaneseq
    %v2630 = vshrl.u32 %v2629, 7
    %v2631 = vsub.s32 %v2628, %v2630
    %v2632 = vrot.slane %v2618, %v2631
    %v2633 = vcombine.low %v2625, %v2632
    %v2634 = vcombine.low %v1134, %v1141
    %v2635 = vcombine.low %v1148, %v1155
    %v2637 = vunpack.c.l.s4 1983009808
    %v2638 = vunpack.c.0.s8 %v2637
    %v2639 = vlaneseq
    %v2640 = vshrl.u32 %v2639, 7
    %v2641 = vsub.s32 %v2638, %v2640
    %v2642 = vrot.slane %v2634, %v2641
    %v2644 = vunpack.c.l.s4 1983009808
    %v2645 = vunpack.c.0.s8 %v2644
    %v2646 = vlaneseq
    %v2647 = vshrl.u32 %v2646, 7
    %v2648 = vsub.s32 %v2645, %v2647
    %v2649 = vrot.slane %v2635, %v2648
    %v2650 = vcombine.low %v2642, %v2649
    %v2651 = vcombine.low %v1162, %v1169
    %v2652 = vcombine.low %v1176, %v1183
    %v2654 = vunpack.c.l.s4 1983009808
    %v2655 = vunpack.c.0.s8 %v2654
    %v2656 = vlaneseq
    %v2657 = vshrl.u32 %v2656, 7
    %v2658 = vsub.s32 %v2655, %v2657
    %v2659 = vrot.slane %v2651, %v2658
    %v2661 = vunpack.c.l.s4 1983009808
    %v2662 = vunpack.c.0.s8 %v2661
    %v2663 = vlaneseq
    %v2664 = vshrl.u32 %v2663, 7
    %v2665 = vsub.s32 %v2662, %v2664
    %v2666 = vrot.slane %v2652, %v2665
    %v2667 = vcombine.low %v2659, %v2666
    %v2668 = vcombine.low %v1190, %v1197
    %v2669 = vcombine.low %v1204, %v1211
    %v2671 = vunpack.c.l.s4 1983009808
    %v2672 = vunpack.c.0.s8 %v2671
    %v2673 = vlaneseq
    %v2674 = vshrl.u32 %v2673, 7
    %v2675 = vsub.s32 %v2672, %v2674
    %v2676 = vrot.slane %v2668, %v2675
    %v2678 = vunpack.c.l.s4 1983009808
    %v2679 = vunpack.c.0.s8 %v2678
    %v2680 = vlaneseq
    %v2681 = vshrl.u32 %v2680, 7
    %v2682 = vsub.s32 %v2679, %v2681
    %v2683 = vrot.slane %v2669, %v2682
    %v2684 = vcombine.low %v2676, %v2683
    %v2685 = vcombine.low %v1218, %v1225
    %v2686 = vcombine.low %v1232, %v1239
    %v2688 = vunpack.c.l.s4 1983009808
    %v2689 = vunpack.c.0.s8 %v2688
    %v2690 = vlaneseq
    %v2691 = vshrl.u32 %v2690, 7
    %v2692 = vsub.s32 %v2689, %v2691
    %v2693 = vrot.slane %v2685, %v2692
    %v2695 = vunpack.c.l.s4 1983009808
    %v2696 = vunpack.c.0.s8 %v2695
    %v2697 = vlaneseq
    %v2698 = vshrl.u32 %v2697, 7
    %v2699 = vsub.s32 %v2696, %v2698
    %v2700 = vrot.slane %v2686, %v2699
    %v2701 = vcombine.low %v2693, %v2700
    %v2702 = vcombine.low %v1246, %v1253
    %v2703 = vcombine.low %v1260, %v1267
    %v2705 = vunpack.c.l.s4 1983009808
    %v2706 = vunpack.c.0.s8 %v2705
    %v2707 = vlaneseq
    %v2708 = vshrl.u32 %v2707, 7
    %v2709 = vsub.s32 %v2706, %v2708
    %v2710 = vrot.slane %v2702, %v2709
    %v2712 = vunpack.c.l.s4 1983009808
    %v2713 = vunpack.c.0.s8 %v2712
    %v2714 = vlaneseq
    %v2715 = vshrl.u32 %v2714, 7
    %v2716 = vsub.s32 %v2713, %v2715
    %v2717 = vrot.slane %v2703, %v2716
    %v2718 = vcombine.low %v2710, %v2717
    %v2719 = vcombine.low %v1274, %v1281
    %v2720 = vcombine.low %v1288, %v1295
    %v2722 = vunpack.c.l.s4 1983009808
    %v2723 = vunpack.c.0.s8 %v2722
    %v2724 = vlaneseq
    %v2725 = vshrl.u32 %v2724, 7
    %v2726 = vsub.s32 %v2723, %v2725
    %v2727 = vrot.slane %v2719, %v2726
    %v2729 = vunpack.c.l.s4 1983009808
    %v2730 = vunpack.c.0.s8 %v2729
    %v2731 = vlaneseq
    %v2732 = vshrl.u32 %v2731, 7
    %v2733 = vsub.s32 %v2730, %v2732
    %v2734 = vrot.slane %v2720, %v2733
    %v2735 = vcombine.low %v2727, %v2734
    %v2736 = vcombine.low %v1302, %v1309
    %v2737 = vcombine.low %v1316, %v1323
    %v2739 = vunpack.c.l.s4 1983009808
    %v2740 = vunpack.c.0.s8 %v2739
    %v2741 = vlaneseq
    %v2742 = vshrl.u32 %v2741, 7
    %v2743 = vsub.s32 %v2740, %v2742
    %v2744 = vrot.slane %v2736, %v2743
    %v2746 = vunpack.c.l.s4 1983009808
    %v2747 = vunpack.c.0.s8 %v2746
    %v2748 = vlaneseq
    %v2749 = vshrl.u32 %v2748, 7
    %v2750 = vsub.s32 %v2747, %v2749
    %v2751 = vrot.slane %v2737, %v2750
    %v2752 = vcombine.low %v2744, %v2751
    %v2753 = vcombine.low %v1330, %v1337
    %v2754 = vcombine.low %v1344, %v1351
    %v2756 = vunpack.c.l.s4 1983009808
    %v2757 = vunpack.c.0.s8 %v2756
    %v2758 = vlaneseq
    %v2759 = vshrl.u32 %v2758, 7
    %v2760 = vsub.s32 %v2757, %v2759
    %v2761 = vrot.slane %v2753, %v2760
    %v2763 = vunpack.c.l.s4 1983009808
    %v2764 = vunpack.c.0.s8 %v2763
    %v2765 = vlaneseq
    %v2766 = vshrl.u32 %v2765, 7
    %v2767 = vsub.s32 %v2764, %v2766
    %v2768 = vrot.slane %v2754, %v2767
    %v2769 = vcombine.low %v2761, %v2768
    %v2770 = vcombine.low %v1358, %v1365
    %v2771 = vcombine.low %v1372, %v1379
    %v2773 = vunpack.c.l.s4 1983009808
    %v2774 = vunpack.c.0.s8 %v2773
    %v2775 = vlaneseq
    %v2776 = vshrl.u32 %v2775, 7
    %v2777 = vsub.s32 %v2774, %v2776
    %v2778 = vrot.slane %v2770, %v2777
    %v2780 = vunpack.c.l.s4 1983009808
    %v2781 = vunpack.c.0.s8 %v2780
    %v2782 = vlaneseq
    %v2783 = vshrl.u32 %v2782, 7
    %v2784 = vsub.s32 %v2781, %v2783
    %v2785 = vrot.slane %v2771, %v2784
    %v2786 = vcombine.low %v2778, %v2785
    %v2787 = vcombine.low %v1386, %v1393
    %v2788 = vcombine.low %v1400, %v1407
    %v2790 = vunpack.c.l.s4 1983009808
    %v2791 = vunpack.c.0.s8 %v2790
    %v2792 = vlaneseq
    %v2793 = vshrl.u32 %v2792, 7
    %v2794 = vsub.s32 %v2791, %v2793
    %v2795 = vrot.slane %v2787, %v2794
    %v2797 = vunpack.c.l.s4 1983009808
    %v2798 = vunpack.c.0.s8 %v2797
    %v2799 = vlaneseq
    %v2800 = vshrl.u32 %v2799, 7
    %v2801 = vsub.s32 %v2798, %v2800
    %v2802 = vrot.slane %v2788, %v2801
    %v2803 = vcombine.low %v2795, %v2802
    %v2804 = vcombine.low %v1414, %v1421
    %v2805 = vcombine.low %v1428, %v1435
    %v2807 = vunpack.c.l.s4 1983009808
    %v2808 = vunpack.c.0.s8 %v2807
    %v2809 = vlaneseq
    %v2810 = vshrl.u32 %v2809, 7
    %v2811 = vsub.s32 %v2808, %v2810
    %v2812 = vrot.slane %v2804, %v2811
    %v2814 = vunpack.c.l.s4 1983009808
    %v2815 = vunpack.c.0.s8 %v2814
    %v2816 = vlaneseq
    %v2817 = vshrl.u32 %v2816, 7
    %v2818 = vsub.s32 %v2815, %v2817
    %v2819 = vrot.slane %v2805, %v2818
    %v2820 = vcombine.low %v2812, %v2819
    %v2821 = vcombine.low %v1442, %v1449
    %v2822 = vcombine.low %v1456, %v1463
    %v2824 = vunpack.c.l.s4 1983009808
    %v2825 = vunpack.c.0.s8 %v2824
    %v2826 = vlaneseq
    %v2827 = vshrl.u32 %v2826, 7
    %v2828 = vsub.s32 %v2825, %v2827
    %v2829 = vrot.slane %v2821, %v2828
    %v2831 = vunpack.c.l.s4 1983009808
    %v2832 = vunpack.c.0.s8 %v2831
    %v2833 = vlaneseq
    %v2834 = vshrl.u32 %v2833, 7
    %v2835 = vsub.s32 %v2832, %v2834
    %v2836 = vrot.slane %v2822, %v2835
    %v2837 = vcombine.low %v2829, %v2836
    %v2838 = vcombine.low %v1470, %v1477
    %v2839 = vcombine.low %v1484, %v1491
    %v2841 = vunpack.c.l.s4 1983009808
    %v2842 = vunpack.c.0.s8 %v2841
    %v2843 = vlaneseq
    %v2844 = vshrl.u32 %v2843, 7
    %v2845 = vsub.s32 %v2842, %v2844
    %v2846 = vrot.slane %v2838, %v2845
    %v2848 = vunpack.c.l.s4 1983009808
    %v2849 = vunpack.c.0.s8 %v2848
    %v2850 = vlaneseq
    %v2851 = vshrl.u32 %v2850, 7
    %v2852 = vsub.s32 %v2849, %v2851
    %v2853 = vrot.slane %v2839, %v2852
    %v2854 = vcombine.low %v2846, %v2853
    %v2855 = vcombine.low %v1498, %v1505
    %v2856 = vcombine.low %v1512, %v1519
    %v2858 = vunpack.c.l.s4 1983009808
    %v2859 = vunpack.c.0.s8 %v2858
    %v2860 = vlaneseq
    %v2861 = vshrl.u32 %v2860, 7
    %v2862 = vsub.s32 %v2859, %v2861
    %v2863 = vrot.slane %v2855, %v2862
    %v2865 = vunpack.c.l.s4 1983009808
    %v2866 = vunpack.c.0.s8 %v2865
    %v2867 = vlaneseq
    %v2868 = vshrl.u32 %v2867, 7
    %v2869 = vsub.s32 %v2866, %v2868
    %v2870 = vrot.slane %v2856, %v2869
    %v2871 = vcombine.low %v2863, %v2870
    %v2872 = vcombine.low %v1526, %v1533
    %v2873 = vcombine.low %v1540, %v1547
    %v2875 = vunpack.c.l.s4 1983009808
    %v2876 = vunpack.c.0.s8 %v2875
    %v2877 = vlaneseq
    %v2878 = vshrl.u32 %v2877, 7
    %v2879 = vsub.s32 %v2876, %v2878
    %v2880 = vrot.slane %v2872, %v2879
    %v2882 = vunpack.c.l.s4 1983009808
    %v2883 = vunpack.c.0.s8 %v2882
    %v2884 = vlaneseq
    %v2885 = vshrl.u32 %v2884, 7
    %v2886 = vsub.s32 %v2883, %v2885
    %v2887 = vrot.slane %v2873, %v2886
    %v2888 = vcombine.low %v2880, %v2887
    %v2889 = vcombine.low %v1554, %v1561
    %v2890 = vcombine.low %v1568, %v1575
    %v2892 = vunpack.c.l.s4 1983009808
    %v2893 = vunpack.c.0.s8 %v2892
    %v2894 = vlaneseq
    %v2895 = vshrl.u32 %v2894, 7
    %v2896 = vsub.s32 %v2893, %v2895
    %v2897 = vrot.slane %v2889, %v2896
    %v2899 = vunpack.c.l.s4 1983009808
    %v2900 = vunpack.c.0.s8 %v2899
    %v2901 = vlaneseq
    %v2902 = vshrl.u32 %v2901, 7
    %v2903 = vsub.s32 %v2900, %v2902
    %v2904 = vrot.slane %v2890, %v2903
    %v2905 = vcombine.low %v2897, %v2904
    %v2906 = vcombine.low %v1582, %v1589
    %v2907 = vcombine.low %v1596, %v1603
    %v2909 = vunpack.c.l.s4 1983009808
    %v2910 = vunpack.c.0.s8 %v2909
    %v2911 = vlaneseq
    %v2912 = vshrl.u32 %v2911, 7
    %v2913 = vsub.s32 %v2910, %v2912
    %v2914 = vrot.slane %v2906, %v2913
    %v2916 = vunpack.c.l.s4 1983009808
    %v2917 = vunpack.c.0.s8 %v2916
    %v2918 = vlaneseq
    %v2919 = vshrl.u32 %v2918, 7
    %v2920 = vsub.s32 %v2917, %v2919
    %v2921 = vrot.slane %v2907, %v2920
    %v2922 = vcombine.low %v2914, %v2921
    %v2923 = vcombine.low %v1610, %v1617
    %v2924 = vcombine.low %v1624, %v1631
    %v2926 = vunpack.c.l.s4 1983009808
    %v2927 = vunpack.c.0.s8 %v2926
    %v2928 = vlaneseq
    %v2929 = vshrl.u32 %v2928, 7
    %v2930 = vsub.s32 %v2927, %v2929
    %v2931 = vrot.slane %v2923, %v2930
    %v2933 = vunpack.c.l.s4 1983009808
    %v2934 = vunpack.c.0.s8 %v2933
    %v2935 = vlaneseq
    %v2936 = vshrl.u32 %v2935, 7
    %v2937 = vsub.s32 %v2934, %v2936
    %v2938 = vrot.slane %v2924, %v2937
    %v2939 = vcombine.low %v2931, %v2938
    %v2940 = vcombine.low %v1638, %v1645
    %v2941 = vcombine.low %v1652, %v1659
    %v2943 = vunpack.c.l.s4 1983009808
    %v2944 = vunpack.c.0.s8 %v2943
    %v2945 = vlaneseq
    %v2946 = vshrl.u32 %v2945, 7
    %v2947 = vsub.s32 %v2944, %v2946
    %v2948 = vrot.slane %v2940, %v2947
    %v2950 = vunpack.c.l.s4 1983009808
    %v2951 = vunpack.c.0.s8 %v2950
    %v2952 = vlaneseq
    %v2953 = vshrl.u32 %v2952, 7
    %v2954 = vsub.s32 %v2951, %v2953
    %v2955 = vrot.slane %v2941, %v2954
    %v2956 = vcombine.low %v2948, %v2955
    %v2957 = vcombine.low %v1666, %v1673
    %v2958 = vcombine.low %v1680, %v1687
    %v2960 = vunpack.c.l.s4 1983009808
    %v2961 = vunpack.c.0.s8 %v2960
    %v2962 = vlaneseq
    %v2963 = vshrl.u32 %v2962, 7
    %v2964 = vsub.s32 %v2961, %v2963
    %v2965 = vrot.slane %v2957, %v2964
    %v2967 = vunpack.c.l.s4 1983009808
    %v2968 = vunpack.c.0.s8 %v2967
    %v2969 = vlaneseq
    %v2970 = vshrl.u32 %v2969, 7
    %v2971 = vsub.s32 %v2968, %v2970
    %v2972 = vrot.slane %v2958, %v2971
    %v2973 = vcombine.low %v2965, %v2972
    %v2974 = vcombine.low %v1694, %v1701
    %v2975 = vcombine.low %v1708, %v1715
    %v2977 = vunpack.c.l.s4 1983009808
    %v2978 = vunpack.c.0.s8 %v2977
    %v2979 = vlaneseq
    %v2980 = vshrl.u32 %v2979, 7
    %v2981 = vsub.s32 %v2978, %v2980
    %v2982 = vrot.slane %v2974, %v2981
    %v2984 = vunpack.c.l.s4 1983009808
    %v2985 = vunpack.c.0.s8 %v2984
    %v2986 = vlaneseq
    %v2987 = vshrl.u32 %v2986, 7
    %v2988 = vsub.s32 %v2985, %v2987
    %v2989 = vrot.slane %v2975, %v2988
    %v2990 = vcombine.low %v2982, %v2989
    %v2991 = vcombine.low %v1722, %v1729
    %v2992 = vcombine.low %v1736, %v1743
    %v2994 = vunpack.c.l.s4 1983009808
    %v2995 = vunpack.c.0.s8 %v2994
    %v2996 = vlaneseq
    %v2997 = vshrl.u32 %v2996, 7
    %v2998 = vsub.s32 %v2995, %v2997
    %v2999 = vrot.slane %v2991, %v2998
    %v3001 = vunpack.c.l.s4 1983009808
    %v3002 = vunpack.c.0.s8 %v3001
    %v3003 = vlaneseq
    %v3004 = vshrl.u32 %v3003, 7
    %v3005 = vsub.s32 %v3002, %v3004
    %v3006 = vrot.slane %v2992, %v3005
    %v3007 = vcombine.low %v2999, %v3006
    %v3008 = vcombine.low %v1750, %v1757
    %v3009 = vcombine.low %v1764, %v1771
    %v3011 = vunpack.c.l.s4 1983009808
    %v3012 = vunpack.c.0.s8 %v3011
    %v3013 = vlaneseq
    %v3014 = vshrl.u32 %v3013, 7
    %v3015 = vsub.s32 %v3012, %v3014
    %v3016 = vrot.slane %v3008, %v3015
    %v3018 = vunpack.c.l.s4 1983009808
    %v3019 = vunpack.c.0.s8 %v3018
    %v3020 = vlaneseq
    %v3021 = vshrl.u32 %v3020, 7
    %v3022 = vsub.s32 %v3019, %v3021
    %v3023 = vrot.slane %v3009, %v3022
    %v3024 = vcombine.low %v3016, %v3023
    %v3025 = vcombine.low %v1778, %v1785
    %v3026 = vcombine.low %v1792, %v1799
    %v3028 = vunpack.c.l.s4 1983009808
    %v3029 = vunpack.c.0.s8 %v3028
    %v3030 = vlaneseq
    %v3031 = vshrl.u32 %v3030, 7
    %v3032 = vsub.s32 %v3029, %v3031
    %v3033 = vrot.slane %v3025, %v3032
    %v3035 = vunpack.c.l.s4 1983009808
    %v3036 = vunpack.c.0.s8 %v3035
    %v3037 = vlaneseq
    %v3038 = vshrl.u32 %v3037, 7
    %v3039 = vsub.s32 %v3036, %v3038
    %v3040 = vrot.slane %v3026, %v3039
    %v3041 = vcombine.low %v3033, %v3040
    %v3042 = vcombine.low %v1806, %v1813
    %v3043 = vcombine.low %v1820, %v1827
    %v3045 = vunpack.c.l.s4 1983009808
    %v3046 = vunpack.c.0.s8 %v3045
    %v3047 = vlaneseq
    %v3048 = vshrl.u32 %v3047, 7
    %v3049 = vsub.s32 %v3046, %v3048
    %v3050 = vrot.slane %v3042, %v3049
    %v3052 = vunpack.c.l.s4 1983009808
    %v3053 = vunpack.c.0.s8 %v3052
    %v3054 = vlaneseq
    %v3055 = vshrl.u32 %v3054, 7
    %v3056 = vsub.s32 %v3053, %v3055
    %v3057 = vrot.slane %v3043, %v3056
    %v3058 = vcombine.low %v3050, %v3057
    %v3059 = vcombine.low %v1834, %v1841
    %v3060 = vcombine.low %v1848, %v1855
    %v3062 = vunpack.c.l.s4 1983009808
    %v3063 = vunpack.c.0.s8 %v3062
    %v3064 = vlaneseq
    %v3065 = vshrl.u32 %v3064, 7
    %v3066 = vsub.s32 %v3063, %v3065
    %v3067 = vrot.slane %v3059, %v3066
    %v3069 = vunpack.c.l.s4 1983009808
    %v3070 = vunpack.c.0.s8 %v3069
    %v3071 = vlaneseq
    %v3072 = vshrl.u32 %v3071, 7
    %v3073 = vsub.s32 %v3070, %v3072
    %v3074 = vrot.slane %v3060, %v3073
    %v3075 = vcombine.low %v3067, %v3074
    %v3076 = vcombine.low %v1862, %v1869
    %v3077 = vcombine.low %v1876, %v1883
    %v3079 = vunpack.c.l.s4 1983009808
    %v3080 = vunpack.c.0.s8 %v3079
    %v3081 = vlaneseq
    %v3082 = vshrl.u32 %v3081, 7
    %v3083 = vsub.s32 %v3080, %v3082
    %v3084 = vrot.slane %v3076, %v3083
    %v3086 = vunpack.c.l.s4 1983009808
    %v3087 = vunpack.c.0.s8 %v3086
    %v3088 = vlaneseq
    %v3089 = vshrl.u32 %v3088, 7
    %v3090 = vsub.s32 %v3087, %v3089
    %v3091 = vrot.slane %v3077, %v3090
    %v3092 = vcombine.low %v3084, %v3091
    %v3093 = vcombine.low %v1890, %v1897
    %v3094 = vcombine.low %v1904, %v1911
    %v3096 = vunpack.c.l.s4 1983009808
    %v3097 = vunpack.c.0.s8 %v3096
    %v3098 = vlaneseq
    %v3099 = vshrl.u32 %v3098, 7
    %v3100 = vsub.s32 %v3097, %v3099
    %v3101 = vrot.slane %v3093, %v3100
    %v3103 = vunpack.c.l.s4 1983009808
    %v3104 = vunpack.c.0.s8 %v3103
    %v3105 = vlaneseq
    %v3106 = vshrl.u32 %v3105, 7
    %v3107 = vsub.s32 %v3104, %v3106
    %v3108 = vrot.slane %v3094, %v3107
    %v3109 = vcombine.low %v3101, %v3108
    %v3110 = vcombine.low %v1918, %v1925
    %v3111 = vcombine.low %v1932, %v1939
    %v3113 = vunpack.c.l.s4 1983009808
    %v3114 = vunpack.c.0.s8 %v3113
    %v3115 = vlaneseq
    %v3116 = vshrl.u32 %v3115, 7
    %v3117 = vsub.s32 %v3114, %v3116
    %v3118 = vrot.slane %v3110, %v3117
    %v3120 = vunpack.c.l.s4 1983009808
    %v3121 = vunpack.c.0.s8 %v3120
    %v3122 = vlaneseq
    %v3123 = vshrl.u32 %v3122, 7
    %v3124 = vsub.s32 %v3121, %v3123
    %v3125 = vrot.slane %v3111, %v3124
    %v3126 = vcombine.low %v3118, %v3125
    %v3127 = vcombine.low %v1946, %v1953
    %v3128 = vcombine.low %v1960, %v1967
    %v3130 = vunpack.c.l.s4 1983009808
    %v3131 = vunpack.c.0.s8 %v3130
    %v3132 = vlaneseq
    %v3133 = vshrl.u32 %v3132, 7
    %v3134 = vsub.s32 %v3131, %v3133
    %v3135 = vrot.slane %v3127, %v3134
    %v3137 = vunpack.c.l.s4 1983009808
    %v3138 = vunpack.c.0.s8 %v3137
    %v3139 = vlaneseq
    %v3140 = vshrl.u32 %v3139, 7
    %v3141 = vsub.s32 %v3138, %v3140
    %v3142 = vrot.slane %v3128, %v3141
    %v3143 = vcombine.low %v3135, %v3142
    %v3144 = vcombine.low %v1974, %v1981
    %v3145 = vcombine.low %v1988, %v1995
    %v3147 = vunpack.c.l.s4 1983009808
    %v3148 = vunpack.c.0.s8 %v3147
    %v3149 = vlaneseq
    %v3150 = vshrl.u32 %v3149, 7
    %v3151 = vsub.s32 %v3148, %v3150
    %v3152 = vrot.slane %v3144, %v3151
    %v3154 = vunpack.c.l.s4 1983009808
    %v3155 = vunpack.c.0.s8 %v3154
    %v3156 = vlaneseq
    %v3157 = vshrl.u32 %v3156, 7
    %v3158 = vsub.s32 %v3155, %v3157
    %v3159 = vrot.slane %v3145, %v3158
    %v3160 = vcombine.low %v3152, %v3159
    %v3161 = vcombine.low %v2002, %v2009
    %v3162 = vcombine.low %v2016, %v2023
    %v3164 = vunpack.c.l.s4 1983009808
    %v3165 = vunpack.c.0.s8 %v3164
    %v3166 = vlaneseq
    %v3167 = vshrl.u32 %v3166, 7
    %v3168 = vsub.s32 %v3165, %v3167
    %v3169 = vrot.slane %v3161, %v3168
    %v3171 = vunpack.c.l.s4 1983009808
    %v3172 = vunpack.c.0.s8 %v3171
    %v3173 = vlaneseq
    %v3174 = vshrl.u32 %v3173, 7
    %v3175 = vsub.s32 %v3172, %v3174
    %v3176 = vrot.slane %v3162, %v3175
    %v3177 = vcombine.low %v3169, %v3176
    %v3178 = vcombine.low %v2030, %v2037
    %v3179 = vcombine.low %v2044, %v2051
    %v3181 = vunpack.c.l.s4 1983009808
    %v3182 = vunpack.c.0.s8 %v3181
    %v3183 = vlaneseq
    %v3184 = vshrl.u32 %v3183, 7
    %v3185 = vsub.s32 %v3182, %v3184
    %v3186 = vrot.slane %v3178, %v3185
    %v3188 = vunpack.c.l.s4 1983009808
    %v3189 = vunpack.c.0.s8 %v3188
    %v3190 = vlaneseq
    %v3191 = vshrl.u32 %v3190, 7
    %v3192 = vsub.s32 %v3189, %v3191
    %v3193 = vrot.slane %v3179, %v3192
    %v3194 = vcombine.low %v3186, %v3193
    %v3195 = vcombine.low %v2058, %v2065
    %v3196 = vcombine.low %v2072, %v2079
    %v3198 = vunpack.c.l.s4 1983009808
    %v3199 = vunpack.c.0.s8 %v3198
    %v3200 = vlaneseq
    %v3201 = vshrl.u32 %v3200, 7
    %v3202 = vsub.s32 %v3199, %v3201
    %v3203 = vrot.slane %v3195, %v3202
    %v3205 = vunpack.c.l.s4 1983009808
    %v3206 = vunpack.c.0.s8 %v3205
    %v3207 = vlaneseq
    %v3208 = vshrl.u32 %v3207, 7
    %v3209 = vsub.s32 %v3206, %v3208
    %v3210 = vrot.slane %v3196, %v3209
    %v3211 = vcombine.low %v3203, %v3210
    %v3212 = vcombine.low %v2086, %v2093
    %v3213 = vcombine.low %v2100, %v2107
    %v3215 = vunpack.c.l.s4 1983009808
    %v3216 = vunpack.c.0.s8 %v3215
    %v3217 = vlaneseq
    %v3218 = vshrl.u32 %v3217, 7
    %v3219 = vsub.s32 %v3216, %v3218
    %v3220 = vrot.slane %v3212, %v3219
    %v3222 = vunpack.c.l.s4 1983009808
    %v3223 = vunpack.c.0.s8 %v3222
    %v3224 = vlaneseq
    %v3225 = vshrl.u32 %v3224, 7
    %v3226 = vsub.s32 %v3223, %v3225
    %v3227 = vrot.slane %v3213, %v3226
    %v3228 = vcombine.low %v3220, %v3227
    %v3229 = vcombine.low %v2114, %v2121
    %v3230 = vcombine.low %v2128, %v2135
    %v3232 = vunpack.c.l.s4 1983009808
    %v3233 = vunpack.c.0.s8 %v3232
    %v3234 = vlaneseq
    %v3235 = vshrl.u32 %v3234, 7
    %v3236 = vsub.s32 %v3233, %v3235
    %v3237 = vrot.slane %v3229, %v3236
    %v3239 = vunpack.c.l.s4 1983009808
    %v3240 = vunpack.c.0.s8 %v3239
    %v3241 = vlaneseq
    %v3242 = vshrl.u32 %v3241, 7
    %v3243 = vsub.s32 %v3240, %v3242
    %v3244 = vrot.slane %v3230, %v3243
    %v3245 = vcombine.low %v3237, %v3244
    %v3246 = vcombine.low %v2142, %v2149
    %v3247 = vcombine.low %v2156, %v2163
    %v3249 = vunpack.c.l.s4 1983009808
    %v3250 = vunpack.c.0.s8 %v3249
    %v3251 = vlaneseq
    %v3252 = vshrl.u32 %v3251, 7
    %v3253 = vsub.s32 %v3250, %v3252
    %v3254 = vrot.slane %v3246, %v3253
    %v3256 = vunpack.c.l.s4 1983009808
    %v3257 = vunpack.c.0.s8 %v3256
    %v3258 = vlaneseq
    %v3259 = vshrl.u32 %v3258, 7
    %v3260 = vsub.s32 %v3257, %v3259
    %v3261 = vrot.slane %v3247, %v3260
    %v3262 = vcombine.low %v3254, %v3261
    %v3263 = vcombine.low %v2170, %v2177
    %v3264 = vcombine.low %v2184, %v2191
    %v3266 = vunpack.c.l.s4 1983009808
    %v3267 = vunpack.c.0.s8 %v3266
    %v3268 = vlaneseq
    %v3269 = vshrl.u32 %v3268, 7
    %v3270 = vsub.s32 %v3267, %v3269
    %v3271 = vrot.slane %v3263, %v3270
    %v3273 = vunpack.c.l.s4 1983009808
    %v3274 = vunpack.c.0.s8 %v3273
    %v3275 = vlaneseq
    %v3276 = vshrl.u32 %v3275, 7
    %v3277 = vsub.s32 %v3274, %v3276
    %v3278 = vrot.slane %v3264, %v3277
    %v3279 = vcombine.low %v3271, %v3278
    %3280 = vset.pattern.permute.xlu0 0
    %3281 = vperm.xlu0 %3280, %v2208
    %v3282 = vpop.permute.xlu0 %3281
    %3283 = vset.pattern.permute.xlu0 0
    %3284 = vperm.xlu0 %3283, %v2225
    %v3285 = vpop.permute.xlu0 %3284
    %3286 = vset.pattern.permute.xlu0 0
    %3287 = vperm.xlu0 %3286, %v2242
    %v3288 = vpop.permute.xlu0 %3287
    %3289 = vset.pattern.permute.xlu0 0
    %3290 = vperm.xlu0 %3289, %v2259
    %v3291 = vpop.permute.xlu0 %3290
    %3292 = vset.pattern.permute.xlu0 0
    %3293 = vperm.xlu0 %3292, %v2276
    %v3294 = vpop.permute.xlu0 %3293
    %3295 = vset.pattern.permute.xlu0 0
    %3296 = vperm.xlu0 %3295, %v2293
    %v3297 = vpop.permute.xlu0 %3296
    %3298 = vset.pattern.permute.xlu0 0
    %3299 = vperm.xlu0 %3298, %v2310
    %v3300 = vpop.permute.xlu0 %3299
    %3301 = vset.pattern.permute.xlu0 0
    %3302 = vperm.xlu0 %3301, %v2327
    %v3303 = vpop.permute.xlu0 %3302
    %3304 = vset.pattern.permute.xlu0 0
    %3305 = vperm.xlu0 %3304, %v2344
    %v3306 = vpop.permute.xlu0 %3305
    %3307 = vset.pattern.permute.xlu0 0
    %3308 = vperm.xlu0 %3307, %v2361
    %v3309 = vpop.permute.xlu0 %3308
    %3310 = vset.pattern.permute.xlu0 0
    %3311 = vperm.xlu0 %3310, %v2378
    %v3312 = vpop.permute.xlu0 %3311
    %3313 = vset.pattern.permute.xlu0 0
    %3314 = vperm.xlu0 %3313, %v2395
    %v3315 = vpop.permute.xlu0 %3314
    %3316 = vset.pattern.permute.xlu0 0
    %3317 = vperm.xlu0 %3316, %v2412
    %v3318 = vpop.permute.xlu0 %3317
    %3319 = vset.pattern.permute.xlu0 0
    %3320 = vperm.xlu0 %3319, %v2429
    %v3321 = vpop.permute.xlu0 %3320
    %3322 = vset.pattern.permute.xlu0 0
    %3323 = vperm.xlu0 %3322, %v2446
    %v3324 = vpop.permute.xlu0 %3323
    %3325 = vset.pattern.permute.xlu0 0
    %3326 = vperm.xlu0 %3325, %v2463
    %v3327 = vpop.permute.xlu0 %3326
    %3328 = vset.pattern.permute.xlu0 0
    %3329 = vperm.xlu0 %3328, %v2480
    %v3330 = vpop.permute.xlu0 %3329
    %3331 = vset.pattern.permute.xlu0 0
    %3332 = vperm.xlu0 %3331, %v2497
    %v3333 = vpop.permute.xlu0 %3332
    %3334 = vset.pattern.permute.xlu0 0
    %3335 = vperm.xlu0 %3334, %v2514
    %v3336 = vpop.permute.xlu0 %3335
    %3337 = vset.pattern.permute.xlu0 0
    %3338 = vperm.xlu0 %3337, %v2531
    %v3339 = vpop.permute.xlu0 %3338
    %3340 = vset.pattern.permute.xlu0 0
    %3341 = vperm.xlu0 %3340, %v2548
    %v3342 = vpop.permute.xlu0 %3341
    %3343 = vset.pattern.permute.xlu0 0
    %3344 = vperm.xlu0 %3343, %v2565
    %v3345 = vpop.permute.xlu0 %3344
    %3346 = vset.pattern.permute.xlu0 0
    %3347 = vperm.xlu0 %3346, %v2582
    %v3348 = vpop.permute.xlu0 %3347
    %3349 = vset.pattern.permute.xlu0 0
    %3350 = vperm.xlu0 %3349, %v2599
    %v3351 = vpop.permute.xlu0 %3350
    %3352 = vset.pattern.permute.xlu0 0
    %3353 = vperm.xlu0 %3352, %v2616
    %v3354 = vpop.permute.xlu0 %3353
    %3355 = vset.pattern.permute.xlu0 0
    %3356 = vperm.xlu0 %3355, %v2633
    %v3357 = vpop.permute.xlu0 %3356
    %3358 = vset.pattern.permute.xlu0 0
    %3359 = vperm.xlu0 %3358, %v2650
    %v3360 = vpop.permute.xlu0 %3359
    %3361 = vset.pattern.permute.xlu0 0
    %3362 = vperm.xlu0 %3361, %v2667
    %v3363 = vpop.permute.xlu0 %3362
    %3364 = vset.pattern.permute.xlu0 0
    %3365 = vperm.xlu0 %3364, %v2684
    %v3366 = vpop.permute.xlu0 %3365
    %3367 = vset.pattern.permute.xlu0 0
    %3368 = vperm.xlu0 %3367, %v2701
    %v3369 = vpop.permute.xlu0 %3368
    %3370 = vset.pattern.permute.xlu0 0
    %3371 = vperm.xlu0 %3370, %v2718
    %v3372 = vpop.permute.xlu0 %3371
    %3373 = vset.pattern.permute.xlu0 0
    %3374 = vperm.xlu0 %3373, %v2735
    %v3375 = vpop.permute.xlu0 %3374
    %3376 = vset.pattern.permute.xlu0 0
    %3377 = vperm.xlu0 %3376, %v2752
    %v3378 = vpop.permute.xlu0 %3377
    %3379 = vset.pattern.permute.xlu0 0
    %3380 = vperm.xlu0 %3379, %v2769
    %v3381 = vpop.permute.xlu0 %3380
    %3382 = vset.pattern.permute.xlu0 0
    %3383 = vperm.xlu0 %3382, %v2786
    %v3384 = vpop.permute.xlu0 %3383
    %3385 = vset.pattern.permute.xlu0 0
    %3386 = vperm.xlu0 %3385, %v2803
    %v3387 = vpop.permute.xlu0 %3386
    %3388 = vset.pattern.permute.xlu0 0
    %3389 = vperm.xlu0 %3388, %v2820
    %v3390 = vpop.permute.xlu0 %3389
    %3391 = vset.pattern.permute.xlu0 0
    %3392 = vperm.xlu0 %3391, %v2837
    %v3393 = vpop.permute.xlu0 %3392
    %3394 = vset.pattern.permute.xlu0 0
    %3395 = vperm.xlu0 %3394, %v2854
    %v3396 = vpop.permute.xlu0 %3395
    %3397 = vset.pattern.permute.xlu0 0
    %3398 = vperm.xlu0 %3397, %v2871
    %v3399 = vpop.permute.xlu0 %3398
    %3400 = vset.pattern.permute.xlu0 0
    %3401 = vperm.xlu0 %3400, %v2888
    %v3402 = vpop.permute.xlu0 %3401
    %3403 = vset.pattern.permute.xlu0 0
    %3404 = vperm.xlu0 %3403, %v2905
    %v3405 = vpop.permute.xlu0 %3404
    %3406 = vset.pattern.permute.xlu0 0
    %3407 = vperm.xlu0 %3406, %v2922
    %v3408 = vpop.permute.xlu0 %3407
    %3409 = vset.pattern.permute.xlu0 0
    %3410 = vperm.xlu0 %3409, %v2939
    %v3411 = vpop.permute.xlu0 %3410
    %3412 = vset.pattern.permute.xlu0 0
    %3413 = vperm.xlu0 %3412, %v2956
    %v3414 = vpop.permute.xlu0 %3413
    %3415 = vset.pattern.permute.xlu0 0
    %3416 = vperm.xlu0 %3415, %v2973
    %v3417 = vpop.permute.xlu0 %3416
    %3418 = vset.pattern.permute.xlu0 0
    %3419 = vperm.xlu0 %3418, %v2990
    %v3420 = vpop.permute.xlu0 %3419
    %3421 = vset.pattern.permute.xlu0 0
    %3422 = vperm.xlu0 %3421, %v3007
    %v3423 = vpop.permute.xlu0 %3422
    %3424 = vset.pattern.permute.xlu0 0
    %3425 = vperm.xlu0 %3424, %v3024
    %v3426 = vpop.permute.xlu0 %3425
    %3427 = vset.pattern.permute.xlu0 0
    %3428 = vperm.xlu0 %3427, %v3041
    %v3429 = vpop.permute.xlu0 %3428
    %3430 = vset.pattern.permute.xlu0 0
    %3431 = vperm.xlu0 %3430, %v3058
    %v3432 = vpop.permute.xlu0 %3431
    %3433 = vset.pattern.permute.xlu0 0
    %3434 = vperm.xlu0 %3433, %v3075
    %v3435 = vpop.permute.xlu0 %3434
    %3436 = vset.pattern.permute.xlu0 0
    %3437 = vperm.xlu0 %3436, %v3092
    %v3438 = vpop.permute.xlu0 %3437
    %3439 = vset.pattern.permute.xlu0 0
    %3440 = vperm.xlu0 %3439, %v3109
    %v3441 = vpop.permute.xlu0 %3440
    %3442 = vset.pattern.permute.xlu0 0
    %3443 = vperm.xlu0 %3442, %v3126
    %v3444 = vpop.permute.xlu0 %3443
    %3445 = vset.pattern.permute.xlu0 0
    %3446 = vperm.xlu0 %3445, %v3143
    %v3447 = vpop.permute.xlu0 %3446
    %3448 = vset.pattern.permute.xlu0 0
    %3449 = vperm.xlu0 %3448, %v3160
    %v3450 = vpop.permute.xlu0 %3449
    %3451 = vset.pattern.permute.xlu0 0
    %3452 = vperm.xlu0 %3451, %v3177
    %v3453 = vpop.permute.xlu0 %3452
    %3454 = vset.pattern.permute.xlu0 0
    %3455 = vperm.xlu0 %3454, %v3194
    %v3456 = vpop.permute.xlu0 %3455
    %3457 = vset.pattern.permute.xlu0 0
    %3458 = vperm.xlu0 %3457, %v3211
    %v3459 = vpop.permute.xlu0 %3458
    %3460 = vset.pattern.permute.xlu0 0
    %3461 = vperm.xlu0 %3460, %v3228
    %v3462 = vpop.permute.xlu0 %3461
    %3463 = vset.pattern.permute.xlu0 0
    %3464 = vperm.xlu0 %3463, %v3245
    %v3465 = vpop.permute.xlu0 %3464
    %3466 = vset.pattern.permute.xlu0 0
    %3467 = vperm.xlu0 %3466, %v3262
    %v3468 = vpop.permute.xlu0 %3467
    %3469 = vset.pattern.permute.xlu0 0
    %3470 = vperm.xlu0 %3469, %v3279
    %v3471 = vpop.permute.xlu0 %3470
    %v3472 = vlaneseq
    %v3473 = vand.u32 %v3472, 127
    %v3474 = vlaneseq
    %v3475 = vshrl.u32 %v3474, 7
    %v3476 = vsub.s32 %v3473, %v3475
    %v3477 = vrot.slane %v3282, %v3476
    %v3478 = vadd.s32 %v3473, 4294967288
    %v3479 = vlaneseq
    %v3480 = vshrl.u32 %v3479, 7
    %v3481 = vsub.s32 %v3478, %v3480
    %v3482 = vrot.slane %v3285, %v3481
    %vm3483 = vcmask 130112
    %v3484 = vsel %vm3483, %v3482, %v3477
    %v3485 = vadd.s32 %v3473, 4294967280
    %v3486 = vlaneseq
    %v3487 = vshrl.u32 %v3486, 7
    %v3488 = vsub.s32 %v3485, %v3487
    %v3489 = vrot.slane %v3288, %v3488
    %vm3490 = vcmask 195712
    %v3491 = vsel %vm3490, %v3489, %v3484
    %v3492 = vadd.s32 %v3473, 4294967272
    %v3493 = vlaneseq
    %v3494 = vshrl.u32 %v3493, 7
    %v3495 = vsub.s32 %v3492, %v3494
    %v3496 = vrot.slane %v3291, %v3495
    %vm3497 = vcmask 261312
    %v3498 = vsel %vm3497, %v3496, %v3491
    %v3499 = vadd.s32 %v3473, 4294967264
    %v3500 = vlaneseq
    %v3501 = vshrl.u32 %v3500, 7
    %v3502 = vsub.s32 %v3499, %v3501
    %v3503 = vrot.slane %v3294, %v3502
    %vm3504 = vcmask 326912
    %v3505 = vsel %vm3504, %v3503, %v3498
    %v3506 = vadd.s32 %v3473, 4294967256
    %v3507 = vlaneseq
    %v3508 = vshrl.u32 %v3507, 7
    %v3509 = vsub.s32 %v3506, %v3508
    %v3510 = vrot.slane %v3297, %v3509
    %vm3511 = vcmask 392512
    %v3512 = vsel %vm3511, %v3510, %v3505
    %v3513 = vadd.s32 %v3473, 4294967248
    %v3514 = vlaneseq
    %v3515 = vshrl.u32 %v3514, 7
    %v3516 = vsub.s32 %v3513, %v3515
    %v3517 = vrot.slane %v3300, %v3516
    %vm3518 = vcmask 458112
    %v3519 = vsel %vm3518, %v3517, %v3512
    %v3520 = vadd.s32 %v3473, 4294967240
    %v3521 = vlaneseq
    %v3522 = vshrl.u32 %v3521, 7
    %v3523 = vsub.s32 %v3520, %v3522
    %v3524 = vrot.slane %v3303, %v3523
    %vm3525 = vcmask 523712
    %v3526 = vsel %vm3525, %v3524, %v3519
    %v3527 = vadd.s32 %v3473, 4294967232
    %v3528 = vlaneseq
    %v3529 = vshrl.u32 %v3528, 7
    %v3530 = vsub.s32 %v3527, %v3529
    %v3531 = vrot.slane %v3306, %v3530
    %vm3532 = vcmask 589312
    %v3533 = vsel %vm3532, %v3531, %v3526
    %v3534 = vadd.s32 %v3473, 4294967224
    %v3535 = vlaneseq
    %v3536 = vshrl.u32 %v3535, 7
    %v3537 = vsub.s32 %v3534, %v3536
    %v3538 = vrot.slane %v3309, %v3537
    %vm3539 = vcmask 654912
    %v3540 = vsel %vm3539, %v3538, %v3533
    %v3541 = vadd.s32 %v3473, 4294967216
    %v3542 = vlaneseq
    %v3543 = vshrl.u32 %v3542, 7
    %v3544 = vsub.s32 %v3541, %v3543
    %v3545 = vrot.slane %v3312, %v3544
    %vm3546 = vcmask 720512
    %v3547 = vsel %vm3546, %v3545, %v3540
    %v3548 = vadd.s32 %v3473, 4294967208
    %v3549 = vlaneseq
    %v3550 = vshrl.u32 %v3549, 7
    %v3551 = vsub.s32 %v3548, %v3550
    %v3552 = vrot.slane %v3315, %v3551
    %vm3553 = vcmask 786112
    %v3554 = vsel %vm3553, %v3552, %v3547
    %v3555 = vadd.s32 %v3473, 4294967200
    %v3556 = vlaneseq
    %v3557 = vshrl.u32 %v3556, 7
    %v3558 = vsub.s32 %v3555, %v3557
    %v3559 = vrot.slane %v3318, %v3558
    %vm3560 = vcmask 851712
    %v3561 = vsel %vm3560, %v3559, %v3554
    %v3562 = vadd.s32 %v3473, 4294967192
    %v3563 = vlaneseq
    %v3564 = vshrl.u32 %v3563, 7
    %v3565 = vsub.s32 %v3562, %v3564
    %v3566 = vrot.slane %v3321, %v3565
    %vm3567 = vcmask 917312
    %v3568 = vsel %vm3567, %v3566, %v3561
    %v3569 = vadd.s32 %v3473, 4294967184
    %v3570 = vlaneseq
    %v3571 = vshrl.u32 %v3570, 7
    %v3572 = vsub.s32 %v3569, %v3571
    %v3573 = vrot.slane %v3324, %v3572
    %vm3574 = vcmask 982912
    %v3575 = vsel %vm3574, %v3573, %v3568
    %v3576 = vadd.s32 %v3473, 4294967176
    %v3577 = vlaneseq
    %v3578 = vshrl.u32 %v3577, 7
    %v3579 = vsub.s32 %v3576, %v3578
    %v3580 = vrot.slane %v3327, %v3579
    %vm3581 = vcmask 1048512
    %v3582 = vsel %vm3581, %v3580, %v3575
    %v3583 = vlaneseq
    %v3584 = vshrl.u32 %v3583, 7
    %v3585 = vsub.s32 %v3473, %v3584
    %v3586 = vrot.slane %v3330, %v3585
    %v3587 = vlaneseq
    %v3588 = vshrl.u32 %v3587, 7
    %v3589 = vsub.s32 %v3478, %v3588
    %v3590 = vrot.slane %v3333, %v3589
    %v3591 = vsel %vm3483, %v3590, %v3586
    %v3592 = vlaneseq
    %v3593 = vshrl.u32 %v3592, 7
    %v3594 = vsub.s32 %v3485, %v3593
    %v3595 = vrot.slane %v3336, %v3594
    %v3596 = vsel %vm3490, %v3595, %v3591
    %v3597 = vlaneseq
    %v3598 = vshrl.u32 %v3597, 7
    %v3599 = vsub.s32 %v3492, %v3598
    %v3600 = vrot.slane %v3339, %v3599
    %v3601 = vsel %vm3497, %v3600, %v3596
    %v3602 = vlaneseq
    %v3603 = vshrl.u32 %v3602, 7
    %v3604 = vsub.s32 %v3499, %v3603
    %v3605 = vrot.slane %v3342, %v3604
    %v3606 = vsel %vm3504, %v3605, %v3601
    %v3607 = vlaneseq
    %v3608 = vshrl.u32 %v3607, 7
    %v3609 = vsub.s32 %v3506, %v3608
    %v3610 = vrot.slane %v3345, %v3609
    %v3611 = vsel %vm3511, %v3610, %v3606
    %v3612 = vlaneseq
    %v3613 = vshrl.u32 %v3612, 7
    %v3614 = vsub.s32 %v3513, %v3613
    %v3615 = vrot.slane %v3348, %v3614
    %v3616 = vsel %vm3518, %v3615, %v3611
    %v3617 = vlaneseq
    %v3618 = vshrl.u32 %v3617, 7
    %v3619 = vsub.s32 %v3520, %v3618
    %v3620 = vrot.slane %v3351, %v3619
    %v3621 = vsel %vm3525, %v3620, %v3616
    %v3622 = vlaneseq
    %v3623 = vshrl.u32 %v3622, 7
    %v3624 = vsub.s32 %v3527, %v3623
    %v3625 = vrot.slane %v3354, %v3624
    %v3626 = vsel %vm3532, %v3625, %v3621
    %v3627 = vlaneseq
    %v3628 = vshrl.u32 %v3627, 7
    %v3629 = vsub.s32 %v3534, %v3628
    %v3630 = vrot.slane %v3357, %v3629
    %v3631 = vsel %vm3539, %v3630, %v3626
    %v3632 = vlaneseq
    %v3633 = vshrl.u32 %v3632, 7
    %v3634 = vsub.s32 %v3541, %v3633
    %v3635 = vrot.slane %v3360, %v3634
    %v3636 = vsel %vm3546, %v3635, %v3631
    %v3637 = vlaneseq
    %v3638 = vshrl.u32 %v3637, 7
    %v3639 = vsub.s32 %v3548, %v3638
    %v3640 = vrot.slane %v3363, %v3639
    %v3641 = vsel %vm3553, %v3640, %v3636
    %v3642 = vlaneseq
    %v3643 = vshrl.u32 %v3642, 7
    %v3644 = vsub.s32 %v3555, %v3643
    %v3645 = vrot.slane %v3366, %v3644
    %v3646 = vsel %vm3560, %v3645, %v3641
    %v3647 = vlaneseq
    %v3648 = vshrl.u32 %v3647, 7
    %v3649 = vsub.s32 %v3562, %v3648
    %v3650 = vrot.slane %v3369, %v3649
    %v3651 = vsel %vm3567, %v3650, %v3646
    %v3652 = vlaneseq
    %v3653 = vshrl.u32 %v3652, 7
    %v3654 = vsub.s32 %v3569, %v3653
    %v3655 = vrot.slane %v3372, %v3654
    %v3656 = vsel %vm3574, %v3655, %v3651
    %v3657 = vlaneseq
    %v3658 = vshrl.u32 %v3657, 7
    %v3659 = vsub.s32 %v3576, %v3658
    %v3660 = vrot.slane %v3375, %v3659
    %v3661 = vsel %vm3581, %v3660, %v3656
    %v3662 = vlaneseq
    %v3663 = vshrl.u32 %v3662, 7
    %v3664 = vsub.s32 %v3473, %v3663
    %v3665 = vrot.slane %v3378, %v3664
    %v3666 = vlaneseq
    %v3667 = vshrl.u32 %v3666, 7
    %v3668 = vsub.s32 %v3478, %v3667
    %v3669 = vrot.slane %v3381, %v3668
    %v3670 = vsel %vm3483, %v3669, %v3665
    %v3671 = vlaneseq
    %v3672 = vshrl.u32 %v3671, 7
    %v3673 = vsub.s32 %v3485, %v3672
    %v3674 = vrot.slane %v3384, %v3673
    %v3675 = vsel %vm3490, %v3674, %v3670
    %v3676 = vlaneseq
    %v3677 = vshrl.u32 %v3676, 7
    %v3678 = vsub.s32 %v3492, %v3677
    %v3679 = vrot.slane %v3387, %v3678
    %v3680 = vsel %vm3497, %v3679, %v3675
    %v3681 = vlaneseq
    %v3682 = vshrl.u32 %v3681, 7
    %v3683 = vsub.s32 %v3499, %v3682
    %v3684 = vrot.slane %v3390, %v3683
    %v3685 = vsel %vm3504, %v3684, %v3680
    %v3686 = vlaneseq
    %v3687 = vshrl.u32 %v3686, 7
    %v3688 = vsub.s32 %v3506, %v3687
    %v3689 = vrot.slane %v3393, %v3688
    %v3690 = vsel %vm3511, %v3689, %v3685
    %v3691 = vlaneseq
    %v3692 = vshrl.u32 %v3691, 7
    %v3693 = vsub.s32 %v3513, %v3692
    %v3694 = vrot.slane %v3396, %v3693
    %v3695 = vsel %vm3518, %v3694, %v3690
    %v3696 = vlaneseq
    %v3697 = vshrl.u32 %v3696, 7
    %v3698 = vsub.s32 %v3520, %v3697
    %v3699 = vrot.slane %v3399, %v3698
    %v3700 = vsel %vm3525, %v3699, %v3695
    %v3701 = vlaneseq
    %v3702 = vshrl.u32 %v3701, 7
    %v3703 = vsub.s32 %v3527, %v3702
    %v3704 = vrot.slane %v3402, %v3703
    %v3705 = vsel %vm3532, %v3704, %v3700
    %v3706 = vlaneseq
    %v3707 = vshrl.u32 %v3706, 7
    %v3708 = vsub.s32 %v3534, %v3707
    %v3709 = vrot.slane %v3405, %v3708
    %v3710 = vsel %vm3539, %v3709, %v3705
    %v3711 = vlaneseq
    %v3712 = vshrl.u32 %v3711, 7
    %v3713 = vsub.s32 %v3541, %v3712
    %v3714 = vrot.slane %v3408, %v3713
    %v3715 = vsel %vm3546, %v3714, %v3710
    %v3716 = vlaneseq
    %v3717 = vshrl.u32 %v3716, 7
    %v3718 = vsub.s32 %v3548, %v3717
    %v3719 = vrot.slane %v3411, %v3718
    %v3720 = vsel %vm3553, %v3719, %v3715
    %v3721 = vlaneseq
    %v3722 = vshrl.u32 %v3721, 7
    %v3723 = vsub.s32 %v3555, %v3722
    %v3724 = vrot.slane %v3414, %v3723
    %v3725 = vsel %vm3560, %v3724, %v3720
    %v3726 = vlaneseq
    %v3727 = vshrl.u32 %v3726, 7
    %v3728 = vsub.s32 %v3562, %v3727
    %v3729 = vrot.slane %v3417, %v3728
    %v3730 = vsel %vm3567, %v3729, %v3725
    %v3731 = vlaneseq
    %v3732 = vshrl.u32 %v3731, 7
    %v3733 = vsub.s32 %v3569, %v3732
    %v3734 = vrot.slane %v3420, %v3733
    %v3735 = vsel %vm3574, %v3734, %v3730
    %v3736 = vlaneseq
    %v3737 = vshrl.u32 %v3736, 7
    %v3738 = vsub.s32 %v3576, %v3737
    %v3739 = vrot.slane %v3423, %v3738
    %v3740 = vsel %vm3581, %v3739, %v3735
    %v3741 = vlaneseq
    %v3742 = vshrl.u32 %v3741, 7
    %v3743 = vsub.s32 %v3473, %v3742
    %v3744 = vrot.slane %v3426, %v3743
    %v3745 = vlaneseq
    %v3746 = vshrl.u32 %v3745, 7
    %v3747 = vsub.s32 %v3478, %v3746
    %v3748 = vrot.slane %v3429, %v3747
    %v3749 = vsel %vm3483, %v3748, %v3744
    %v3750 = vlaneseq
    %v3751 = vshrl.u32 %v3750, 7
    %v3752 = vsub.s32 %v3485, %v3751
    %v3753 = vrot.slane %v3432, %v3752
    %v3754 = vsel %vm3490, %v3753, %v3749
    %v3755 = vlaneseq
    %v3756 = vshrl.u32 %v3755, 7
    %v3757 = vsub.s32 %v3492, %v3756
    %v3758 = vrot.slane %v3435, %v3757
    %v3759 = vsel %vm3497, %v3758, %v3754
    %v3760 = vlaneseq
    %v3761 = vshrl.u32 %v3760, 7
    %v3762 = vsub.s32 %v3499, %v3761
    %v3763 = vrot.slane %v3438, %v3762
    %v3764 = vsel %vm3504, %v3763, %v3759
    %v3765 = vlaneseq
    %v3766 = vshrl.u32 %v3765, 7
    %v3767 = vsub.s32 %v3506, %v3766
    %v3768 = vrot.slane %v3441, %v3767
    %v3769 = vsel %vm3511, %v3768, %v3764
    %v3770 = vlaneseq
    %v3771 = vshrl.u32 %v3770, 7
    %v3772 = vsub.s32 %v3513, %v3771
    %v3773 = vrot.slane %v3444, %v3772
    %v3774 = vsel %vm3518, %v3773, %v3769
    %v3775 = vlaneseq
    %v3776 = vshrl.u32 %v3775, 7
    %v3777 = vsub.s32 %v3520, %v3776
    %v3778 = vrot.slane %v3447, %v3777
    %v3779 = vsel %vm3525, %v3778, %v3774
    %v3780 = vlaneseq
    %v3781 = vshrl.u32 %v3780, 7
    %v3782 = vsub.s32 %v3527, %v3781
    %v3783 = vrot.slane %v3450, %v3782
    %v3784 = vsel %vm3532, %v3783, %v3779
    %v3785 = vlaneseq
    %v3786 = vshrl.u32 %v3785, 7
    %v3787 = vsub.s32 %v3534, %v3786
    %v3788 = vrot.slane %v3453, %v3787
    %v3789 = vsel %vm3539, %v3788, %v3784
    %v3790 = vlaneseq
    %v3791 = vshrl.u32 %v3790, 7
    %v3792 = vsub.s32 %v3541, %v3791
    %v3793 = vrot.slane %v3456, %v3792
    %v3794 = vsel %vm3546, %v3793, %v3789
    %v3795 = vlaneseq
    %v3796 = vshrl.u32 %v3795, 7
    %v3797 = vsub.s32 %v3548, %v3796
    %v3798 = vrot.slane %v3459, %v3797
    %v3799 = vsel %vm3553, %v3798, %v3794
    %v3800 = vlaneseq
    %v3801 = vshrl.u32 %v3800, 7
    %v3802 = vsub.s32 %v3555, %v3801
    %v3803 = vrot.slane %v3462, %v3802
    %v3804 = vsel %vm3560, %v3803, %v3799
    %v3805 = vlaneseq
    %v3806 = vshrl.u32 %v3805, 7
    %v3807 = vsub.s32 %v3562, %v3806
    %v3808 = vrot.slane %v3465, %v3807
    %v3809 = vsel %vm3567, %v3808, %v3804
    %v3810 = vlaneseq
    %v3811 = vshrl.u32 %v3810, 7
    %v3812 = vsub.s32 %v3569, %v3811
    %v3813 = vrot.slane %v3468, %v3812
    %v3814 = vsel %vm3574, %v3813, %v3809
    %v3815 = vlaneseq
    %v3816 = vshrl.u32 %v3815, 7
    %v3817 = vsub.s32 %v3576, %v3816
    %v3818 = vrot.slane %v3471, %v3817
    %v3819 = vsel %vm3581, %v3818, %v3814
    %vm3820 = vcmask 1041409
    %v3821 = vsel %vm3820, %v3740, %v3582
    %v3822 = vsel %vm3820, %v3819, %v3661
    %v3823 = vcombine.low %v3821, %v3822
    %v3825 = vunpack.c.l.s4 1983009808
    %v3826 = vunpack.c.0.s8 %v3825
    %v3827 = vlaneseq
    %v3828 = vshrl.u32 %v3827, 7
    %v3829 = vsub.s32 %v3826, %v3828
    %v3830 = vrot.slane %v3823, %v3829
    %3832 = vst [vmem:[#allocation2] sm:$0xf] %v3830
    %v3833 = vld [vmem:[%s1] sm:$0xff]
    %v3834 = vld [vmem:[%s1 + $0x8] sm:$0xff]
    %v3835 = vld [vmem:[%s1 + $0x10] sm:$0xff]
    %v3836 = vld [vmem:[%s1 + $0x18] sm:$0xff]
    %v3837 = vld [vmem:[%s1 + $0x20] sm:$0xff]
    %v3838 = vld [vmem:[%s1 + $0x28] sm:$0xff]
    %v3839 = vld [vmem:[%s1 + $0x30] sm:$0xff]
    %v3840 = vld [vmem:[%s1 + $0x38] sm:$0xff]
    %v3841 = vld [vmem:[%s1 + $0x40] sm:$0xff]
    %v3842 = vld [vmem:[%s1 + $0x48] sm:$0xff]
    %v3843 = vld [vmem:[%s1 + $0x50] sm:$0xff]
    %v3844 = vld [vmem:[%s1 + $0x58] sm:$0xff]
    %v3845 = vld [vmem:[%s1 + $0x60] sm:$0xff]
    %v3846 = vld [vmem:[%s1 + $0x68] sm:$0xff]
    %v3847 = vld [vmem:[%s1 + $0x70] sm:$0xff]
    %v3848 = vld [vmem:[%s1 + $0x78] sm:$0xff]
    %v3849 = vld [vmem:[%s1 + $0x80] sm:$0xff]
    %v3850 = vld [vmem:[%s1 + $0x88] sm:$0xff]
    %v3851 = vld [vmem:[%s1 + $0x90] sm:$0xff]
    %v3852 = vld [vmem:[%s1 + $0x98] sm:$0xff]
    %v3853 = vld [vmem:[%s1 + $0xa0] sm:$0xff]
    %v3854 = vld [vmem:[%s1 + $0xa8] sm:$0xff]
    %v3855 = vld [vmem:[%s1 + $0xb0] sm:$0xff]
    %v3856 = vld [vmem:[%s1 + $0xb8] sm:$0xff]
    %v3857 = vld [vmem:[%s1 + $0xc0] sm:$0xff]
    %v3858 = vld [vmem:[%s1 + $0xc8] sm:$0xff]
    %v3859 = vld [vmem:[%s1 + $0xd0] sm:$0xff]
    %v3860 = vld [vmem:[%s1 + $0xd8] sm:$0xff]
    %v3861 = vld [vmem:[%s1 + $0xe0] sm:$0xff]
    %v3862 = vld [vmem:[%s1 + $0xe8] sm:$0xff]
    %v3863 = vld [vmem:[%s1 + $0xf0] sm:$0xff]
    %v3864 = vld [vmem:[%s1 + $0xf8] sm:$0xff]
    %v3865 = vld [vmem:[%s1 + $0x100] sm:$0xff]
    %v3866 = vld [vmem:[%s1 + $0x108] sm:$0xff]
    %v3867 = vld [vmem:[%s1 + $0x110] sm:$0xff]
    %v3868 = vld [vmem:[%s1 + $0x118] sm:$0xff]
    %v3869 = vld [vmem:[%s1 + $0x120] sm:$0xff]
    %v3870 = vld [vmem:[%s1 + $0x128] sm:$0xff]
    %v3871 = vld [vmem:[%s1 + $0x130] sm:$0xff]
    %v3872 = vld [vmem:[%s1 + $0x138] sm:$0xff]
    %v3873 = vld [vmem:[%s1 + $0x140] sm:$0xff]
    %v3874 = vld [vmem:[%s1 + $0x148] sm:$0xff]
    %v3875 = vld [vmem:[%s1 + $0x150] sm:$0xff]
    %v3876 = vld [vmem:[%s1 + $0x158] sm:$0xff]
    %v3877 = vld [vmem:[%s1 + $0x160] sm:$0xff]
    %v3878 = vld [vmem:[%s1 + $0x168] sm:$0xff]
    %v3879 = vld [vmem:[%s1 + $0x170] sm:$0xff]
    %v3880 = vld [vmem:[%s1 + $0x178] sm:$0xff]
    %v3881 = vld [vmem:[%s1 + $0x180] sm:$0xff]
    %v3882 = vld [vmem:[%s1 + $0x188] sm:$0xff]
    %v3883 = vld [vmem:[%s1 + $0x190] sm:$0xff]
    %v3884 = vld [vmem:[%s1 + $0x198] sm:$0xff]
    %v3885 = vld [vmem:[%s1 + $0x1a0] sm:$0xff]
    %v3886 = vld [vmem:[%s1 + $0x1a8] sm:$0xff]
    %v3887 = vld [vmem:[%s1 + $0x1b0] sm:$0xff]
    %v3888 = vld [vmem:[%s1 + $0x1b8] sm:$0xff]
    %v3889 = vld [vmem:[%s1 + $0x1c0] sm:$0xff]
    %v3890 = vld [vmem:[%s1 + $0x1c8] sm:$0xff]
    %v3891 = vld [vmem:[%s1 + $0x1d0] sm:$0xff]
    %v3892 = vld [vmem:[%s1 + $0x1d8] sm:$0xff]
    %v3893 = vld [vmem:[%s1 + $0x1e0] sm:$0xff]
    %v3894 = vld [vmem:[%s1 + $0x1e8] sm:$0xff]
    %v3895 = vld [vmem:[%s1 + $0x1f0] sm:$0xff]
    %v3896 = vld [vmem:[%s1 + $0x1f8] sm:$0xff]
    %v3897 = vsel %vm79, %v3833, 0.0
    %3898 = vadd.xlane.f32.xlu0 %v3897
    %v3899 = vpop.xlane.xlu0 %3898
    %v3900 = vsel %vm79, %v3834, 0.0
    %3901 = vadd.xlane.f32.xlu0 %v3900
    %v3902 = vpop.xlane.xlu0 %3901
    %v3903 = vsel %vm79, %v3835, 0.0
    %3904 = vadd.xlane.f32.xlu0 %v3903
    %v3905 = vpop.xlane.xlu0 %3904
    %v3906 = vsel %vm79, %v3836, 0.0
    %3907 = vadd.xlane.f32.xlu0 %v3906
    %v3908 = vpop.xlane.xlu0 %3907
    %v3909 = vsel %vm79, %v3837, 0.0
    %3910 = vadd.xlane.f32.xlu0 %v3909
    %v3911 = vpop.xlane.xlu0 %3910
    %v3912 = vsel %vm79, %v3838, 0.0
    %3913 = vadd.xlane.f32.xlu0 %v3912
    %v3914 = vpop.xlane.xlu0 %3913
    %v3915 = vsel %vm79, %v3839, 0.0
    %3916 = vadd.xlane.f32.xlu0 %v3915
    %v3917 = vpop.xlane.xlu0 %3916
    %v3918 = vsel %vm79, %v3840, 0.0
    %3919 = vadd.xlane.f32.xlu0 %v3918
    %v3920 = vpop.xlane.xlu0 %3919
    %v3921 = vsel %vm79, %v3841, 0.0
    %3922 = vadd.xlane.f32.xlu0 %v3921
    %v3923 = vpop.xlane.xlu0 %3922
    %v3924 = vsel %vm79, %v3842, 0.0
    %3925 = vadd.xlane.f32.xlu0 %v3924
    %v3926 = vpop.xlane.xlu0 %3925
    %v3927 = vsel %vm79, %v3843, 0.0
    %3928 = vadd.xlane.f32.xlu0 %v3927
    %v3929 = vpop.xlane.xlu0 %3928
    %v3930 = vsel %vm79, %v3844, 0.0
    %3931 = vadd.xlane.f32.xlu0 %v3930
    %v3932 = vpop.xlane.xlu0 %3931
    %v3933 = vsel %vm79, %v3845, 0.0
    %3934 = vadd.xlane.f32.xlu0 %v3933
    %v3935 = vpop.xlane.xlu0 %3934
    %v3936 = vsel %vm79, %v3846, 0.0
    %3937 = vadd.xlane.f32.xlu0 %v3936
    %v3938 = vpop.xlane.xlu0 %3937
    %v3939 = vsel %vm79, %v3847, 0.0
    %3940 = vadd.xlane.f32.xlu0 %v3939
    %v3941 = vpop.xlane.xlu0 %3940
    %v3942 = vsel %vm79, %v3848, 0.0
    %3943 = vadd.xlane.f32.xlu0 %v3942
    %v3944 = vpop.xlane.xlu0 %3943
    %v3945 = vsel %vm79, %v3849, 0.0
    %3946 = vadd.xlane.f32.xlu0 %v3945
    %v3947 = vpop.xlane.xlu0 %3946
    %v3948 = vsel %vm79, %v3850, 0.0
    %3949 = vadd.xlane.f32.xlu0 %v3948
    %v3950 = vpop.xlane.xlu0 %3949
    %v3951 = vsel %vm79, %v3851, 0.0
    %3952 = vadd.xlane.f32.xlu0 %v3951
    %v3953 = vpop.xlane.xlu0 %3952
    %v3954 = vsel %vm79, %v3852, 0.0
    %3955 = vadd.xlane.f32.xlu0 %v3954
    %v3956 = vpop.xlane.xlu0 %3955
    %v3957 = vsel %vm79, %v3853, 0.0
    %3958 = vadd.xlane.f32.xlu0 %v3957
    %v3959 = vpop.xlane.xlu0 %3958
    %v3960 = vsel %vm79, %v3854, 0.0
    %3961 = vadd.xlane.f32.xlu0 %v3960
    %v3962 = vpop.xlane.xlu0 %3961
    %v3963 = vsel %vm79, %v3855, 0.0
    %3964 = vadd.xlane.f32.xlu0 %v3963
    %v3965 = vpop.xlane.xlu0 %3964
    %v3966 = vsel %vm79, %v3856, 0.0
    %3967 = vadd.xlane.f32.xlu0 %v3966
    %v3968 = vpop.xlane.xlu0 %3967
    %v3969 = vsel %vm79, %v3857, 0.0
    %3970 = vadd.xlane.f32.xlu0 %v3969
    %v3971 = vpop.xlane.xlu0 %3970
    %v3972 = vsel %vm79, %v3858, 0.0
    %3973 = vadd.xlane.f32.xlu0 %v3972
    %v3974 = vpop.xlane.xlu0 %3973
    %v3975 = vsel %vm79, %v3859, 0.0
    %3976 = vadd.xlane.f32.xlu0 %v3975
    %v3977 = vpop.xlane.xlu0 %3976
    %v3978 = vsel %vm79, %v3860, 0.0
    %3979 = vadd.xlane.f32.xlu0 %v3978
    %v3980 = vpop.xlane.xlu0 %3979
    %v3981 = vsel %vm79, %v3861, 0.0
    %3982 = vadd.xlane.f32.xlu0 %v3981
    %v3983 = vpop.xlane.xlu0 %3982
    %v3984 = vsel %vm79, %v3862, 0.0
    %3985 = vadd.xlane.f32.xlu0 %v3984
    %v3986 = vpop.xlane.xlu0 %3985
    %v3987 = vsel %vm79, %v3863, 0.0
    %3988 = vadd.xlane.f32.xlu0 %v3987
    %v3989 = vpop.xlane.xlu0 %3988
    %v3990 = vsel %vm79, %v3864, 0.0
    %3991 = vadd.xlane.f32.xlu0 %v3990
    %v3992 = vpop.xlane.xlu0 %3991
    %v3993 = vsel %vm79, %v3865, 0.0
    %3994 = vadd.xlane.f32.xlu0 %v3993
    %v3995 = vpop.xlane.xlu0 %3994
    %v3996 = vsel %vm79, %v3866, 0.0
    %3997 = vadd.xlane.f32.xlu0 %v3996
    %v3998 = vpop.xlane.xlu0 %3997
    %v3999 = vsel %vm79, %v3867, 0.0
    %4000 = vadd.xlane.f32.xlu0 %v3999
    %v4001 = vpop.xlane.xlu0 %4000
    %v4002 = vsel %vm79, %v3868, 0.0
    %4003 = vadd.xlane.f32.xlu0 %v4002
    %v4004 = vpop.xlane.xlu0 %4003
    %v4005 = vsel %vm79, %v3869, 0.0
    %4006 = vadd.xlane.f32.xlu0 %v4005
    %v4007 = vpop.xlane.xlu0 %4006
    %v4008 = vsel %vm79, %v3870, 0.0
    %4009 = vadd.xlane.f32.xlu0 %v4008
    %v4010 = vpop.xlane.xlu0 %4009
    %v4011 = vsel %vm79, %v3871, 0.0
    %4012 = vadd.xlane.f32.xlu0 %v4011
    %v4013 = vpop.xlane.xlu0 %4012
    %v4014 = vsel %vm79, %v3872, 0.0
    %4015 = vadd.xlane.f32.xlu0 %v4014
    %v4016 = vpop.xlane.xlu0 %4015
    %v4017 = vsel %vm79, %v3873, 0.0
    %4018 = vadd.xlane.f32.xlu0 %v4017
    %v4019 = vpop.xlane.xlu0 %4018
    %v4020 = vsel %vm79, %v3874, 0.0
    %4021 = vadd.xlane.f32.xlu0 %v4020
    %v4022 = vpop.xlane.xlu0 %4021
    %v4023 = vsel %vm79, %v3875, 0.0
    %4024 = vadd.xlane.f32.xlu0 %v4023
    %v4025 = vpop.xlane.xlu0 %4024
    %v4026 = vsel %vm79, %v3876, 0.0
    %4027 = vadd.xlane.f32.xlu0 %v4026
    %v4028 = vpop.xlane.xlu0 %4027
    %v4029 = vsel %vm79, %v3877, 0.0
    %4030 = vadd.xlane.f32.xlu0 %v4029
    %v4031 = vpop.xlane.xlu0 %4030
    %v4032 = vsel %vm79, %v3878, 0.0
    %4033 = vadd.xlane.f32.xlu0 %v4032
    %v4034 = vpop.xlane.xlu0 %4033
    %v4035 = vsel %vm79, %v3879, 0.0
    %4036 = vadd.xlane.f32.xlu0 %v4035
    %v4037 = vpop.xlane.xlu0 %4036
    %v4038 = vsel %vm79, %v3880, 0.0
    %4039 = vadd.xlane.f32.xlu0 %v4038
    %v4040 = vpop.xlane.xlu0 %4039
    %v4041 = vsel %vm79, %v3881, 0.0
    %4042 = vadd.xlane.f32.xlu0 %v4041
    %v4043 = vpop.xlane.xlu0 %4042
    %v4044 = vsel %vm79, %v3882, 0.0
    %4045 = vadd.xlane.f32.xlu0 %v4044
    %v4046 = vpop.xlane.xlu0 %4045
    %v4047 = vsel %vm79, %v3883, 0.0
    %4048 = vadd.xlane.f32.xlu0 %v4047
    %v4049 = vpop.xlane.xlu0 %4048
    %v4050 = vsel %vm79, %v3884, 0.0
    %4051 = vadd.xlane.f32.xlu0 %v4050
    %v4052 = vpop.xlane.xlu0 %4051
    %v4053 = vsel %vm79, %v3885, 0.0
    %4054 = vadd.xlane.f32.xlu0 %v4053
    %v4055 = vpop.xlane.xlu0 %4054
    %v4056 = vsel %vm79, %v3886, 0.0
    %4057 = vadd.xlane.f32.xlu0 %v4056
    %v4058 = vpop.xlane.xlu0 %4057
    %v4059 = vsel %vm79, %v3887, 0.0
    %4060 = vadd.xlane.f32.xlu0 %v4059
    %v4061 = vpop.xlane.xlu0 %4060
    %v4062 = vsel %vm79, %v3888, 0.0
    %4063 = vadd.xlane.f32.xlu0 %v4062
    %v4064 = vpop.xlane.xlu0 %4063
    %v4065 = vsel %vm79, %v3889, 0.0
    %4066 = vadd.xlane.f32.xlu0 %v4065
    %v4067 = vpop.xlane.xlu0 %4066
    %v4068 = vsel %vm79, %v3890, 0.0
    %4069 = vadd.xlane.f32.xlu0 %v4068
    %v4070 = vpop.xlane.xlu0 %4069
    %v4071 = vsel %vm79, %v3891, 0.0
    %4072 = vadd.xlane.f32.xlu0 %v4071
    %v4073 = vpop.xlane.xlu0 %4072
    %v4074 = vsel %vm79, %v3892, 0.0
    %4075 = vadd.xlane.f32.xlu0 %v4074
    %v4076 = vpop.xlane.xlu0 %4075
    %v4077 = vsel %vm79, %v3893, 0.0
    %4078 = vadd.xlane.f32.xlu0 %v4077
    %v4079 = vpop.xlane.xlu0 %4078
    %v4080 = vsel %vm79, %v3894, 0.0
    %4081 = vadd.xlane.f32.xlu0 %v4080
    %v4082 = vpop.xlane.xlu0 %4081
    %v4083 = vsel %vm79, %v3895, 0.0
    %4084 = vadd.xlane.f32.xlu0 %v4083
    %v4085 = vpop.xlane.xlu0 %4084
    %v4086 = vsel %vm79, %v3896, 0.0
    %4087 = vadd.xlane.f32.xlu0 %v4086
    %v4088 = vpop.xlane.xlu0 %4087
    %v4089 = vmul.f32 %v3899, 0.020408163
    %v4090 = vmul.f32 %v3902, 0.020408163
    %v4091 = vmul.f32 %v3905, 0.020408163
    %v4092 = vmul.f32 %v3908, 0.020408163
    %v4093 = vmul.f32 %v3911, 0.020408163
    %v4094 = vmul.f32 %v3914, 0.020408163
    %v4095 = vmul.f32 %v3917, 0.020408163
    %v4096 = vmul.f32 %v3920, 0.020408163
    %v4097 = vmul.f32 %v3923, 0.020408163
    %v4098 = vmul.f32 %v3926, 0.020408163
    %v4099 = vmul.f32 %v3929, 0.020408163
    %v4100 = vmul.f32 %v3932, 0.020408163
    %v4101 = vmul.f32 %v3935, 0.020408163
    %v4102 = vmul.f32 %v3938, 0.020408163
    %v4103 = vmul.f32 %v3941, 0.020408163
    %v4104 = vmul.f32 %v3944, 0.020408163
    %v4105 = vmul.f32 %v3947, 0.020408163
    %v4106 = vmul.f32 %v3950, 0.020408163
    %v4107 = vmul.f32 %v3953, 0.020408163
    %v4108 = vmul.f32 %v3956, 0.020408163
    %v4109 = vmul.f32 %v3959, 0.020408163
    %v4110 = vmul.f32 %v3962, 0.020408163
    %v4111 = vmul.f32 %v3965, 0.020408163
    %v4112 = vmul.f32 %v3968, 0.020408163
    %v4113 = vmul.f32 %v3971, 0.020408163
    %v4114 = vmul.f32 %v3974, 0.020408163
    %v4115 = vmul.f32 %v3977, 0.020408163
    %v4116 = vmul.f32 %v3980, 0.020408163
    %v4117 = vmul.f32 %v3983, 0.020408163
    %v4118 = vmul.f32 %v3986, 0.020408163
    %v4119 = vmul.f32 %v3989, 0.020408163
    %v4120 = vmul.f32 %v3992, 0.020408163
    %v4121 = vmul.f32 %v3995, 0.020408163
    %v4122 = vmul.f32 %v3998, 0.020408163
    %v4123 = vmul.f32 %v4001, 0.020408163
    %v4124 = vmul.f32 %v4004, 0.020408163
    %v4125 = vmul.f32 %v4007, 0.020408163
    %v4126 = vmul.f32 %v4010, 0.020408163
    %v4127 = vmul.f32 %v4013, 0.020408163
    %v4128 = vmul.f32 %v4016, 0.020408163
    %v4129 = vmul.f32 %v4019, 0.020408163
    %v4130 = vmul.f32 %v4022, 0.020408163
    %v4131 = vmul.f32 %v4025, 0.020408163
    %v4132 = vmul.f32 %v4028, 0.020408163
    %v4133 = vmul.f32 %v4031, 0.020408163
    %v4134 = vmul.f32 %v4034, 0.020408163
    %v4135 = vmul.f32 %v4037, 0.020408163
    %v4136 = vmul.f32 %v4040, 0.020408163
    %v4137 = vmul.f32 %v4043, 0.020408163
    %v4138 = vmul.f32 %v4046, 0.020408163
    %v4139 = vmul.f32 %v4049, 0.020408163
    %v4140 = vmul.f32 %v4052, 0.020408163
    %v4141 = vmul.f32 %v4055, 0.020408163
    %v4142 = vmul.f32 %v4058, 0.020408163
    %v4143 = vmul.f32 %v4061, 0.020408163
    %v4144 = vmul.f32 %v4064, 0.020408163
    %v4145 = vmul.f32 %v4067, 0.020408163
    %v4146 = vmul.f32 %v4070, 0.020408163
    %v4147 = vmul.f32 %v4073, 0.020408163
    %v4148 = vmul.f32 %v4076, 0.020408163
    %v4149 = vmul.f32 %v4079, 0.020408163
    %v4150 = vmul.f32 %v4082, 0.020408163
    %v4151 = vmul.f32 %v4085, 0.020408163
    %v4152 = vmul.f32 %v4088, 0.020408163
    %v4218 = vunpack.c.l.s4 269488144
    %v4219 = vunpack.c.0.s8 %v4218
    %v4220 = vlaneseq
    %v4221 = vshrl.u32 %v4220, 7
    %v4222 = vsub.s32 %v4219, %v4221
    %v4223 = vrot.slane %v4089, %v4222
    %v4225 = vunpack.c.l.s4 842150450
    %v4226 = vunpack.c.0.s8 %v4225
    %v4227 = vlaneseq
    %v4228 = vshrl.u32 %v4227, 7
    %v4229 = vsub.s32 %v4226, %v4228
    %v4230 = vrot.slane %v4089, %v4229
    %v4232 = vunpack.c.l.s4 1414812756
    %v4233 = vunpack.c.0.s8 %v4232
    %v4234 = vlaneseq
    %v4235 = vshrl.u32 %v4234, 7
    %v4236 = vsub.s32 %v4233, %v4235
    %v4237 = vrot.slane %v4089, %v4236
    %v4239 = vunpack.c.l.s4 1987475062
    %v4240 = vunpack.c.0.s8 %v4239
    %v4241 = vlaneseq
    %v4242 = vshrl.u32 %v4241, 7
    %v4243 = vsub.s32 %v4240, %v4242
    %v4244 = vrot.slane %v4089, %v4243
    %v4246 = vunpack.c.l.s4 269488144
    %v4247 = vunpack.c.0.s8 %v4246
    %v4248 = vlaneseq
    %v4249 = vshrl.u32 %v4248, 7
    %v4250 = vsub.s32 %v4247, %v4249
    %v4251 = vrot.slane %v4090, %v4250
    %v4253 = vunpack.c.l.s4 842150450
    %v4254 = vunpack.c.0.s8 %v4253
    %v4255 = vlaneseq
    %v4256 = vshrl.u32 %v4255, 7
    %v4257 = vsub.s32 %v4254, %v4256
    %v4258 = vrot.slane %v4090, %v4257
    %v4260 = vunpack.c.l.s4 1414812756
    %v4261 = vunpack.c.0.s8 %v4260
    %v4262 = vlaneseq
    %v4263 = vshrl.u32 %v4262, 7
    %v4264 = vsub.s32 %v4261, %v4263
    %v4265 = vrot.slane %v4090, %v4264
    %v4267 = vunpack.c.l.s4 1987475062
    %v4268 = vunpack.c.0.s8 %v4267
    %v4269 = vlaneseq
    %v4270 = vshrl.u32 %v4269, 7
    %v4271 = vsub.s32 %v4268, %v4270
    %v4272 = vrot.slane %v4090, %v4271
    %v4274 = vunpack.c.l.s4 269488144
    %v4275 = vunpack.c.0.s8 %v4274
    %v4276 = vlaneseq
    %v4277 = vshrl.u32 %v4276, 7
    %v4278 = vsub.s32 %v4275, %v4277
    %v4279 = vrot.slane %v4091, %v4278
    %v4281 = vunpack.c.l.s4 842150450
    %v4282 = vunpack.c.0.s8 %v4281
    %v4283 = vlaneseq
    %v4284 = vshrl.u32 %v4283, 7
    %v4285 = vsub.s32 %v4282, %v4284
    %v4286 = vrot.slane %v4091, %v4285
    %v4288 = vunpack.c.l.s4 1414812756
    %v4289 = vunpack.c.0.s8 %v4288
    %v4290 = vlaneseq
    %v4291 = vshrl.u32 %v4290, 7
    %v4292 = vsub.s32 %v4289, %v4291
    %v4293 = vrot.slane %v4091, %v4292
    %v4295 = vunpack.c.l.s4 1987475062
    %v4296 = vunpack.c.0.s8 %v4295
    %v4297 = vlaneseq
    %v4298 = vshrl.u32 %v4297, 7
    %v4299 = vsub.s32 %v4296, %v4298
    %v4300 = vrot.slane %v4091, %v4299
    %v4302 = vunpack.c.l.s4 269488144
    %v4303 = vunpack.c.0.s8 %v4302
    %v4304 = vlaneseq
    %v4305 = vshrl.u32 %v4304, 7
    %v4306 = vsub.s32 %v4303, %v4305
    %v4307 = vrot.slane %v4092, %v4306
    %v4309 = vunpack.c.l.s4 842150450
    %v4310 = vunpack.c.0.s8 %v4309
    %v4311 = vlaneseq
    %v4312 = vshrl.u32 %v4311, 7
    %v4313 = vsub.s32 %v4310, %v4312
    %v4314 = vrot.slane %v4092, %v4313
    %v4316 = vunpack.c.l.s4 1414812756
    %v4317 = vunpack.c.0.s8 %v4316
    %v4318 = vlaneseq
    %v4319 = vshrl.u32 %v4318, 7
    %v4320 = vsub.s32 %v4317, %v4319
    %v4321 = vrot.slane %v4092, %v4320
    %v4323 = vunpack.c.l.s4 1987475062
    %v4324 = vunpack.c.0.s8 %v4323
    %v4325 = vlaneseq
    %v4326 = vshrl.u32 %v4325, 7
    %v4327 = vsub.s32 %v4324, %v4326
    %v4328 = vrot.slane %v4092, %v4327
    %v4330 = vunpack.c.l.s4 269488144
    %v4331 = vunpack.c.0.s8 %v4330
    %v4332 = vlaneseq
    %v4333 = vshrl.u32 %v4332, 7
    %v4334 = vsub.s32 %v4331, %v4333
    %v4335 = vrot.slane %v4093, %v4334
    %v4337 = vunpack.c.l.s4 842150450
    %v4338 = vunpack.c.0.s8 %v4337
    %v4339 = vlaneseq
    %v4340 = vshrl.u32 %v4339, 7
    %v4341 = vsub.s32 %v4338, %v4340
    %v4342 = vrot.slane %v4093, %v4341
    %v4344 = vunpack.c.l.s4 1414812756
    %v4345 = vunpack.c.0.s8 %v4344
    %v4346 = vlaneseq
    %v4347 = vshrl.u32 %v4346, 7
    %v4348 = vsub.s32 %v4345, %v4347
    %v4349 = vrot.slane %v4093, %v4348
    %v4351 = vunpack.c.l.s4 1987475062
    %v4352 = vunpack.c.0.s8 %v4351
    %v4353 = vlaneseq
    %v4354 = vshrl.u32 %v4353, 7
    %v4355 = vsub.s32 %v4352, %v4354
    %v4356 = vrot.slane %v4093, %v4355
    %v4358 = vunpack.c.l.s4 269488144
    %v4359 = vunpack.c.0.s8 %v4358
    %v4360 = vlaneseq
    %v4361 = vshrl.u32 %v4360, 7
    %v4362 = vsub.s32 %v4359, %v4361
    %v4363 = vrot.slane %v4094, %v4362
    %v4365 = vunpack.c.l.s4 842150450
    %v4366 = vunpack.c.0.s8 %v4365
    %v4367 = vlaneseq
    %v4368 = vshrl.u32 %v4367, 7
    %v4369 = vsub.s32 %v4366, %v4368
    %v4370 = vrot.slane %v4094, %v4369
    %v4372 = vunpack.c.l.s4 1414812756
    %v4373 = vunpack.c.0.s8 %v4372
    %v4374 = vlaneseq
    %v4375 = vshrl.u32 %v4374, 7
    %v4376 = vsub.s32 %v4373, %v4375
    %v4377 = vrot.slane %v4094, %v4376
    %v4379 = vunpack.c.l.s4 1987475062
    %v4380 = vunpack.c.0.s8 %v4379
    %v4381 = vlaneseq
    %v4382 = vshrl.u32 %v4381, 7
    %v4383 = vsub.s32 %v4380, %v4382
    %v4384 = vrot.slane %v4094, %v4383
    %v4386 = vunpack.c.l.s4 269488144
    %v4387 = vunpack.c.0.s8 %v4386
    %v4388 = vlaneseq
    %v4389 = vshrl.u32 %v4388, 7
    %v4390 = vsub.s32 %v4387, %v4389
    %v4391 = vrot.slane %v4095, %v4390
    %v4393 = vunpack.c.l.s4 842150450
    %v4394 = vunpack.c.0.s8 %v4393
    %v4395 = vlaneseq
    %v4396 = vshrl.u32 %v4395, 7
    %v4397 = vsub.s32 %v4394, %v4396
    %v4398 = vrot.slane %v4095, %v4397
    %v4400 = vunpack.c.l.s4 1414812756
    %v4401 = vunpack.c.0.s8 %v4400
    %v4402 = vlaneseq
    %v4403 = vshrl.u32 %v4402, 7
    %v4404 = vsub.s32 %v4401, %v4403
    %v4405 = vrot.slane %v4095, %v4404
    %v4407 = vunpack.c.l.s4 1987475062
    %v4408 = vunpack.c.0.s8 %v4407
    %v4409 = vlaneseq
    %v4410 = vshrl.u32 %v4409, 7
    %v4411 = vsub.s32 %v4408, %v4410
    %v4412 = vrot.slane %v4095, %v4411
    %v4414 = vunpack.c.l.s4 269488144
    %v4415 = vunpack.c.0.s8 %v4414
    %v4416 = vlaneseq
    %v4417 = vshrl.u32 %v4416, 7
    %v4418 = vsub.s32 %v4415, %v4417
    %v4419 = vrot.slane %v4096, %v4418
    %v4421 = vunpack.c.l.s4 842150450
    %v4422 = vunpack.c.0.s8 %v4421
    %v4423 = vlaneseq
    %v4424 = vshrl.u32 %v4423, 7
    %v4425 = vsub.s32 %v4422, %v4424
    %v4426 = vrot.slane %v4096, %v4425
    %v4428 = vunpack.c.l.s4 1414812756
    %v4429 = vunpack.c.0.s8 %v4428
    %v4430 = vlaneseq
    %v4431 = vshrl.u32 %v4430, 7
    %v4432 = vsub.s32 %v4429, %v4431
    %v4433 = vrot.slane %v4096, %v4432
    %v4435 = vunpack.c.l.s4 1987475062
    %v4436 = vunpack.c.0.s8 %v4435
    %v4437 = vlaneseq
    %v4438 = vshrl.u32 %v4437, 7
    %v4439 = vsub.s32 %v4436, %v4438
    %v4440 = vrot.slane %v4096, %v4439
    %v4442 = vunpack.c.l.s4 269488144
    %v4443 = vunpack.c.0.s8 %v4442
    %v4444 = vlaneseq
    %v4445 = vshrl.u32 %v4444, 7
    %v4446 = vsub.s32 %v4443, %v4445
    %v4447 = vrot.slane %v4097, %v4446
    %v4449 = vunpack.c.l.s4 842150450
    %v4450 = vunpack.c.0.s8 %v4449
    %v4451 = vlaneseq
    %v4452 = vshrl.u32 %v4451, 7
    %v4453 = vsub.s32 %v4450, %v4452
    %v4454 = vrot.slane %v4097, %v4453
    %v4456 = vunpack.c.l.s4 1414812756
    %v4457 = vunpack.c.0.s8 %v4456
    %v4458 = vlaneseq
    %v4459 = vshrl.u32 %v4458, 7
    %v4460 = vsub.s32 %v4457, %v4459
    %v4461 = vrot.slane %v4097, %v4460
    %v4463 = vunpack.c.l.s4 1987475062
    %v4464 = vunpack.c.0.s8 %v4463
    %v4465 = vlaneseq
    %v4466 = vshrl.u32 %v4465, 7
    %v4467 = vsub.s32 %v4464, %v4466
    %v4468 = vrot.slane %v4097, %v4467
    %v4470 = vunpack.c.l.s4 269488144
    %v4471 = vunpack.c.0.s8 %v4470
    %v4472 = vlaneseq
    %v4473 = vshrl.u32 %v4472, 7
    %v4474 = vsub.s32 %v4471, %v4473
    %v4475 = vrot.slane %v4098, %v4474
    %v4477 = vunpack.c.l.s4 842150450
    %v4478 = vunpack.c.0.s8 %v4477
    %v4479 = vlaneseq
    %v4480 = vshrl.u32 %v4479, 7
    %v4481 = vsub.s32 %v4478, %v4480
    %v4482 = vrot.slane %v4098, %v4481
    %v4484 = vunpack.c.l.s4 1414812756
    %v4485 = vunpack.c.0.s8 %v4484
    %v4486 = vlaneseq
    %v4487 = vshrl.u32 %v4486, 7
    %v4488 = vsub.s32 %v4485, %v4487
    %v4489 = vrot.slane %v4098, %v4488
    %v4491 = vunpack.c.l.s4 1987475062
    %v4492 = vunpack.c.0.s8 %v4491
    %v4493 = vlaneseq
    %v4494 = vshrl.u32 %v4493, 7
    %v4495 = vsub.s32 %v4492, %v4494
    %v4496 = vrot.slane %v4098, %v4495
    %v4498 = vunpack.c.l.s4 269488144
    %v4499 = vunpack.c.0.s8 %v4498
    %v4500 = vlaneseq
    %v4501 = vshrl.u32 %v4500, 7
    %v4502 = vsub.s32 %v4499, %v4501
    %v4503 = vrot.slane %v4099, %v4502
    %v4505 = vunpack.c.l.s4 842150450
    %v4506 = vunpack.c.0.s8 %v4505
    %v4507 = vlaneseq
    %v4508 = vshrl.u32 %v4507, 7
    %v4509 = vsub.s32 %v4506, %v4508
    %v4510 = vrot.slane %v4099, %v4509
    %v4512 = vunpack.c.l.s4 1414812756
    %v4513 = vunpack.c.0.s8 %v4512
    %v4514 = vlaneseq
    %v4515 = vshrl.u32 %v4514, 7
    %v4516 = vsub.s32 %v4513, %v4515
    %v4517 = vrot.slane %v4099, %v4516
    %v4519 = vunpack.c.l.s4 1987475062
    %v4520 = vunpack.c.0.s8 %v4519
    %v4521 = vlaneseq
    %v4522 = vshrl.u32 %v4521, 7
    %v4523 = vsub.s32 %v4520, %v4522
    %v4524 = vrot.slane %v4099, %v4523
    %v4526 = vunpack.c.l.s4 269488144
    %v4527 = vunpack.c.0.s8 %v4526
    %v4528 = vlaneseq
    %v4529 = vshrl.u32 %v4528, 7
    %v4530 = vsub.s32 %v4527, %v4529
    %v4531 = vrot.slane %v4100, %v4530
    %v4533 = vunpack.c.l.s4 842150450
    %v4534 = vunpack.c.0.s8 %v4533
    %v4535 = vlaneseq
    %v4536 = vshrl.u32 %v4535, 7
    %v4537 = vsub.s32 %v4534, %v4536
    %v4538 = vrot.slane %v4100, %v4537
    %v4540 = vunpack.c.l.s4 1414812756
    %v4541 = vunpack.c.0.s8 %v4540
    %v4542 = vlaneseq
    %v4543 = vshrl.u32 %v4542, 7
    %v4544 = vsub.s32 %v4541, %v4543
    %v4545 = vrot.slane %v4100, %v4544
    %v4547 = vunpack.c.l.s4 1987475062
    %v4548 = vunpack.c.0.s8 %v4547
    %v4549 = vlaneseq
    %v4550 = vshrl.u32 %v4549, 7
    %v4551 = vsub.s32 %v4548, %v4550
    %v4552 = vrot.slane %v4100, %v4551
    %v4554 = vunpack.c.l.s4 269488144
    %v4555 = vunpack.c.0.s8 %v4554
    %v4556 = vlaneseq
    %v4557 = vshrl.u32 %v4556, 7
    %v4558 = vsub.s32 %v4555, %v4557
    %v4559 = vrot.slane %v4101, %v4558
    %v4561 = vunpack.c.l.s4 842150450
    %v4562 = vunpack.c.0.s8 %v4561
    %v4563 = vlaneseq
    %v4564 = vshrl.u32 %v4563, 7
    %v4565 = vsub.s32 %v4562, %v4564
    %v4566 = vrot.slane %v4101, %v4565
    %v4568 = vunpack.c.l.s4 1414812756
    %v4569 = vunpack.c.0.s8 %v4568
    %v4570 = vlaneseq
    %v4571 = vshrl.u32 %v4570, 7
    %v4572 = vsub.s32 %v4569, %v4571
    %v4573 = vrot.slane %v4101, %v4572
    %v4575 = vunpack.c.l.s4 1987475062
    %v4576 = vunpack.c.0.s8 %v4575
    %v4577 = vlaneseq
    %v4578 = vshrl.u32 %v4577, 7
    %v4579 = vsub.s32 %v4576, %v4578
    %v4580 = vrot.slane %v4101, %v4579
    %v4582 = vunpack.c.l.s4 269488144
    %v4583 = vunpack.c.0.s8 %v4582
    %v4584 = vlaneseq
    %v4585 = vshrl.u32 %v4584, 7
    %v4586 = vsub.s32 %v4583, %v4585
    %v4587 = vrot.slane %v4102, %v4586
    %v4589 = vunpack.c.l.s4 842150450
    %v4590 = vunpack.c.0.s8 %v4589
    %v4591 = vlaneseq
    %v4592 = vshrl.u32 %v4591, 7
    %v4593 = vsub.s32 %v4590, %v4592
    %v4594 = vrot.slane %v4102, %v4593
    %v4596 = vunpack.c.l.s4 1414812756
    %v4597 = vunpack.c.0.s8 %v4596
    %v4598 = vlaneseq
    %v4599 = vshrl.u32 %v4598, 7
    %v4600 = vsub.s32 %v4597, %v4599
    %v4601 = vrot.slane %v4102, %v4600
    %v4603 = vunpack.c.l.s4 1987475062
    %v4604 = vunpack.c.0.s8 %v4603
    %v4605 = vlaneseq
    %v4606 = vshrl.u32 %v4605, 7
    %v4607 = vsub.s32 %v4604, %v4606
    %v4608 = vrot.slane %v4102, %v4607
    %v4610 = vunpack.c.l.s4 269488144
    %v4611 = vunpack.c.0.s8 %v4610
    %v4612 = vlaneseq
    %v4613 = vshrl.u32 %v4612, 7
    %v4614 = vsub.s32 %v4611, %v4613
    %v4615 = vrot.slane %v4103, %v4614
    %v4617 = vunpack.c.l.s4 842150450
    %v4618 = vunpack.c.0.s8 %v4617
    %v4619 = vlaneseq
    %v4620 = vshrl.u32 %v4619, 7
    %v4621 = vsub.s32 %v4618, %v4620
    %v4622 = vrot.slane %v4103, %v4621
    %v4624 = vunpack.c.l.s4 1414812756
    %v4625 = vunpack.c.0.s8 %v4624
    %v4626 = vlaneseq
    %v4627 = vshrl.u32 %v4626, 7
    %v4628 = vsub.s32 %v4625, %v4627
    %v4629 = vrot.slane %v4103, %v4628
    %v4631 = vunpack.c.l.s4 1987475062
    %v4632 = vunpack.c.0.s8 %v4631
    %v4633 = vlaneseq
    %v4634 = vshrl.u32 %v4633, 7
    %v4635 = vsub.s32 %v4632, %v4634
    %v4636 = vrot.slane %v4103, %v4635
    %v4638 = vunpack.c.l.s4 269488144
    %v4639 = vunpack.c.0.s8 %v4638
    %v4640 = vlaneseq
    %v4641 = vshrl.u32 %v4640, 7
    %v4642 = vsub.s32 %v4639, %v4641
    %v4643 = vrot.slane %v4104, %v4642
    %v4645 = vunpack.c.l.s4 842150450
    %v4646 = vunpack.c.0.s8 %v4645
    %v4647 = vlaneseq
    %v4648 = vshrl.u32 %v4647, 7
    %v4649 = vsub.s32 %v4646, %v4648
    %v4650 = vrot.slane %v4104, %v4649
    %v4652 = vunpack.c.l.s4 1414812756
    %v4653 = vunpack.c.0.s8 %v4652
    %v4654 = vlaneseq
    %v4655 = vshrl.u32 %v4654, 7
    %v4656 = vsub.s32 %v4653, %v4655
    %v4657 = vrot.slane %v4104, %v4656
    %v4659 = vunpack.c.l.s4 1987475062
    %v4660 = vunpack.c.0.s8 %v4659
    %v4661 = vlaneseq
    %v4662 = vshrl.u32 %v4661, 7
    %v4663 = vsub.s32 %v4660, %v4662
    %v4664 = vrot.slane %v4104, %v4663
    %v4666 = vunpack.c.l.s4 269488144
    %v4667 = vunpack.c.0.s8 %v4666
    %v4668 = vlaneseq
    %v4669 = vshrl.u32 %v4668, 7
    %v4670 = vsub.s32 %v4667, %v4669
    %v4671 = vrot.slane %v4105, %v4670
    %v4673 = vunpack.c.l.s4 842150450
    %v4674 = vunpack.c.0.s8 %v4673
    %v4675 = vlaneseq
    %v4676 = vshrl.u32 %v4675, 7
    %v4677 = vsub.s32 %v4674, %v4676
    %v4678 = vrot.slane %v4105, %v4677
    %v4680 = vunpack.c.l.s4 1414812756
    %v4681 = vunpack.c.0.s8 %v4680
    %v4682 = vlaneseq
    %v4683 = vshrl.u32 %v4682, 7
    %v4684 = vsub.s32 %v4681, %v4683
    %v4685 = vrot.slane %v4105, %v4684
    %v4687 = vunpack.c.l.s4 1987475062
    %v4688 = vunpack.c.0.s8 %v4687
    %v4689 = vlaneseq
    %v4690 = vshrl.u32 %v4689, 7
    %v4691 = vsub.s32 %v4688, %v4690
    %v4692 = vrot.slane %v4105, %v4691
    %v4694 = vunpack.c.l.s4 269488144
    %v4695 = vunpack.c.0.s8 %v4694
    %v4696 = vlaneseq
    %v4697 = vshrl.u32 %v4696, 7
    %v4698 = vsub.s32 %v4695, %v4697
    %v4699 = vrot.slane %v4106, %v4698
    %v4701 = vunpack.c.l.s4 842150450
    %v4702 = vunpack.c.0.s8 %v4701
    %v4703 = vlaneseq
    %v4704 = vshrl.u32 %v4703, 7
    %v4705 = vsub.s32 %v4702, %v4704
    %v4706 = vrot.slane %v4106, %v4705
    %v4708 = vunpack.c.l.s4 1414812756
    %v4709 = vunpack.c.0.s8 %v4708
    %v4710 = vlaneseq
    %v4711 = vshrl.u32 %v4710, 7
    %v4712 = vsub.s32 %v4709, %v4711
    %v4713 = vrot.slane %v4106, %v4712
    %v4715 = vunpack.c.l.s4 1987475062
    %v4716 = vunpack.c.0.s8 %v4715
    %v4717 = vlaneseq
    %v4718 = vshrl.u32 %v4717, 7
    %v4719 = vsub.s32 %v4716, %v4718
    %v4720 = vrot.slane %v4106, %v4719
    %v4722 = vunpack.c.l.s4 269488144
    %v4723 = vunpack.c.0.s8 %v4722
    %v4724 = vlaneseq
    %v4725 = vshrl.u32 %v4724, 7
    %v4726 = vsub.s32 %v4723, %v4725
    %v4727 = vrot.slane %v4107, %v4726
    %v4729 = vunpack.c.l.s4 842150450
    %v4730 = vunpack.c.0.s8 %v4729
    %v4731 = vlaneseq
    %v4732 = vshrl.u32 %v4731, 7
    %v4733 = vsub.s32 %v4730, %v4732
    %v4734 = vrot.slane %v4107, %v4733
    %v4736 = vunpack.c.l.s4 1414812756
    %v4737 = vunpack.c.0.s8 %v4736
    %v4738 = vlaneseq
    %v4739 = vshrl.u32 %v4738, 7
    %v4740 = vsub.s32 %v4737, %v4739
    %v4741 = vrot.slane %v4107, %v4740
    %v4743 = vunpack.c.l.s4 1987475062
    %v4744 = vunpack.c.0.s8 %v4743
    %v4745 = vlaneseq
    %v4746 = vshrl.u32 %v4745, 7
    %v4747 = vsub.s32 %v4744, %v4746
    %v4748 = vrot.slane %v4107, %v4747
    %v4750 = vunpack.c.l.s4 269488144
    %v4751 = vunpack.c.0.s8 %v4750
    %v4752 = vlaneseq
    %v4753 = vshrl.u32 %v4752, 7
    %v4754 = vsub.s32 %v4751, %v4753
    %v4755 = vrot.slane %v4108, %v4754
    %v4757 = vunpack.c.l.s4 842150450
    %v4758 = vunpack.c.0.s8 %v4757
    %v4759 = vlaneseq
    %v4760 = vshrl.u32 %v4759, 7
    %v4761 = vsub.s32 %v4758, %v4760
    %v4762 = vrot.slane %v4108, %v4761
    %v4764 = vunpack.c.l.s4 1414812756
    %v4765 = vunpack.c.0.s8 %v4764
    %v4766 = vlaneseq
    %v4767 = vshrl.u32 %v4766, 7
    %v4768 = vsub.s32 %v4765, %v4767
    %v4769 = vrot.slane %v4108, %v4768
    %v4771 = vunpack.c.l.s4 1987475062
    %v4772 = vunpack.c.0.s8 %v4771
    %v4773 = vlaneseq
    %v4774 = vshrl.u32 %v4773, 7
    %v4775 = vsub.s32 %v4772, %v4774
    %v4776 = vrot.slane %v4108, %v4775
    %v4778 = vunpack.c.l.s4 269488144
    %v4779 = vunpack.c.0.s8 %v4778
    %v4780 = vlaneseq
    %v4781 = vshrl.u32 %v4780, 7
    %v4782 = vsub.s32 %v4779, %v4781
    %v4783 = vrot.slane %v4109, %v4782
    %v4785 = vunpack.c.l.s4 842150450
    %v4786 = vunpack.c.0.s8 %v4785
    %v4787 = vlaneseq
    %v4788 = vshrl.u32 %v4787, 7
    %v4789 = vsub.s32 %v4786, %v4788
    %v4790 = vrot.slane %v4109, %v4789
    %v4792 = vunpack.c.l.s4 1414812756
    %v4793 = vunpack.c.0.s8 %v4792
    %v4794 = vlaneseq
    %v4795 = vshrl.u32 %v4794, 7
    %v4796 = vsub.s32 %v4793, %v4795
    %v4797 = vrot.slane %v4109, %v4796
    %v4799 = vunpack.c.l.s4 1987475062
    %v4800 = vunpack.c.0.s8 %v4799
    %v4801 = vlaneseq
    %v4802 = vshrl.u32 %v4801, 7
    %v4803 = vsub.s32 %v4800, %v4802
    %v4804 = vrot.slane %v4109, %v4803
    %v4806 = vunpack.c.l.s4 269488144
    %v4807 = vunpack.c.0.s8 %v4806
    %v4808 = vlaneseq
    %v4809 = vshrl.u32 %v4808, 7
    %v4810 = vsub.s32 %v4807, %v4809
    %v4811 = vrot.slane %v4110, %v4810
    %v4813 = vunpack.c.l.s4 842150450
    %v4814 = vunpack.c.0.s8 %v4813
    %v4815 = vlaneseq
    %v4816 = vshrl.u32 %v4815, 7
    %v4817 = vsub.s32 %v4814, %v4816
    %v4818 = vrot.slane %v4110, %v4817
    %v4820 = vunpack.c.l.s4 1414812756
    %v4821 = vunpack.c.0.s8 %v4820
    %v4822 = vlaneseq
    %v4823 = vshrl.u32 %v4822, 7
    %v4824 = vsub.s32 %v4821, %v4823
    %v4825 = vrot.slane %v4110, %v4824
    %v4827 = vunpack.c.l.s4 1987475062
    %v4828 = vunpack.c.0.s8 %v4827
    %v4829 = vlaneseq
    %v4830 = vshrl.u32 %v4829, 7
    %v4831 = vsub.s32 %v4828, %v4830
    %v4832 = vrot.slane %v4110, %v4831
    %v4834 = vunpack.c.l.s4 269488144
    %v4835 = vunpack.c.0.s8 %v4834
    %v4836 = vlaneseq
    %v4837 = vshrl.u32 %v4836, 7
    %v4838 = vsub.s32 %v4835, %v4837
    %v4839 = vrot.slane %v4111, %v4838
    %v4841 = vunpack.c.l.s4 842150450
    %v4842 = vunpack.c.0.s8 %v4841
    %v4843 = vlaneseq
    %v4844 = vshrl.u32 %v4843, 7
    %v4845 = vsub.s32 %v4842, %v4844
    %v4846 = vrot.slane %v4111, %v4845
    %v4848 = vunpack.c.l.s4 1414812756
    %v4849 = vunpack.c.0.s8 %v4848
    %v4850 = vlaneseq
    %v4851 = vshrl.u32 %v4850, 7
    %v4852 = vsub.s32 %v4849, %v4851
    %v4853 = vrot.slane %v4111, %v4852
    %v4855 = vunpack.c.l.s4 1987475062
    %v4856 = vunpack.c.0.s8 %v4855
    %v4857 = vlaneseq
    %v4858 = vshrl.u32 %v4857, 7
    %v4859 = vsub.s32 %v4856, %v4858
    %v4860 = vrot.slane %v4111, %v4859
    %v4862 = vunpack.c.l.s4 269488144
    %v4863 = vunpack.c.0.s8 %v4862
    %v4864 = vlaneseq
    %v4865 = vshrl.u32 %v4864, 7
    %v4866 = vsub.s32 %v4863, %v4865
    %v4867 = vrot.slane %v4112, %v4866
    %v4869 = vunpack.c.l.s4 842150450
    %v4870 = vunpack.c.0.s8 %v4869
    %v4871 = vlaneseq
    %v4872 = vshrl.u32 %v4871, 7
    %v4873 = vsub.s32 %v4870, %v4872
    %v4874 = vrot.slane %v4112, %v4873
    %v4876 = vunpack.c.l.s4 1414812756
    %v4877 = vunpack.c.0.s8 %v4876
    %v4878 = vlaneseq
    %v4879 = vshrl.u32 %v4878, 7
    %v4880 = vsub.s32 %v4877, %v4879
    %v4881 = vrot.slane %v4112, %v4880
    %v4883 = vunpack.c.l.s4 1987475062
    %v4884 = vunpack.c.0.s8 %v4883
    %v4885 = vlaneseq
    %v4886 = vshrl.u32 %v4885, 7
    %v4887 = vsub.s32 %v4884, %v4886
    %v4888 = vrot.slane %v4112, %v4887
    %v4890 = vunpack.c.l.s4 269488144
    %v4891 = vunpack.c.0.s8 %v4890
    %v4892 = vlaneseq
    %v4893 = vshrl.u32 %v4892, 7
    %v4894 = vsub.s32 %v4891, %v4893
    %v4895 = vrot.slane %v4113, %v4894
    %v4897 = vunpack.c.l.s4 842150450
    %v4898 = vunpack.c.0.s8 %v4897
    %v4899 = vlaneseq
    %v4900 = vshrl.u32 %v4899, 7
    %v4901 = vsub.s32 %v4898, %v4900
    %v4902 = vrot.slane %v4113, %v4901
    %v4904 = vunpack.c.l.s4 1414812756
    %v4905 = vunpack.c.0.s8 %v4904
    %v4906 = vlaneseq
    %v4907 = vshrl.u32 %v4906, 7
    %v4908 = vsub.s32 %v4905, %v4907
    %v4909 = vrot.slane %v4113, %v4908
    %v4911 = vunpack.c.l.s4 1987475062
    %v4912 = vunpack.c.0.s8 %v4911
    %v4913 = vlaneseq
    %v4914 = vshrl.u32 %v4913, 7
    %v4915 = vsub.s32 %v4912, %v4914
    %v4916 = vrot.slane %v4113, %v4915
    %v4918 = vunpack.c.l.s4 269488144
    %v4919 = vunpack.c.0.s8 %v4918
    %v4920 = vlaneseq
    %v4921 = vshrl.u32 %v4920, 7
    %v4922 = vsub.s32 %v4919, %v4921
    %v4923 = vrot.slane %v4114, %v4922
    %v4925 = vunpack.c.l.s4 842150450
    %v4926 = vunpack.c.0.s8 %v4925
    %v4927 = vlaneseq
    %v4928 = vshrl.u32 %v4927, 7
    %v4929 = vsub.s32 %v4926, %v4928
    %v4930 = vrot.slane %v4114, %v4929
    %v4932 = vunpack.c.l.s4 1414812756
    %v4933 = vunpack.c.0.s8 %v4932
    %v4934 = vlaneseq
    %v4935 = vshrl.u32 %v4934, 7
    %v4936 = vsub.s32 %v4933, %v4935
    %v4937 = vrot.slane %v4114, %v4936
    %v4939 = vunpack.c.l.s4 1987475062
    %v4940 = vunpack.c.0.s8 %v4939
    %v4941 = vlaneseq
    %v4942 = vshrl.u32 %v4941, 7
    %v4943 = vsub.s32 %v4940, %v4942
    %v4944 = vrot.slane %v4114, %v4943
    %v4946 = vunpack.c.l.s4 269488144
    %v4947 = vunpack.c.0.s8 %v4946
    %v4948 = vlaneseq
    %v4949 = vshrl.u32 %v4948, 7
    %v4950 = vsub.s32 %v4947, %v4949
    %v4951 = vrot.slane %v4115, %v4950
    %v4953 = vunpack.c.l.s4 842150450
    %v4954 = vunpack.c.0.s8 %v4953
    %v4955 = vlaneseq
    %v4956 = vshrl.u32 %v4955, 7
    %v4957 = vsub.s32 %v4954, %v4956
    %v4958 = vrot.slane %v4115, %v4957
    %v4960 = vunpack.c.l.s4 1414812756
    %v4961 = vunpack.c.0.s8 %v4960
    %v4962 = vlaneseq
    %v4963 = vshrl.u32 %v4962, 7
    %v4964 = vsub.s32 %v4961, %v4963
    %v4965 = vrot.slane %v4115, %v4964
    %v4967 = vunpack.c.l.s4 1987475062
    %v4968 = vunpack.c.0.s8 %v4967
    %v4969 = vlaneseq
    %v4970 = vshrl.u32 %v4969, 7
    %v4971 = vsub.s32 %v4968, %v4970
    %v4972 = vrot.slane %v4115, %v4971
    %v4974 = vunpack.c.l.s4 269488144
    %v4975 = vunpack.c.0.s8 %v4974
    %v4976 = vlaneseq
    %v4977 = vshrl.u32 %v4976, 7
    %v4978 = vsub.s32 %v4975, %v4977
    %v4979 = vrot.slane %v4116, %v4978
    %v4981 = vunpack.c.l.s4 842150450
    %v4982 = vunpack.c.0.s8 %v4981
    %v4983 = vlaneseq
    %v4984 = vshrl.u32 %v4983, 7
    %v4985 = vsub.s32 %v4982, %v4984
    %v4986 = vrot.slane %v4116, %v4985
    %v4988 = vunpack.c.l.s4 1414812756
    %v4989 = vunpack.c.0.s8 %v4988
    %v4990 = vlaneseq
    %v4991 = vshrl.u32 %v4990, 7
    %v4992 = vsub.s32 %v4989, %v4991
    %v4993 = vrot.slane %v4116, %v4992
    %v4995 = vunpack.c.l.s4 1987475062
    %v4996 = vunpack.c.0.s8 %v4995
    %v4997 = vlaneseq
    %v4998 = vshrl.u32 %v4997, 7
    %v4999 = vsub.s32 %v4996, %v4998
    %v5000 = vrot.slane %v4116, %v4999
    %v5002 = vunpack.c.l.s4 269488144
    %v5003 = vunpack.c.0.s8 %v5002
    %v5004 = vlaneseq
    %v5005 = vshrl.u32 %v5004, 7
    %v5006 = vsub.s32 %v5003, %v5005
    %v5007 = vrot.slane %v4117, %v5006
    %v5009 = vunpack.c.l.s4 842150450
    %v5010 = vunpack.c.0.s8 %v5009
    %v5011 = vlaneseq
    %v5012 = vshrl.u32 %v5011, 7
    %v5013 = vsub.s32 %v5010, %v5012
    %v5014 = vrot.slane %v4117, %v5013
    %v5016 = vunpack.c.l.s4 1414812756
    %v5017 = vunpack.c.0.s8 %v5016
    %v5018 = vlaneseq
    %v5019 = vshrl.u32 %v5018, 7
    %v5020 = vsub.s32 %v5017, %v5019
    %v5021 = vrot.slane %v4117, %v5020
    %v5023 = vunpack.c.l.s4 1987475062
    %v5024 = vunpack.c.0.s8 %v5023
    %v5025 = vlaneseq
    %v5026 = vshrl.u32 %v5025, 7
    %v5027 = vsub.s32 %v5024, %v5026
    %v5028 = vrot.slane %v4117, %v5027
    %v5030 = vunpack.c.l.s4 269488144
    %v5031 = vunpack.c.0.s8 %v5030
    %v5032 = vlaneseq
    %v5033 = vshrl.u32 %v5032, 7
    %v5034 = vsub.s32 %v5031, %v5033
    %v5035 = vrot.slane %v4118, %v5034
    %v5037 = vunpack.c.l.s4 842150450
    %v5038 = vunpack.c.0.s8 %v5037
    %v5039 = vlaneseq
    %v5040 = vshrl.u32 %v5039, 7
    %v5041 = vsub.s32 %v5038, %v5040
    %v5042 = vrot.slane %v4118, %v5041
    %v5044 = vunpack.c.l.s4 1414812756
    %v5045 = vunpack.c.0.s8 %v5044
    %v5046 = vlaneseq
    %v5047 = vshrl.u32 %v5046, 7
    %v5048 = vsub.s32 %v5045, %v5047
    %v5049 = vrot.slane %v4118, %v5048
    %v5051 = vunpack.c.l.s4 1987475062
    %v5052 = vunpack.c.0.s8 %v5051
    %v5053 = vlaneseq
    %v5054 = vshrl.u32 %v5053, 7
    %v5055 = vsub.s32 %v5052, %v5054
    %v5056 = vrot.slane %v4118, %v5055
    %v5058 = vunpack.c.l.s4 269488144
    %v5059 = vunpack.c.0.s8 %v5058
    %v5060 = vlaneseq
    %v5061 = vshrl.u32 %v5060, 7
    %v5062 = vsub.s32 %v5059, %v5061
    %v5063 = vrot.slane %v4119, %v5062
    %v5065 = vunpack.c.l.s4 842150450
    %v5066 = vunpack.c.0.s8 %v5065
    %v5067 = vlaneseq
    %v5068 = vshrl.u32 %v5067, 7
    %v5069 = vsub.s32 %v5066, %v5068
    %v5070 = vrot.slane %v4119, %v5069
    %v5072 = vunpack.c.l.s4 1414812756
    %v5073 = vunpack.c.0.s8 %v5072
    %v5074 = vlaneseq
    %v5075 = vshrl.u32 %v5074, 7
    %v5076 = vsub.s32 %v5073, %v5075
    %v5077 = vrot.slane %v4119, %v5076
    %v5079 = vunpack.c.l.s4 1987475062
    %v5080 = vunpack.c.0.s8 %v5079
    %v5081 = vlaneseq
    %v5082 = vshrl.u32 %v5081, 7
    %v5083 = vsub.s32 %v5080, %v5082
    %v5084 = vrot.slane %v4119, %v5083
    %v5086 = vunpack.c.l.s4 269488144
    %v5087 = vunpack.c.0.s8 %v5086
    %v5088 = vlaneseq
    %v5089 = vshrl.u32 %v5088, 7
    %v5090 = vsub.s32 %v5087, %v5089
    %v5091 = vrot.slane %v4120, %v5090
    %v5093 = vunpack.c.l.s4 842150450
    %v5094 = vunpack.c.0.s8 %v5093
    %v5095 = vlaneseq
    %v5096 = vshrl.u32 %v5095, 7
    %v5097 = vsub.s32 %v5094, %v5096
    %v5098 = vrot.slane %v4120, %v5097
    %v5100 = vunpack.c.l.s4 1414812756
    %v5101 = vunpack.c.0.s8 %v5100
    %v5102 = vlaneseq
    %v5103 = vshrl.u32 %v5102, 7
    %v5104 = vsub.s32 %v5101, %v5103
    %v5105 = vrot.slane %v4120, %v5104
    %v5107 = vunpack.c.l.s4 1987475062
    %v5108 = vunpack.c.0.s8 %v5107
    %v5109 = vlaneseq
    %v5110 = vshrl.u32 %v5109, 7
    %v5111 = vsub.s32 %v5108, %v5110
    %v5112 = vrot.slane %v4120, %v5111
    %v5114 = vunpack.c.l.s4 269488144
    %v5115 = vunpack.c.0.s8 %v5114
    %v5116 = vlaneseq
    %v5117 = vshrl.u32 %v5116, 7
    %v5118 = vsub.s32 %v5115, %v5117
    %v5119 = vrot.slane %v4121, %v5118
    %v5121 = vunpack.c.l.s4 842150450
    %v5122 = vunpack.c.0.s8 %v5121
    %v5123 = vlaneseq
    %v5124 = vshrl.u32 %v5123, 7
    %v5125 = vsub.s32 %v5122, %v5124
    %v5126 = vrot.slane %v4121, %v5125
    %v5128 = vunpack.c.l.s4 1414812756
    %v5129 = vunpack.c.0.s8 %v5128
    %v5130 = vlaneseq
    %v5131 = vshrl.u32 %v5130, 7
    %v5132 = vsub.s32 %v5129, %v5131
    %v5133 = vrot.slane %v4121, %v5132
    %v5135 = vunpack.c.l.s4 1987475062
    %v5136 = vunpack.c.0.s8 %v5135
    %v5137 = vlaneseq
    %v5138 = vshrl.u32 %v5137, 7
    %v5139 = vsub.s32 %v5136, %v5138
    %v5140 = vrot.slane %v4121, %v5139
    %v5142 = vunpack.c.l.s4 269488144
    %v5143 = vunpack.c.0.s8 %v5142
    %v5144 = vlaneseq
    %v5145 = vshrl.u32 %v5144, 7
    %v5146 = vsub.s32 %v5143, %v5145
    %v5147 = vrot.slane %v4122, %v5146
    %v5149 = vunpack.c.l.s4 842150450
    %v5150 = vunpack.c.0.s8 %v5149
    %v5151 = vlaneseq
    %v5152 = vshrl.u32 %v5151, 7
    %v5153 = vsub.s32 %v5150, %v5152
    %v5154 = vrot.slane %v4122, %v5153
    %v5156 = vunpack.c.l.s4 1414812756
    %v5157 = vunpack.c.0.s8 %v5156
    %v5158 = vlaneseq
    %v5159 = vshrl.u32 %v5158, 7
    %v5160 = vsub.s32 %v5157, %v5159
    %v5161 = vrot.slane %v4122, %v5160
    %v5163 = vunpack.c.l.s4 1987475062
    %v5164 = vunpack.c.0.s8 %v5163
    %v5165 = vlaneseq
    %v5166 = vshrl.u32 %v5165, 7
    %v5167 = vsub.s32 %v5164, %v5166
    %v5168 = vrot.slane %v4122, %v5167
    %v5170 = vunpack.c.l.s4 269488144
    %v5171 = vunpack.c.0.s8 %v5170
    %v5172 = vlaneseq
    %v5173 = vshrl.u32 %v5172, 7
    %v5174 = vsub.s32 %v5171, %v5173
    %v5175 = vrot.slane %v4123, %v5174
    %v5177 = vunpack.c.l.s4 842150450
    %v5178 = vunpack.c.0.s8 %v5177
    %v5179 = vlaneseq
    %v5180 = vshrl.u32 %v5179, 7
    %v5181 = vsub.s32 %v5178, %v5180
    %v5182 = vrot.slane %v4123, %v5181
    %v5184 = vunpack.c.l.s4 1414812756
    %v5185 = vunpack.c.0.s8 %v5184
    %v5186 = vlaneseq
    %v5187 = vshrl.u32 %v5186, 7
    %v5188 = vsub.s32 %v5185, %v5187
    %v5189 = vrot.slane %v4123, %v5188
    %v5191 = vunpack.c.l.s4 1987475062
    %v5192 = vunpack.c.0.s8 %v5191
    %v5193 = vlaneseq
    %v5194 = vshrl.u32 %v5193, 7
    %v5195 = vsub.s32 %v5192, %v5194
    %v5196 = vrot.slane %v4123, %v5195
    %v5198 = vunpack.c.l.s4 269488144
    %v5199 = vunpack.c.0.s8 %v5198
    %v5200 = vlaneseq
    %v5201 = vshrl.u32 %v5200, 7
    %v5202 = vsub.s32 %v5199, %v5201
    %v5203 = vrot.slane %v4124, %v5202
    %v5205 = vunpack.c.l.s4 842150450
    %v5206 = vunpack.c.0.s8 %v5205
    %v5207 = vlaneseq
    %v5208 = vshrl.u32 %v5207, 7
    %v5209 = vsub.s32 %v5206, %v5208
    %v5210 = vrot.slane %v4124, %v5209
    %v5212 = vunpack.c.l.s4 1414812756
    %v5213 = vunpack.c.0.s8 %v5212
    %v5214 = vlaneseq
    %v5215 = vshrl.u32 %v5214, 7
    %v5216 = vsub.s32 %v5213, %v5215
    %v5217 = vrot.slane %v4124, %v5216
    %v5219 = vunpack.c.l.s4 1987475062
    %v5220 = vunpack.c.0.s8 %v5219
    %v5221 = vlaneseq
    %v5222 = vshrl.u32 %v5221, 7
    %v5223 = vsub.s32 %v5220, %v5222
    %v5224 = vrot.slane %v4124, %v5223
    %v5226 = vunpack.c.l.s4 269488144
    %v5227 = vunpack.c.0.s8 %v5226
    %v5228 = vlaneseq
    %v5229 = vshrl.u32 %v5228, 7
    %v5230 = vsub.s32 %v5227, %v5229
    %v5231 = vrot.slane %v4125, %v5230
    %v5233 = vunpack.c.l.s4 842150450
    %v5234 = vunpack.c.0.s8 %v5233
    %v5235 = vlaneseq
    %v5236 = vshrl.u32 %v5235, 7
    %v5237 = vsub.s32 %v5234, %v5236
    %v5238 = vrot.slane %v4125, %v5237
    %v5240 = vunpack.c.l.s4 1414812756
    %v5241 = vunpack.c.0.s8 %v5240
    %v5242 = vlaneseq
    %v5243 = vshrl.u32 %v5242, 7
    %v5244 = vsub.s32 %v5241, %v5243
    %v5245 = vrot.slane %v4125, %v5244
    %v5247 = vunpack.c.l.s4 1987475062
    %v5248 = vunpack.c.0.s8 %v5247
    %v5249 = vlaneseq
    %v5250 = vshrl.u32 %v5249, 7
    %v5251 = vsub.s32 %v5248, %v5250
    %v5252 = vrot.slane %v4125, %v5251
    %v5254 = vunpack.c.l.s4 269488144
    %v5255 = vunpack.c.0.s8 %v5254
    %v5256 = vlaneseq
    %v5257 = vshrl.u32 %v5256, 7
    %v5258 = vsub.s32 %v5255, %v5257
    %v5259 = vrot.slane %v4126, %v5258
    %v5261 = vunpack.c.l.s4 842150450
    %v5262 = vunpack.c.0.s8 %v5261
    %v5263 = vlaneseq
    %v5264 = vshrl.u32 %v5263, 7
    %v5265 = vsub.s32 %v5262, %v5264
    %v5266 = vrot.slane %v4126, %v5265
    %v5268 = vunpack.c.l.s4 1414812756
    %v5269 = vunpack.c.0.s8 %v5268
    %v5270 = vlaneseq
    %v5271 = vshrl.u32 %v5270, 7
    %v5272 = vsub.s32 %v5269, %v5271
    %v5273 = vrot.slane %v4126, %v5272
    %v5275 = vunpack.c.l.s4 1987475062
    %v5276 = vunpack.c.0.s8 %v5275
    %v5277 = vlaneseq
    %v5278 = vshrl.u32 %v5277, 7
    %v5279 = vsub.s32 %v5276, %v5278
    %v5280 = vrot.slane %v4126, %v5279
    %v5282 = vunpack.c.l.s4 269488144
    %v5283 = vunpack.c.0.s8 %v5282
    %v5284 = vlaneseq
    %v5285 = vshrl.u32 %v5284, 7
    %v5286 = vsub.s32 %v5283, %v5285
    %v5287 = vrot.slane %v4127, %v5286
    %v5289 = vunpack.c.l.s4 842150450
    %v5290 = vunpack.c.0.s8 %v5289
    %v5291 = vlaneseq
    %v5292 = vshrl.u32 %v5291, 7
    %v5293 = vsub.s32 %v5290, %v5292
    %v5294 = vrot.slane %v4127, %v5293
    %v5296 = vunpack.c.l.s4 1414812756
    %v5297 = vunpack.c.0.s8 %v5296
    %v5298 = vlaneseq
    %v5299 = vshrl.u32 %v5298, 7
    %v5300 = vsub.s32 %v5297, %v5299
    %v5301 = vrot.slane %v4127, %v5300
    %v5303 = vunpack.c.l.s4 1987475062
    %v5304 = vunpack.c.0.s8 %v5303
    %v5305 = vlaneseq
    %v5306 = vshrl.u32 %v5305, 7
    %v5307 = vsub.s32 %v5304, %v5306
    %v5308 = vrot.slane %v4127, %v5307
    %v5310 = vunpack.c.l.s4 269488144
    %v5311 = vunpack.c.0.s8 %v5310
    %v5312 = vlaneseq
    %v5313 = vshrl.u32 %v5312, 7
    %v5314 = vsub.s32 %v5311, %v5313
    %v5315 = vrot.slane %v4128, %v5314
    %v5317 = vunpack.c.l.s4 842150450
    %v5318 = vunpack.c.0.s8 %v5317
    %v5319 = vlaneseq
    %v5320 = vshrl.u32 %v5319, 7
    %v5321 = vsub.s32 %v5318, %v5320
    %v5322 = vrot.slane %v4128, %v5321
    %v5324 = vunpack.c.l.s4 1414812756
    %v5325 = vunpack.c.0.s8 %v5324
    %v5326 = vlaneseq
    %v5327 = vshrl.u32 %v5326, 7
    %v5328 = vsub.s32 %v5325, %v5327
    %v5329 = vrot.slane %v4128, %v5328
    %v5331 = vunpack.c.l.s4 1987475062
    %v5332 = vunpack.c.0.s8 %v5331
    %v5333 = vlaneseq
    %v5334 = vshrl.u32 %v5333, 7
    %v5335 = vsub.s32 %v5332, %v5334
    %v5336 = vrot.slane %v4128, %v5335
    %v5338 = vunpack.c.l.s4 269488144
    %v5339 = vunpack.c.0.s8 %v5338
    %v5340 = vlaneseq
    %v5341 = vshrl.u32 %v5340, 7
    %v5342 = vsub.s32 %v5339, %v5341
    %v5343 = vrot.slane %v4129, %v5342
    %v5345 = vunpack.c.l.s4 842150450
    %v5346 = vunpack.c.0.s8 %v5345
    %v5347 = vlaneseq
    %v5348 = vshrl.u32 %v5347, 7
    %v5349 = vsub.s32 %v5346, %v5348
    %v5350 = vrot.slane %v4129, %v5349
    %v5352 = vunpack.c.l.s4 1414812756
    %v5353 = vunpack.c.0.s8 %v5352
    %v5354 = vlaneseq
    %v5355 = vshrl.u32 %v5354, 7
    %v5356 = vsub.s32 %v5353, %v5355
    %v5357 = vrot.slane %v4129, %v5356
    %v5359 = vunpack.c.l.s4 1987475062
    %v5360 = vunpack.c.0.s8 %v5359
    %v5361 = vlaneseq
    %v5362 = vshrl.u32 %v5361, 7
    %v5363 = vsub.s32 %v5360, %v5362
    %v5364 = vrot.slane %v4129, %v5363
    %v5366 = vunpack.c.l.s4 269488144
    %v5367 = vunpack.c.0.s8 %v5366
    %v5368 = vlaneseq
    %v5369 = vshrl.u32 %v5368, 7
    %v5370 = vsub.s32 %v5367, %v5369
    %v5371 = vrot.slane %v4130, %v5370
    %v5373 = vunpack.c.l.s4 842150450
    %v5374 = vunpack.c.0.s8 %v5373
    %v5375 = vlaneseq
    %v5376 = vshrl.u32 %v5375, 7
    %v5377 = vsub.s32 %v5374, %v5376
    %v5378 = vrot.slane %v4130, %v5377
    %v5380 = vunpack.c.l.s4 1414812756
    %v5381 = vunpack.c.0.s8 %v5380
    %v5382 = vlaneseq
    %v5383 = vshrl.u32 %v5382, 7
    %v5384 = vsub.s32 %v5381, %v5383
    %v5385 = vrot.slane %v4130, %v5384
    %v5387 = vunpack.c.l.s4 1987475062
    %v5388 = vunpack.c.0.s8 %v5387
    %v5389 = vlaneseq
    %v5390 = vshrl.u32 %v5389, 7
    %v5391 = vsub.s32 %v5388, %v5390
    %v5392 = vrot.slane %v4130, %v5391
    %v5394 = vunpack.c.l.s4 269488144
    %v5395 = vunpack.c.0.s8 %v5394
    %v5396 = vlaneseq
    %v5397 = vshrl.u32 %v5396, 7
    %v5398 = vsub.s32 %v5395, %v5397
    %v5399 = vrot.slane %v4131, %v5398
    %v5401 = vunpack.c.l.s4 842150450
    %v5402 = vunpack.c.0.s8 %v5401
    %v5403 = vlaneseq
    %v5404 = vshrl.u32 %v5403, 7
    %v5405 = vsub.s32 %v5402, %v5404
    %v5406 = vrot.slane %v4131, %v5405
    %v5408 = vunpack.c.l.s4 1414812756
    %v5409 = vunpack.c.0.s8 %v5408
    %v5410 = vlaneseq
    %v5411 = vshrl.u32 %v5410, 7
    %v5412 = vsub.s32 %v5409, %v5411
    %v5413 = vrot.slane %v4131, %v5412
    %v5415 = vunpack.c.l.s4 1987475062
    %v5416 = vunpack.c.0.s8 %v5415
    %v5417 = vlaneseq
    %v5418 = vshrl.u32 %v5417, 7
    %v5419 = vsub.s32 %v5416, %v5418
    %v5420 = vrot.slane %v4131, %v5419
    %v5422 = vunpack.c.l.s4 269488144
    %v5423 = vunpack.c.0.s8 %v5422
    %v5424 = vlaneseq
    %v5425 = vshrl.u32 %v5424, 7
    %v5426 = vsub.s32 %v5423, %v5425
    %v5427 = vrot.slane %v4132, %v5426
    %v5429 = vunpack.c.l.s4 842150450
    %v5430 = vunpack.c.0.s8 %v5429
    %v5431 = vlaneseq
    %v5432 = vshrl.u32 %v5431, 7
    %v5433 = vsub.s32 %v5430, %v5432
    %v5434 = vrot.slane %v4132, %v5433
    %v5436 = vunpack.c.l.s4 1414812756
    %v5437 = vunpack.c.0.s8 %v5436
    %v5438 = vlaneseq
    %v5439 = vshrl.u32 %v5438, 7
    %v5440 = vsub.s32 %v5437, %v5439
    %v5441 = vrot.slane %v4132, %v5440
    %v5443 = vunpack.c.l.s4 1987475062
    %v5444 = vunpack.c.0.s8 %v5443
    %v5445 = vlaneseq
    %v5446 = vshrl.u32 %v5445, 7
    %v5447 = vsub.s32 %v5444, %v5446
    %v5448 = vrot.slane %v4132, %v5447
    %v5450 = vunpack.c.l.s4 269488144
    %v5451 = vunpack.c.0.s8 %v5450
    %v5452 = vlaneseq
    %v5453 = vshrl.u32 %v5452, 7
    %v5454 = vsub.s32 %v5451, %v5453
    %v5455 = vrot.slane %v4133, %v5454
    %v5457 = vunpack.c.l.s4 842150450
    %v5458 = vunpack.c.0.s8 %v5457
    %v5459 = vlaneseq
    %v5460 = vshrl.u32 %v5459, 7
    %v5461 = vsub.s32 %v5458, %v5460
    %v5462 = vrot.slane %v4133, %v5461
    %v5464 = vunpack.c.l.s4 1414812756
    %v5465 = vunpack.c.0.s8 %v5464
    %v5466 = vlaneseq
    %v5467 = vshrl.u32 %v5466, 7
    %v5468 = vsub.s32 %v5465, %v5467
    %v5469 = vrot.slane %v4133, %v5468
    %v5471 = vunpack.c.l.s4 1987475062
    %v5472 = vunpack.c.0.s8 %v5471
    %v5473 = vlaneseq
    %v5474 = vshrl.u32 %v5473, 7
    %v5475 = vsub.s32 %v5472, %v5474
    %v5476 = vrot.slane %v4133, %v5475
    %v5478 = vunpack.c.l.s4 269488144
    %v5479 = vunpack.c.0.s8 %v5478
    %v5480 = vlaneseq
    %v5481 = vshrl.u32 %v5480, 7
    %v5482 = vsub.s32 %v5479, %v5481
    %v5483 = vrot.slane %v4134, %v5482
    %v5485 = vunpack.c.l.s4 842150450
    %v5486 = vunpack.c.0.s8 %v5485
    %v5487 = vlaneseq
    %v5488 = vshrl.u32 %v5487, 7
    %v5489 = vsub.s32 %v5486, %v5488
    %v5490 = vrot.slane %v4134, %v5489
    %v5492 = vunpack.c.l.s4 1414812756
    %v5493 = vunpack.c.0.s8 %v5492
    %v5494 = vlaneseq
    %v5495 = vshrl.u32 %v5494, 7
    %v5496 = vsub.s32 %v5493, %v5495
    %v5497 = vrot.slane %v4134, %v5496
    %v5499 = vunpack.c.l.s4 1987475062
    %v5500 = vunpack.c.0.s8 %v5499
    %v5501 = vlaneseq
    %v5502 = vshrl.u32 %v5501, 7
    %v5503 = vsub.s32 %v5500, %v5502
    %v5504 = vrot.slane %v4134, %v5503
    %v5506 = vunpack.c.l.s4 269488144
    %v5507 = vunpack.c.0.s8 %v5506
    %v5508 = vlaneseq
    %v5509 = vshrl.u32 %v5508, 7
    %v5510 = vsub.s32 %v5507, %v5509
    %v5511 = vrot.slane %v4135, %v5510
    %v5513 = vunpack.c.l.s4 842150450
    %v5514 = vunpack.c.0.s8 %v5513
    %v5515 = vlaneseq
    %v5516 = vshrl.u32 %v5515, 7
    %v5517 = vsub.s32 %v5514, %v5516
    %v5518 = vrot.slane %v4135, %v5517
    %v5520 = vunpack.c.l.s4 1414812756
    %v5521 = vunpack.c.0.s8 %v5520
    %v5522 = vlaneseq
    %v5523 = vshrl.u32 %v5522, 7
    %v5524 = vsub.s32 %v5521, %v5523
    %v5525 = vrot.slane %v4135, %v5524
    %v5527 = vunpack.c.l.s4 1987475062
    %v5528 = vunpack.c.0.s8 %v5527
    %v5529 = vlaneseq
    %v5530 = vshrl.u32 %v5529, 7
    %v5531 = vsub.s32 %v5528, %v5530
    %v5532 = vrot.slane %v4135, %v5531
    %v5534 = vunpack.c.l.s4 269488144
    %v5535 = vunpack.c.0.s8 %v5534
    %v5536 = vlaneseq
    %v5537 = vshrl.u32 %v5536, 7
    %v5538 = vsub.s32 %v5535, %v5537
    %v5539 = vrot.slane %v4136, %v5538
    %v5541 = vunpack.c.l.s4 842150450
    %v5542 = vunpack.c.0.s8 %v5541
    %v5543 = vlaneseq
    %v5544 = vshrl.u32 %v5543, 7
    %v5545 = vsub.s32 %v5542, %v5544
    %v5546 = vrot.slane %v4136, %v5545
    %v5548 = vunpack.c.l.s4 1414812756
    %v5549 = vunpack.c.0.s8 %v5548
    %v5550 = vlaneseq
    %v5551 = vshrl.u32 %v5550, 7
    %v5552 = vsub.s32 %v5549, %v5551
    %v5553 = vrot.slane %v4136, %v5552
    %v5555 = vunpack.c.l.s4 1987475062
    %v5556 = vunpack.c.0.s8 %v5555
    %v5557 = vlaneseq
    %v5558 = vshrl.u32 %v5557, 7
    %v5559 = vsub.s32 %v5556, %v5558
    %v5560 = vrot.slane %v4136, %v5559
    %v5562 = vunpack.c.l.s4 269488144
    %v5563 = vunpack.c.0.s8 %v5562
    %v5564 = vlaneseq
    %v5565 = vshrl.u32 %v5564, 7
    %v5566 = vsub.s32 %v5563, %v5565
    %v5567 = vrot.slane %v4137, %v5566
    %v5569 = vunpack.c.l.s4 842150450
    %v5570 = vunpack.c.0.s8 %v5569
    %v5571 = vlaneseq
    %v5572 = vshrl.u32 %v5571, 7
    %v5573 = vsub.s32 %v5570, %v5572
    %v5574 = vrot.slane %v4137, %v5573
    %v5576 = vunpack.c.l.s4 1414812756
    %v5577 = vunpack.c.0.s8 %v5576
    %v5578 = vlaneseq
    %v5579 = vshrl.u32 %v5578, 7
    %v5580 = vsub.s32 %v5577, %v5579
    %v5581 = vrot.slane %v4137, %v5580
    %v5583 = vunpack.c.l.s4 1987475062
    %v5584 = vunpack.c.0.s8 %v5583
    %v5585 = vlaneseq
    %v5586 = vshrl.u32 %v5585, 7
    %v5587 = vsub.s32 %v5584, %v5586
    %v5588 = vrot.slane %v4137, %v5587
    %v5590 = vunpack.c.l.s4 269488144
    %v5591 = vunpack.c.0.s8 %v5590
    %v5592 = vlaneseq
    %v5593 = vshrl.u32 %v5592, 7
    %v5594 = vsub.s32 %v5591, %v5593
    %v5595 = vrot.slane %v4138, %v5594
    %v5597 = vunpack.c.l.s4 842150450
    %v5598 = vunpack.c.0.s8 %v5597
    %v5599 = vlaneseq
    %v5600 = vshrl.u32 %v5599, 7
    %v5601 = vsub.s32 %v5598, %v5600
    %v5602 = vrot.slane %v4138, %v5601
    %v5604 = vunpack.c.l.s4 1414812756
    %v5605 = vunpack.c.0.s8 %v5604
    %v5606 = vlaneseq
    %v5607 = vshrl.u32 %v5606, 7
    %v5608 = vsub.s32 %v5605, %v5607
    %v5609 = vrot.slane %v4138, %v5608
    %v5611 = vunpack.c.l.s4 1987475062
    %v5612 = vunpack.c.0.s8 %v5611
    %v5613 = vlaneseq
    %v5614 = vshrl.u32 %v5613, 7
    %v5615 = vsub.s32 %v5612, %v5614
    %v5616 = vrot.slane %v4138, %v5615
    %v5618 = vunpack.c.l.s4 269488144
    %v5619 = vunpack.c.0.s8 %v5618
    %v5620 = vlaneseq
    %v5621 = vshrl.u32 %v5620, 7
    %v5622 = vsub.s32 %v5619, %v5621
    %v5623 = vrot.slane %v4139, %v5622
    %v5625 = vunpack.c.l.s4 842150450
    %v5626 = vunpack.c.0.s8 %v5625
    %v5627 = vlaneseq
    %v5628 = vshrl.u32 %v5627, 7
    %v5629 = vsub.s32 %v5626, %v5628
    %v5630 = vrot.slane %v4139, %v5629
    %v5632 = vunpack.c.l.s4 1414812756
    %v5633 = vunpack.c.0.s8 %v5632
    %v5634 = vlaneseq
    %v5635 = vshrl.u32 %v5634, 7
    %v5636 = vsub.s32 %v5633, %v5635
    %v5637 = vrot.slane %v4139, %v5636
    %v5639 = vunpack.c.l.s4 1987475062
    %v5640 = vunpack.c.0.s8 %v5639
    %v5641 = vlaneseq
    %v5642 = vshrl.u32 %v5641, 7
    %v5643 = vsub.s32 %v5640, %v5642
    %v5644 = vrot.slane %v4139, %v5643
    %v5646 = vunpack.c.l.s4 269488144
    %v5647 = vunpack.c.0.s8 %v5646
    %v5648 = vlaneseq
    %v5649 = vshrl.u32 %v5648, 7
    %v5650 = vsub.s32 %v5647, %v5649
    %v5651 = vrot.slane %v4140, %v5650
    %v5653 = vunpack.c.l.s4 842150450
    %v5654 = vunpack.c.0.s8 %v5653
    %v5655 = vlaneseq
    %v5656 = vshrl.u32 %v5655, 7
    %v5657 = vsub.s32 %v5654, %v5656
    %v5658 = vrot.slane %v4140, %v5657
    %v5660 = vunpack.c.l.s4 1414812756
    %v5661 = vunpack.c.0.s8 %v5660
    %v5662 = vlaneseq
    %v5663 = vshrl.u32 %v5662, 7
    %v5664 = vsub.s32 %v5661, %v5663
    %v5665 = vrot.slane %v4140, %v5664
    %v5667 = vunpack.c.l.s4 1987475062
    %v5668 = vunpack.c.0.s8 %v5667
    %v5669 = vlaneseq
    %v5670 = vshrl.u32 %v5669, 7
    %v5671 = vsub.s32 %v5668, %v5670
    %v5672 = vrot.slane %v4140, %v5671
    %v5674 = vunpack.c.l.s4 269488144
    %v5675 = vunpack.c.0.s8 %v5674
    %v5676 = vlaneseq
    %v5677 = vshrl.u32 %v5676, 7
    %v5678 = vsub.s32 %v5675, %v5677
    %v5679 = vrot.slane %v4141, %v5678
    %v5681 = vunpack.c.l.s4 842150450
    %v5682 = vunpack.c.0.s8 %v5681
    %v5683 = vlaneseq
    %v5684 = vshrl.u32 %v5683, 7
    %v5685 = vsub.s32 %v5682, %v5684
    %v5686 = vrot.slane %v4141, %v5685
    %v5688 = vunpack.c.l.s4 1414812756
    %v5689 = vunpack.c.0.s8 %v5688
    %v5690 = vlaneseq
    %v5691 = vshrl.u32 %v5690, 7
    %v5692 = vsub.s32 %v5689, %v5691
    %v5693 = vrot.slane %v4141, %v5692
    %v5695 = vunpack.c.l.s4 1987475062
    %v5696 = vunpack.c.0.s8 %v5695
    %v5697 = vlaneseq
    %v5698 = vshrl.u32 %v5697, 7
    %v5699 = vsub.s32 %v5696, %v5698
    %v5700 = vrot.slane %v4141, %v5699
    %v5702 = vunpack.c.l.s4 269488144
    %v5703 = vunpack.c.0.s8 %v5702
    %v5704 = vlaneseq
    %v5705 = vshrl.u32 %v5704, 7
    %v5706 = vsub.s32 %v5703, %v5705
    %v5707 = vrot.slane %v4142, %v5706
    %v5709 = vunpack.c.l.s4 842150450
    %v5710 = vunpack.c.0.s8 %v5709
    %v5711 = vlaneseq
    %v5712 = vshrl.u32 %v5711, 7
    %v5713 = vsub.s32 %v5710, %v5712
    %v5714 = vrot.slane %v4142, %v5713
    %v5716 = vunpack.c.l.s4 1414812756
    %v5717 = vunpack.c.0.s8 %v5716
    %v5718 = vlaneseq
    %v5719 = vshrl.u32 %v5718, 7
    %v5720 = vsub.s32 %v5717, %v5719
    %v5721 = vrot.slane %v4142, %v5720
    %v5723 = vunpack.c.l.s4 1987475062
    %v5724 = vunpack.c.0.s8 %v5723
    %v5725 = vlaneseq
    %v5726 = vshrl.u32 %v5725, 7
    %v5727 = vsub.s32 %v5724, %v5726
    %v5728 = vrot.slane %v4142, %v5727
    %v5730 = vunpack.c.l.s4 269488144
    %v5731 = vunpack.c.0.s8 %v5730
    %v5732 = vlaneseq
    %v5733 = vshrl.u32 %v5732, 7
    %v5734 = vsub.s32 %v5731, %v5733
    %v5735 = vrot.slane %v4143, %v5734
    %v5737 = vunpack.c.l.s4 842150450
    %v5738 = vunpack.c.0.s8 %v5737
    %v5739 = vlaneseq
    %v5740 = vshrl.u32 %v5739, 7
    %v5741 = vsub.s32 %v5738, %v5740
    %v5742 = vrot.slane %v4143, %v5741
    %v5744 = vunpack.c.l.s4 1414812756
    %v5745 = vunpack.c.0.s8 %v5744
    %v5746 = vlaneseq
    %v5747 = vshrl.u32 %v5746, 7
    %v5748 = vsub.s32 %v5745, %v5747
    %v5749 = vrot.slane %v4143, %v5748
    %v5751 = vunpack.c.l.s4 1987475062
    %v5752 = vunpack.c.0.s8 %v5751
    %v5753 = vlaneseq
    %v5754 = vshrl.u32 %v5753, 7
    %v5755 = vsub.s32 %v5752, %v5754
    %v5756 = vrot.slane %v4143, %v5755
    %v5758 = vunpack.c.l.s4 269488144
    %v5759 = vunpack.c.0.s8 %v5758
    %v5760 = vlaneseq
    %v5761 = vshrl.u32 %v5760, 7
    %v5762 = vsub.s32 %v5759, %v5761
    %v5763 = vrot.slane %v4144, %v5762
    %v5765 = vunpack.c.l.s4 842150450
    %v5766 = vunpack.c.0.s8 %v5765
    %v5767 = vlaneseq
    %v5768 = vshrl.u32 %v5767, 7
    %v5769 = vsub.s32 %v5766, %v5768
    %v5770 = vrot.slane %v4144, %v5769
    %v5772 = vunpack.c.l.s4 1414812756
    %v5773 = vunpack.c.0.s8 %v5772
    %v5774 = vlaneseq
    %v5775 = vshrl.u32 %v5774, 7
    %v5776 = vsub.s32 %v5773, %v5775
    %v5777 = vrot.slane %v4144, %v5776
    %v5779 = vunpack.c.l.s4 1987475062
    %v5780 = vunpack.c.0.s8 %v5779
    %v5781 = vlaneseq
    %v5782 = vshrl.u32 %v5781, 7
    %v5783 = vsub.s32 %v5780, %v5782
    %v5784 = vrot.slane %v4144, %v5783
    %v5786 = vunpack.c.l.s4 269488144
    %v5787 = vunpack.c.0.s8 %v5786
    %v5788 = vlaneseq
    %v5789 = vshrl.u32 %v5788, 7
    %v5790 = vsub.s32 %v5787, %v5789
    %v5791 = vrot.slane %v4145, %v5790
    %v5793 = vunpack.c.l.s4 842150450
    %v5794 = vunpack.c.0.s8 %v5793
    %v5795 = vlaneseq
    %v5796 = vshrl.u32 %v5795, 7
    %v5797 = vsub.s32 %v5794, %v5796
    %v5798 = vrot.slane %v4145, %v5797
    %v5800 = vunpack.c.l.s4 1414812756
    %v5801 = vunpack.c.0.s8 %v5800
    %v5802 = vlaneseq
    %v5803 = vshrl.u32 %v5802, 7
    %v5804 = vsub.s32 %v5801, %v5803
    %v5805 = vrot.slane %v4145, %v5804
    %v5807 = vunpack.c.l.s4 1987475062
    %v5808 = vunpack.c.0.s8 %v5807
    %v5809 = vlaneseq
    %v5810 = vshrl.u32 %v5809, 7
    %v5811 = vsub.s32 %v5808, %v5810
    %v5812 = vrot.slane %v4145, %v5811
    %v5814 = vunpack.c.l.s4 269488144
    %v5815 = vunpack.c.0.s8 %v5814
    %v5816 = vlaneseq
    %v5817 = vshrl.u32 %v5816, 7
    %v5818 = vsub.s32 %v5815, %v5817
    %v5819 = vrot.slane %v4146, %v5818
    %v5821 = vunpack.c.l.s4 842150450
    %v5822 = vunpack.c.0.s8 %v5821
    %v5823 = vlaneseq
    %v5824 = vshrl.u32 %v5823, 7
    %v5825 = vsub.s32 %v5822, %v5824
    %v5826 = vrot.slane %v4146, %v5825
    %v5828 = vunpack.c.l.s4 1414812756
    %v5829 = vunpack.c.0.s8 %v5828
    %v5830 = vlaneseq
    %v5831 = vshrl.u32 %v5830, 7
    %v5832 = vsub.s32 %v5829, %v5831
    %v5833 = vrot.slane %v4146, %v5832
    %v5835 = vunpack.c.l.s4 1987475062
    %v5836 = vunpack.c.0.s8 %v5835
    %v5837 = vlaneseq
    %v5838 = vshrl.u32 %v5837, 7
    %v5839 = vsub.s32 %v5836, %v5838
    %v5840 = vrot.slane %v4146, %v5839
    %v5842 = vunpack.c.l.s4 269488144
    %v5843 = vunpack.c.0.s8 %v5842
    %v5844 = vlaneseq
    %v5845 = vshrl.u32 %v5844, 7
    %v5846 = vsub.s32 %v5843, %v5845
    %v5847 = vrot.slane %v4147, %v5846
    %v5849 = vunpack.c.l.s4 842150450
    %v5850 = vunpack.c.0.s8 %v5849
    %v5851 = vlaneseq
    %v5852 = vshrl.u32 %v5851, 7
    %v5853 = vsub.s32 %v5850, %v5852
    %v5854 = vrot.slane %v4147, %v5853
    %v5856 = vunpack.c.l.s4 1414812756
    %v5857 = vunpack.c.0.s8 %v5856
    %v5858 = vlaneseq
    %v5859 = vshrl.u32 %v5858, 7
    %v5860 = vsub.s32 %v5857, %v5859
    %v5861 = vrot.slane %v4147, %v5860
    %v5863 = vunpack.c.l.s4 1987475062
    %v5864 = vunpack.c.0.s8 %v5863
    %v5865 = vlaneseq
    %v5866 = vshrl.u32 %v5865, 7
    %v5867 = vsub.s32 %v5864, %v5866
    %v5868 = vrot.slane %v4147, %v5867
    %v5870 = vunpack.c.l.s4 269488144
    %v5871 = vunpack.c.0.s8 %v5870
    %v5872 = vlaneseq
    %v5873 = vshrl.u32 %v5872, 7
    %v5874 = vsub.s32 %v5871, %v5873
    %v5875 = vrot.slane %v4148, %v5874
    %v5877 = vunpack.c.l.s4 842150450
    %v5878 = vunpack.c.0.s8 %v5877
    %v5879 = vlaneseq
    %v5880 = vshrl.u32 %v5879, 7
    %v5881 = vsub.s32 %v5878, %v5880
    %v5882 = vrot.slane %v4148, %v5881
    %v5884 = vunpack.c.l.s4 1414812756
    %v5885 = vunpack.c.0.s8 %v5884
    %v5886 = vlaneseq
    %v5887 = vshrl.u32 %v5886, 7
    %v5888 = vsub.s32 %v5885, %v5887
    %v5889 = vrot.slane %v4148, %v5888
    %v5891 = vunpack.c.l.s4 1987475062
    %v5892 = vunpack.c.0.s8 %v5891
    %v5893 = vlaneseq
    %v5894 = vshrl.u32 %v5893, 7
    %v5895 = vsub.s32 %v5892, %v5894
    %v5896 = vrot.slane %v4148, %v5895
    %v5898 = vunpack.c.l.s4 269488144
    %v5899 = vunpack.c.0.s8 %v5898
    %v5900 = vlaneseq
    %v5901 = vshrl.u32 %v5900, 7
    %v5902 = vsub.s32 %v5899, %v5901
    %v5903 = vrot.slane %v4149, %v5902
    %v5905 = vunpack.c.l.s4 842150450
    %v5906 = vunpack.c.0.s8 %v5905
    %v5907 = vlaneseq
    %v5908 = vshrl.u32 %v5907, 7
    %v5909 = vsub.s32 %v5906, %v5908
    %v5910 = vrot.slane %v4149, %v5909
    %v5912 = vunpack.c.l.s4 1414812756
    %v5913 = vunpack.c.0.s8 %v5912
    %v5914 = vlaneseq
    %v5915 = vshrl.u32 %v5914, 7
    %v5916 = vsub.s32 %v5913, %v5915
    %v5917 = vrot.slane %v4149, %v5916
    %v5919 = vunpack.c.l.s4 1987475062
    %v5920 = vunpack.c.0.s8 %v5919
    %v5921 = vlaneseq
    %v5922 = vshrl.u32 %v5921, 7
    %v5923 = vsub.s32 %v5920, %v5922
    %v5924 = vrot.slane %v4149, %v5923
    %v5926 = vunpack.c.l.s4 269488144
    %v5927 = vunpack.c.0.s8 %v5926
    %v5928 = vlaneseq
    %v5929 = vshrl.u32 %v5928, 7
    %v5930 = vsub.s32 %v5927, %v5929
    %v5931 = vrot.slane %v4150, %v5930
    %v5933 = vunpack.c.l.s4 842150450
    %v5934 = vunpack.c.0.s8 %v5933
    %v5935 = vlaneseq
    %v5936 = vshrl.u32 %v5935, 7
    %v5937 = vsub.s32 %v5934, %v5936
    %v5938 = vrot.slane %v4150, %v5937
    %v5940 = vunpack.c.l.s4 1414812756
    %v5941 = vunpack.c.0.s8 %v5940
    %v5942 = vlaneseq
    %v5943 = vshrl.u32 %v5942, 7
    %v5944 = vsub.s32 %v5941, %v5943
    %v5945 = vrot.slane %v4150, %v5944
    %v5947 = vunpack.c.l.s4 1987475062
    %v5948 = vunpack.c.0.s8 %v5947
    %v5949 = vlaneseq
    %v5950 = vshrl.u32 %v5949, 7
    %v5951 = vsub.s32 %v5948, %v5950
    %v5952 = vrot.slane %v4150, %v5951
    %v5954 = vunpack.c.l.s4 269488144
    %v5955 = vunpack.c.0.s8 %v5954
    %v5956 = vlaneseq
    %v5957 = vshrl.u32 %v5956, 7
    %v5958 = vsub.s32 %v5955, %v5957
    %v5959 = vrot.slane %v4151, %v5958
    %v5961 = vunpack.c.l.s4 842150450
    %v5962 = vunpack.c.0.s8 %v5961
    %v5963 = vlaneseq
    %v5964 = vshrl.u32 %v5963, 7
    %v5965 = vsub.s32 %v5962, %v5964
    %v5966 = vrot.slane %v4151, %v5965
    %v5968 = vunpack.c.l.s4 1414812756
    %v5969 = vunpack.c.0.s8 %v5968
    %v5970 = vlaneseq
    %v5971 = vshrl.u32 %v5970, 7
    %v5972 = vsub.s32 %v5969, %v5971
    %v5973 = vrot.slane %v4151, %v5972
    %v5975 = vunpack.c.l.s4 1987475062
    %v5976 = vunpack.c.0.s8 %v5975
    %v5977 = vlaneseq
    %v5978 = vshrl.u32 %v5977, 7
    %v5979 = vsub.s32 %v5976, %v5978
    %v5980 = vrot.slane %v4151, %v5979
    %v5982 = vunpack.c.l.s4 269488144
    %v5983 = vunpack.c.0.s8 %v5982
    %v5984 = vlaneseq
    %v5985 = vshrl.u32 %v5984, 7
    %v5986 = vsub.s32 %v5983, %v5985
    %v5987 = vrot.slane %v4152, %v5986
    %v5989 = vunpack.c.l.s4 842150450
    %v5990 = vunpack.c.0.s8 %v5989
    %v5991 = vlaneseq
    %v5992 = vshrl.u32 %v5991, 7
    %v5993 = vsub.s32 %v5990, %v5992
    %v5994 = vrot.slane %v4152, %v5993
    %v5996 = vunpack.c.l.s4 1414812756
    %v5997 = vunpack.c.0.s8 %v5996
    %v5998 = vlaneseq
    %v5999 = vshrl.u32 %v5998, 7
    %v6000 = vsub.s32 %v5997, %v5999
    %v6001 = vrot.slane %v4152, %v6000
    %v6003 = vunpack.c.l.s4 1987475062
    %v6004 = vunpack.c.0.s8 %v6003
    %v6005 = vlaneseq
    %v6006 = vshrl.u32 %v6005, 7
    %v6007 = vsub.s32 %v6004, %v6006
    %v6008 = vrot.slane %v4152, %v6007
    %v6009 = vcombine.low %v4223, %v4230
    %v6010 = vcombine.low %v4237, %v4244
    %v6012 = vunpack.c.l.s4 1983009808
    %v6013 = vunpack.c.0.s8 %v6012
    %v6014 = vlaneseq
    %v6015 = vshrl.u32 %v6014, 7
    %v6016 = vsub.s32 %v6013, %v6015
    %v6017 = vrot.slane %v6009, %v6016
    %v6019 = vunpack.c.l.s4 1983009808
    %v6020 = vunpack.c.0.s8 %v6019
    %v6021 = vlaneseq
    %v6022 = vshrl.u32 %v6021, 7
    %v6023 = vsub.s32 %v6020, %v6022
    %v6024 = vrot.slane %v6010, %v6023
    %v6025 = vcombine.low %v6017, %v6024
    %v6026 = vcombine.low %v4251, %v4258
    %v6027 = vcombine.low %v4265, %v4272
    %v6029 = vunpack.c.l.s4 1983009808
    %v6030 = vunpack.c.0.s8 %v6029
    %v6031 = vlaneseq
    %v6032 = vshrl.u32 %v6031, 7
    %v6033 = vsub.s32 %v6030, %v6032
    %v6034 = vrot.slane %v6026, %v6033
    %v6036 = vunpack.c.l.s4 1983009808
    %v6037 = vunpack.c.0.s8 %v6036
    %v6038 = vlaneseq
    %v6039 = vshrl.u32 %v6038, 7
    %v6040 = vsub.s32 %v6037, %v6039
    %v6041 = vrot.slane %v6027, %v6040
    %v6042 = vcombine.low %v6034, %v6041
    %v6043 = vcombine.low %v4279, %v4286
    %v6044 = vcombine.low %v4293, %v4300
    %v6046 = vunpack.c.l.s4 1983009808
    %v6047 = vunpack.c.0.s8 %v6046
    %v6048 = vlaneseq
    %v6049 = vshrl.u32 %v6048, 7
    %v6050 = vsub.s32 %v6047, %v6049
    %v6051 = vrot.slane %v6043, %v6050
    %v6053 = vunpack.c.l.s4 1983009808
    %v6054 = vunpack.c.0.s8 %v6053
    %v6055 = vlaneseq
    %v6056 = vshrl.u32 %v6055, 7
    %v6057 = vsub.s32 %v6054, %v6056
    %v6058 = vrot.slane %v6044, %v6057
    %v6059 = vcombine.low %v6051, %v6058
    %v6060 = vcombine.low %v4307, %v4314
    %v6061 = vcombine.low %v4321, %v4328
    %v6063 = vunpack.c.l.s4 1983009808
    %v6064 = vunpack.c.0.s8 %v6063
    %v6065 = vlaneseq
    %v6066 = vshrl.u32 %v6065, 7
    %v6067 = vsub.s32 %v6064, %v6066
    %v6068 = vrot.slane %v6060, %v6067
    %v6070 = vunpack.c.l.s4 1983009808
    %v6071 = vunpack.c.0.s8 %v6070
    %v6072 = vlaneseq
    %v6073 = vshrl.u32 %v6072, 7
    %v6074 = vsub.s32 %v6071, %v6073
    %v6075 = vrot.slane %v6061, %v6074
    %v6076 = vcombine.low %v6068, %v6075
    %v6077 = vcombine.low %v4335, %v4342
    %v6078 = vcombine.low %v4349, %v4356
    %v6080 = vunpack.c.l.s4 1983009808
    %v6081 = vunpack.c.0.s8 %v6080
    %v6082 = vlaneseq
    %v6083 = vshrl.u32 %v6082, 7
    %v6084 = vsub.s32 %v6081, %v6083
    %v6085 = vrot.slane %v6077, %v6084
    %v6087 = vunpack.c.l.s4 1983009808
    %v6088 = vunpack.c.0.s8 %v6087
    %v6089 = vlaneseq
    %v6090 = vshrl.u32 %v6089, 7
    %v6091 = vsub.s32 %v6088, %v6090
    %v6092 = vrot.slane %v6078, %v6091
    %v6093 = vcombine.low %v6085, %v6092
    %v6094 = vcombine.low %v4363, %v4370
    %v6095 = vcombine.low %v4377, %v4384
    %v6097 = vunpack.c.l.s4 1983009808
    %v6098 = vunpack.c.0.s8 %v6097
    %v6099 = vlaneseq
    %v6100 = vshrl.u32 %v6099, 7
    %v6101 = vsub.s32 %v6098, %v6100
    %v6102 = vrot.slane %v6094, %v6101
    %v6104 = vunpack.c.l.s4 1983009808
    %v6105 = vunpack.c.0.s8 %v6104
    %v6106 = vlaneseq
    %v6107 = vshrl.u32 %v6106, 7
    %v6108 = vsub.s32 %v6105, %v6107
    %v6109 = vrot.slane %v6095, %v6108
    %v6110 = vcombine.low %v6102, %v6109
    %v6111 = vcombine.low %v4391, %v4398
    %v6112 = vcombine.low %v4405, %v4412
    %v6114 = vunpack.c.l.s4 1983009808
    %v6115 = vunpack.c.0.s8 %v6114
    %v6116 = vlaneseq
    %v6117 = vshrl.u32 %v6116, 7
    %v6118 = vsub.s32 %v6115, %v6117
    %v6119 = vrot.slane %v6111, %v6118
    %v6121 = vunpack.c.l.s4 1983009808
    %v6122 = vunpack.c.0.s8 %v6121
    %v6123 = vlaneseq
    %v6124 = vshrl.u32 %v6123, 7
    %v6125 = vsub.s32 %v6122, %v6124
    %v6126 = vrot.slane %v6112, %v6125
    %v6127 = vcombine.low %v6119, %v6126
    %v6128 = vcombine.low %v4419, %v4426
    %v6129 = vcombine.low %v4433, %v4440
    %v6131 = vunpack.c.l.s4 1983009808
    %v6132 = vunpack.c.0.s8 %v6131
    %v6133 = vlaneseq
    %v6134 = vshrl.u32 %v6133, 7
    %v6135 = vsub.s32 %v6132, %v6134
    %v6136 = vrot.slane %v6128, %v6135
    %v6138 = vunpack.c.l.s4 1983009808
    %v6139 = vunpack.c.0.s8 %v6138
    %v6140 = vlaneseq
    %v6141 = vshrl.u32 %v6140, 7
    %v6142 = vsub.s32 %v6139, %v6141
    %v6143 = vrot.slane %v6129, %v6142
    %v6144 = vcombine.low %v6136, %v6143
    %v6145 = vcombine.low %v4447, %v4454
    %v6146 = vcombine.low %v4461, %v4468
    %v6148 = vunpack.c.l.s4 1983009808
    %v6149 = vunpack.c.0.s8 %v6148
    %v6150 = vlaneseq
    %v6151 = vshrl.u32 %v6150, 7
    %v6152 = vsub.s32 %v6149, %v6151
    %v6153 = vrot.slane %v6145, %v6152
    %v6155 = vunpack.c.l.s4 1983009808
    %v6156 = vunpack.c.0.s8 %v6155
    %v6157 = vlaneseq
    %v6158 = vshrl.u32 %v6157, 7
    %v6159 = vsub.s32 %v6156, %v6158
    %v6160 = vrot.slane %v6146, %v6159
    %v6161 = vcombine.low %v6153, %v6160
    %v6162 = vcombine.low %v4475, %v4482
    %v6163 = vcombine.low %v4489, %v4496
    %v6165 = vunpack.c.l.s4 1983009808
    %v6166 = vunpack.c.0.s8 %v6165
    %v6167 = vlaneseq
    %v6168 = vshrl.u32 %v6167, 7
    %v6169 = vsub.s32 %v6166, %v6168
    %v6170 = vrot.slane %v6162, %v6169
    %v6172 = vunpack.c.l.s4 1983009808
    %v6173 = vunpack.c.0.s8 %v6172
    %v6174 = vlaneseq
    %v6175 = vshrl.u32 %v6174, 7
    %v6176 = vsub.s32 %v6173, %v6175
    %v6177 = vrot.slane %v6163, %v6176
    %v6178 = vcombine.low %v6170, %v6177
    %v6179 = vcombine.low %v4503, %v4510
    %v6180 = vcombine.low %v4517, %v4524
    %v6182 = vunpack.c.l.s4 1983009808
    %v6183 = vunpack.c.0.s8 %v6182
    %v6184 = vlaneseq
    %v6185 = vshrl.u32 %v6184, 7
    %v6186 = vsub.s32 %v6183, %v6185
    %v6187 = vrot.slane %v6179, %v6186
    %v6189 = vunpack.c.l.s4 1983009808
    %v6190 = vunpack.c.0.s8 %v6189
    %v6191 = vlaneseq
    %v6192 = vshrl.u32 %v6191, 7
    %v6193 = vsub.s32 %v6190, %v6192
    %v6194 = vrot.slane %v6180, %v6193
    %v6195 = vcombine.low %v6187, %v6194
    %v6196 = vcombine.low %v4531, %v4538
    %v6197 = vcombine.low %v4545, %v4552
    %v6199 = vunpack.c.l.s4 1983009808
    %v6200 = vunpack.c.0.s8 %v6199
    %v6201 = vlaneseq
    %v6202 = vshrl.u32 %v6201, 7
    %v6203 = vsub.s32 %v6200, %v6202
    %v6204 = vrot.slane %v6196, %v6203
    %v6206 = vunpack.c.l.s4 1983009808
    %v6207 = vunpack.c.0.s8 %v6206
    %v6208 = vlaneseq
    %v6209 = vshrl.u32 %v6208, 7
    %v6210 = vsub.s32 %v6207, %v6209
    %v6211 = vrot.slane %v6197, %v6210
    %v6212 = vcombine.low %v6204, %v6211
    %v6213 = vcombine.low %v4559, %v4566
    %v6214 = vcombine.low %v4573, %v4580
    %v6216 = vunpack.c.l.s4 1983009808
    %v6217 = vunpack.c.0.s8 %v6216
    %v6218 = vlaneseq
    %v6219 = vshrl.u32 %v6218, 7
    %v6220 = vsub.s32 %v6217, %v6219
    %v6221 = vrot.slane %v6213, %v6220
    %v6223 = vunpack.c.l.s4 1983009808
    %v6224 = vunpack.c.0.s8 %v6223
    %v6225 = vlaneseq
    %v6226 = vshrl.u32 %v6225, 7
    %v6227 = vsub.s32 %v6224, %v6226
    %v6228 = vrot.slane %v6214, %v6227
    %v6229 = vcombine.low %v6221, %v6228
    %v6230 = vcombine.low %v4587, %v4594
    %v6231 = vcombine.low %v4601, %v4608
    %v6233 = vunpack.c.l.s4 1983009808
    %v6234 = vunpack.c.0.s8 %v6233
    %v6235 = vlaneseq
    %v6236 = vshrl.u32 %v6235, 7
    %v6237 = vsub.s32 %v6234, %v6236
    %v6238 = vrot.slane %v6230, %v6237
    %v6240 = vunpack.c.l.s4 1983009808
    %v6241 = vunpack.c.0.s8 %v6240
    %v6242 = vlaneseq
    %v6243 = vshrl.u32 %v6242, 7
    %v6244 = vsub.s32 %v6241, %v6243
    %v6245 = vrot.slane %v6231, %v6244
    %v6246 = vcombine.low %v6238, %v6245
    %v6247 = vcombine.low %v4615, %v4622
    %v6248 = vcombine.low %v4629, %v4636
    %v6250 = vunpack.c.l.s4 1983009808
    %v6251 = vunpack.c.0.s8 %v6250
    %v6252 = vlaneseq
    %v6253 = vshrl.u32 %v6252, 7
    %v6254 = vsub.s32 %v6251, %v6253
    %v6255 = vrot.slane %v6247, %v6254
    %v6257 = vunpack.c.l.s4 1983009808
    %v6258 = vunpack.c.0.s8 %v6257
    %v6259 = vlaneseq
    %v6260 = vshrl.u32 %v6259, 7
    %v6261 = vsub.s32 %v6258, %v6260
    %v6262 = vrot.slane %v6248, %v6261
    %v6263 = vcombine.low %v6255, %v6262
    %v6264 = vcombine.low %v4643, %v4650
    %v6265 = vcombine.low %v4657, %v4664
    %v6267 = vunpack.c.l.s4 1983009808
    %v6268 = vunpack.c.0.s8 %v6267
    %v6269 = vlaneseq
    %v6270 = vshrl.u32 %v6269, 7
    %v6271 = vsub.s32 %v6268, %v6270
    %v6272 = vrot.slane %v6264, %v6271
    %v6274 = vunpack.c.l.s4 1983009808
    %v6275 = vunpack.c.0.s8 %v6274
    %v6276 = vlaneseq
    %v6277 = vshrl.u32 %v6276, 7
    %v6278 = vsub.s32 %v6275, %v6277
    %v6279 = vrot.slane %v6265, %v6278
    %v6280 = vcombine.low %v6272, %v6279
    %v6281 = vcombine.low %v4671, %v4678
    %v6282 = vcombine.low %v4685, %v4692
    %v6284 = vunpack.c.l.s4 1983009808
    %v6285 = vunpack.c.0.s8 %v6284
    %v6286 = vlaneseq
    %v6287 = vshrl.u32 %v6286, 7
    %v6288 = vsub.s32 %v6285, %v6287
    %v6289 = vrot.slane %v6281, %v6288
    %v6291 = vunpack.c.l.s4 1983009808
    %v6292 = vunpack.c.0.s8 %v6291
    %v6293 = vlaneseq
    %v6294 = vshrl.u32 %v6293, 7
    %v6295 = vsub.s32 %v6292, %v6294
    %v6296 = vrot.slane %v6282, %v6295
    %v6297 = vcombine.low %v6289, %v6296
    %v6298 = vcombine.low %v4699, %v4706
    %v6299 = vcombine.low %v4713, %v4720
    %v6301 = vunpack.c.l.s4 1983009808
    %v6302 = vunpack.c.0.s8 %v6301
    %v6303 = vlaneseq
    %v6304 = vshrl.u32 %v6303, 7
    %v6305 = vsub.s32 %v6302, %v6304
    %v6306 = vrot.slane %v6298, %v6305
    %v6308 = vunpack.c.l.s4 1983009808
    %v6309 = vunpack.c.0.s8 %v6308
    %v6310 = vlaneseq
    %v6311 = vshrl.u32 %v6310, 7
    %v6312 = vsub.s32 %v6309, %v6311
    %v6313 = vrot.slane %v6299, %v6312
    %v6314 = vcombine.low %v6306, %v6313
    %v6315 = vcombine.low %v4727, %v4734
    %v6316 = vcombine.low %v4741, %v4748
    %v6318 = vunpack.c.l.s4 1983009808
    %v6319 = vunpack.c.0.s8 %v6318
    %v6320 = vlaneseq
    %v6321 = vshrl.u32 %v6320, 7
    %v6322 = vsub.s32 %v6319, %v6321
    %v6323 = vrot.slane %v6315, %v6322
    %v6325 = vunpack.c.l.s4 1983009808
    %v6326 = vunpack.c.0.s8 %v6325
    %v6327 = vlaneseq
    %v6328 = vshrl.u32 %v6327, 7
    %v6329 = vsub.s32 %v6326, %v6328
    %v6330 = vrot.slane %v6316, %v6329
    %v6331 = vcombine.low %v6323, %v6330
    %v6332 = vcombine.low %v4755, %v4762
    %v6333 = vcombine.low %v4769, %v4776
    %v6335 = vunpack.c.l.s4 1983009808
    %v6336 = vunpack.c.0.s8 %v6335
    %v6337 = vlaneseq
    %v6338 = vshrl.u32 %v6337, 7
    %v6339 = vsub.s32 %v6336, %v6338
    %v6340 = vrot.slane %v6332, %v6339
    %v6342 = vunpack.c.l.s4 1983009808
    %v6343 = vunpack.c.0.s8 %v6342
    %v6344 = vlaneseq
    %v6345 = vshrl.u32 %v6344, 7
    %v6346 = vsub.s32 %v6343, %v6345
    %v6347 = vrot.slane %v6333, %v6346
    %v6348 = vcombine.low %v6340, %v6347
    %v6349 = vcombine.low %v4783, %v4790
    %v6350 = vcombine.low %v4797, %v4804
    %v6352 = vunpack.c.l.s4 1983009808
    %v6353 = vunpack.c.0.s8 %v6352
    %v6354 = vlaneseq
    %v6355 = vshrl.u32 %v6354, 7
    %v6356 = vsub.s32 %v6353, %v6355
    %v6357 = vrot.slane %v6349, %v6356
    %v6359 = vunpack.c.l.s4 1983009808
    %v6360 = vunpack.c.0.s8 %v6359
    %v6361 = vlaneseq
    %v6362 = vshrl.u32 %v6361, 7
    %v6363 = vsub.s32 %v6360, %v6362
    %v6364 = vrot.slane %v6350, %v6363
    %v6365 = vcombine.low %v6357, %v6364
    %v6366 = vcombine.low %v4811, %v4818
    %v6367 = vcombine.low %v4825, %v4832
    %v6369 = vunpack.c.l.s4 1983009808
    %v6370 = vunpack.c.0.s8 %v6369
    %v6371 = vlaneseq
    %v6372 = vshrl.u32 %v6371, 7
    %v6373 = vsub.s32 %v6370, %v6372
    %v6374 = vrot.slane %v6366, %v6373
    %v6376 = vunpack.c.l.s4 1983009808
    %v6377 = vunpack.c.0.s8 %v6376
    %v6378 = vlaneseq
    %v6379 = vshrl.u32 %v6378, 7
    %v6380 = vsub.s32 %v6377, %v6379
    %v6381 = vrot.slane %v6367, %v6380
    %v6382 = vcombine.low %v6374, %v6381
    %v6383 = vcombine.low %v4839, %v4846
    %v6384 = vcombine.low %v4853, %v4860
    %v6386 = vunpack.c.l.s4 1983009808
    %v6387 = vunpack.c.0.s8 %v6386
    %v6388 = vlaneseq
    %v6389 = vshrl.u32 %v6388, 7
    %v6390 = vsub.s32 %v6387, %v6389
    %v6391 = vrot.slane %v6383, %v6390
    %v6393 = vunpack.c.l.s4 1983009808
    %v6394 = vunpack.c.0.s8 %v6393
    %v6395 = vlaneseq
    %v6396 = vshrl.u32 %v6395, 7
    %v6397 = vsub.s32 %v6394, %v6396
    %v6398 = vrot.slane %v6384, %v6397
    %v6399 = vcombine.low %v6391, %v6398
    %v6400 = vcombine.low %v4867, %v4874
    %v6401 = vcombine.low %v4881, %v4888
    %v6403 = vunpack.c.l.s4 1983009808
    %v6404 = vunpack.c.0.s8 %v6403
    %v6405 = vlaneseq
    %v6406 = vshrl.u32 %v6405, 7
    %v6407 = vsub.s32 %v6404, %v6406
    %v6408 = vrot.slane %v6400, %v6407
    %v6410 = vunpack.c.l.s4 1983009808
    %v6411 = vunpack.c.0.s8 %v6410
    %v6412 = vlaneseq
    %v6413 = vshrl.u32 %v6412, 7
    %v6414 = vsub.s32 %v6411, %v6413
    %v6415 = vrot.slane %v6401, %v6414
    %v6416 = vcombine.low %v6408, %v6415
    %v6417 = vcombine.low %v4895, %v4902
    %v6418 = vcombine.low %v4909, %v4916
    %v6420 = vunpack.c.l.s4 1983009808
    %v6421 = vunpack.c.0.s8 %v6420
    %v6422 = vlaneseq
    %v6423 = vshrl.u32 %v6422, 7
    %v6424 = vsub.s32 %v6421, %v6423
    %v6425 = vrot.slane %v6417, %v6424
    %v6427 = vunpack.c.l.s4 1983009808
    %v6428 = vunpack.c.0.s8 %v6427
    %v6429 = vlaneseq
    %v6430 = vshrl.u32 %v6429, 7
    %v6431 = vsub.s32 %v6428, %v6430
    %v6432 = vrot.slane %v6418, %v6431
    %v6433 = vcombine.low %v6425, %v6432
    %v6434 = vcombine.low %v4923, %v4930
    %v6435 = vcombine.low %v4937, %v4944
    %v6437 = vunpack.c.l.s4 1983009808
    %v6438 = vunpack.c.0.s8 %v6437
    %v6439 = vlaneseq
    %v6440 = vshrl.u32 %v6439, 7
    %v6441 = vsub.s32 %v6438, %v6440
    %v6442 = vrot.slane %v6434, %v6441
    %v6444 = vunpack.c.l.s4 1983009808
    %v6445 = vunpack.c.0.s8 %v6444
    %v6446 = vlaneseq
    %v6447 = vshrl.u32 %v6446, 7
    %v6448 = vsub.s32 %v6445, %v6447
    %v6449 = vrot.slane %v6435, %v6448
    %v6450 = vcombine.low %v6442, %v6449
    %v6451 = vcombine.low %v4951, %v4958
    %v6452 = vcombine.low %v4965, %v4972
    %v6454 = vunpack.c.l.s4 1983009808
    %v6455 = vunpack.c.0.s8 %v6454
    %v6456 = vlaneseq
    %v6457 = vshrl.u32 %v6456, 7
    %v6458 = vsub.s32 %v6455, %v6457
    %v6459 = vrot.slane %v6451, %v6458
    %v6461 = vunpack.c.l.s4 1983009808
    %v6462 = vunpack.c.0.s8 %v6461
    %v6463 = vlaneseq
    %v6464 = vshrl.u32 %v6463, 7
    %v6465 = vsub.s32 %v6462, %v6464
    %v6466 = vrot.slane %v6452, %v6465
    %v6467 = vcombine.low %v6459, %v6466
    %v6468 = vcombine.low %v4979, %v4986
    %v6469 = vcombine.low %v4993, %v5000
    %v6471 = vunpack.c.l.s4 1983009808
    %v6472 = vunpack.c.0.s8 %v6471
    %v6473 = vlaneseq
    %v6474 = vshrl.u32 %v6473, 7
    %v6475 = vsub.s32 %v6472, %v6474
    %v6476 = vrot.slane %v6468, %v6475
    %v6478 = vunpack.c.l.s4 1983009808
    %v6479 = vunpack.c.0.s8 %v6478
    %v6480 = vlaneseq
    %v6481 = vshrl.u32 %v6480, 7
    %v6482 = vsub.s32 %v6479, %v6481
    %v6483 = vrot.slane %v6469, %v6482
    %v6484 = vcombine.low %v6476, %v6483
    %v6485 = vcombine.low %v5007, %v5014
    %v6486 = vcombine.low %v5021, %v5028
    %v6488 = vunpack.c.l.s4 1983009808
    %v6489 = vunpack.c.0.s8 %v6488
    %v6490 = vlaneseq
    %v6491 = vshrl.u32 %v6490, 7
    %v6492 = vsub.s32 %v6489, %v6491
    %v6493 = vrot.slane %v6485, %v6492
    %v6495 = vunpack.c.l.s4 1983009808
    %v6496 = vunpack.c.0.s8 %v6495
    %v6497 = vlaneseq
    %v6498 = vshrl.u32 %v6497, 7
    %v6499 = vsub.s32 %v6496, %v6498
    %v6500 = vrot.slane %v6486, %v6499
    %v6501 = vcombine.low %v6493, %v6500
    %v6502 = vcombine.low %v5035, %v5042
    %v6503 = vcombine.low %v5049, %v5056
    %v6505 = vunpack.c.l.s4 1983009808
    %v6506 = vunpack.c.0.s8 %v6505
    %v6507 = vlaneseq
    %v6508 = vshrl.u32 %v6507, 7
    %v6509 = vsub.s32 %v6506, %v6508
    %v6510 = vrot.slane %v6502, %v6509
    %v6512 = vunpack.c.l.s4 1983009808
    %v6513 = vunpack.c.0.s8 %v6512
    %v6514 = vlaneseq
    %v6515 = vshrl.u32 %v6514, 7
    %v6516 = vsub.s32 %v6513, %v6515
    %v6517 = vrot.slane %v6503, %v6516
    %v6518 = vcombine.low %v6510, %v6517
    %v6519 = vcombine.low %v5063, %v5070
    %v6520 = vcombine.low %v5077, %v5084
    %v6522 = vunpack.c.l.s4 1983009808
    %v6523 = vunpack.c.0.s8 %v6522
    %v6524 = vlaneseq
    %v6525 = vshrl.u32 %v6524, 7
    %v6526 = vsub.s32 %v6523, %v6525
    %v6527 = vrot.slane %v6519, %v6526
    %v6529 = vunpack.c.l.s4 1983009808
    %v6530 = vunpack.c.0.s8 %v6529
    %v6531 = vlaneseq
    %v6532 = vshrl.u32 %v6531, 7
    %v6533 = vsub.s32 %v6530, %v6532
    %v6534 = vrot.slane %v6520, %v6533
    %v6535 = vcombine.low %v6527, %v6534
    %v6536 = vcombine.low %v5091, %v5098
    %v6537 = vcombine.low %v5105, %v5112
    %v6539 = vunpack.c.l.s4 1983009808
    %v6540 = vunpack.c.0.s8 %v6539
    %v6541 = vlaneseq
    %v6542 = vshrl.u32 %v6541, 7
    %v6543 = vsub.s32 %v6540, %v6542
    %v6544 = vrot.slane %v6536, %v6543
    %v6546 = vunpack.c.l.s4 1983009808
    %v6547 = vunpack.c.0.s8 %v6546
    %v6548 = vlaneseq
    %v6549 = vshrl.u32 %v6548, 7
    %v6550 = vsub.s32 %v6547, %v6549
    %v6551 = vrot.slane %v6537, %v6550
    %v6552 = vcombine.low %v6544, %v6551
    %v6553 = vcombine.low %v5119, %v5126
    %v6554 = vcombine.low %v5133, %v5140
    %v6556 = vunpack.c.l.s4 1983009808
    %v6557 = vunpack.c.0.s8 %v6556
    %v6558 = vlaneseq
    %v6559 = vshrl.u32 %v6558, 7
    %v6560 = vsub.s32 %v6557, %v6559
    %v6561 = vrot.slane %v6553, %v6560
    %v6563 = vunpack.c.l.s4 1983009808
    %v6564 = vunpack.c.0.s8 %v6563
    %v6565 = vlaneseq
    %v6566 = vshrl.u32 %v6565, 7
    %v6567 = vsub.s32 %v6564, %v6566
    %v6568 = vrot.slane %v6554, %v6567
    %v6569 = vcombine.low %v6561, %v6568
    %v6570 = vcombine.low %v5147, %v5154
    %v6571 = vcombine.low %v5161, %v5168
    %v6573 = vunpack.c.l.s4 1983009808
    %v6574 = vunpack.c.0.s8 %v6573
    %v6575 = vlaneseq
    %v6576 = vshrl.u32 %v6575, 7
    %v6577 = vsub.s32 %v6574, %v6576
    %v6578 = vrot.slane %v6570, %v6577
    %v6580 = vunpack.c.l.s4 1983009808
    %v6581 = vunpack.c.0.s8 %v6580
    %v6582 = vlaneseq
    %v6583 = vshrl.u32 %v6582, 7
    %v6584 = vsub.s32 %v6581, %v6583
    %v6585 = vrot.slane %v6571, %v6584
    %v6586 = vcombine.low %v6578, %v6585
    %v6587 = vcombine.low %v5175, %v5182
    %v6588 = vcombine.low %v5189, %v5196
    %v6590 = vunpack.c.l.s4 1983009808
    %v6591 = vunpack.c.0.s8 %v6590
    %v6592 = vlaneseq
    %v6593 = vshrl.u32 %v6592, 7
    %v6594 = vsub.s32 %v6591, %v6593
    %v6595 = vrot.slane %v6587, %v6594
    %v6597 = vunpack.c.l.s4 1983009808
    %v6598 = vunpack.c.0.s8 %v6597
    %v6599 = vlaneseq
    %v6600 = vshrl.u32 %v6599, 7
    %v6601 = vsub.s32 %v6598, %v6600
    %v6602 = vrot.slane %v6588, %v6601
    %v6603 = vcombine.low %v6595, %v6602
    %v6604 = vcombine.low %v5203, %v5210
    %v6605 = vcombine.low %v5217, %v5224
    %v6607 = vunpack.c.l.s4 1983009808
    %v6608 = vunpack.c.0.s8 %v6607
    %v6609 = vlaneseq
    %v6610 = vshrl.u32 %v6609, 7
    %v6611 = vsub.s32 %v6608, %v6610
    %v6612 = vrot.slane %v6604, %v6611
    %v6614 = vunpack.c.l.s4 1983009808
    %v6615 = vunpack.c.0.s8 %v6614
    %v6616 = vlaneseq
    %v6617 = vshrl.u32 %v6616, 7
    %v6618 = vsub.s32 %v6615, %v6617
    %v6619 = vrot.slane %v6605, %v6618
    %v6620 = vcombine.low %v6612, %v6619
    %v6621 = vcombine.low %v5231, %v5238
    %v6622 = vcombine.low %v5245, %v5252
    %v6624 = vunpack.c.l.s4 1983009808
    %v6625 = vunpack.c.0.s8 %v6624
    %v6626 = vlaneseq
    %v6627 = vshrl.u32 %v6626, 7
    %v6628 = vsub.s32 %v6625, %v6627
    %v6629 = vrot.slane %v6621, %v6628
    %v6631 = vunpack.c.l.s4 1983009808
    %v6632 = vunpack.c.0.s8 %v6631
    %v6633 = vlaneseq
    %v6634 = vshrl.u32 %v6633, 7
    %v6635 = vsub.s32 %v6632, %v6634
    %v6636 = vrot.slane %v6622, %v6635
    %v6637 = vcombine.low %v6629, %v6636
    %v6638 = vcombine.low %v5259, %v5266
    %v6639 = vcombine.low %v5273, %v5280
    %v6641 = vunpack.c.l.s4 1983009808
    %v6642 = vunpack.c.0.s8 %v6641
    %v6643 = vlaneseq
    %v6644 = vshrl.u32 %v6643, 7
    %v6645 = vsub.s32 %v6642, %v6644
    %v6646 = vrot.slane %v6638, %v6645
    %v6648 = vunpack.c.l.s4 1983009808
    %v6649 = vunpack.c.0.s8 %v6648
    %v6650 = vlaneseq
    %v6651 = vshrl.u32 %v6650, 7
    %v6652 = vsub.s32 %v6649, %v6651
    %v6653 = vrot.slane %v6639, %v6652
    %v6654 = vcombine.low %v6646, %v6653
    %v6655 = vcombine.low %v5287, %v5294
    %v6656 = vcombine.low %v5301, %v5308
    %v6658 = vunpack.c.l.s4 1983009808
    %v6659 = vunpack.c.0.s8 %v6658
    %v6660 = vlaneseq
    %v6661 = vshrl.u32 %v6660, 7
    %v6662 = vsub.s32 %v6659, %v6661
    %v6663 = vrot.slane %v6655, %v6662
    %v6665 = vunpack.c.l.s4 1983009808
    %v6666 = vunpack.c.0.s8 %v6665
    %v6667 = vlaneseq
    %v6668 = vshrl.u32 %v6667, 7
    %v6669 = vsub.s32 %v6666, %v6668
    %v6670 = vrot.slane %v6656, %v6669
    %v6671 = vcombine.low %v6663, %v6670
    %v6672 = vcombine.low %v5315, %v5322
    %v6673 = vcombine.low %v5329, %v5336
    %v6675 = vunpack.c.l.s4 1983009808
    %v6676 = vunpack.c.0.s8 %v6675
    %v6677 = vlaneseq
    %v6678 = vshrl.u32 %v6677, 7
    %v6679 = vsub.s32 %v6676, %v6678
    %v6680 = vrot.slane %v6672, %v6679
    %v6682 = vunpack.c.l.s4 1983009808
    %v6683 = vunpack.c.0.s8 %v6682
    %v6684 = vlaneseq
    %v6685 = vshrl.u32 %v6684, 7
    %v6686 = vsub.s32 %v6683, %v6685
    %v6687 = vrot.slane %v6673, %v6686
    %v6688 = vcombine.low %v6680, %v6687
    %v6689 = vcombine.low %v5343, %v5350
    %v6690 = vcombine.low %v5357, %v5364
    %v6692 = vunpack.c.l.s4 1983009808
    %v6693 = vunpack.c.0.s8 %v6692
    %v6694 = vlaneseq
    %v6695 = vshrl.u32 %v6694, 7
    %v6696 = vsub.s32 %v6693, %v6695
    %v6697 = vrot.slane %v6689, %v6696
    %v6699 = vunpack.c.l.s4 1983009808
    %v6700 = vunpack.c.0.s8 %v6699
    %v6701 = vlaneseq
    %v6702 = vshrl.u32 %v6701, 7
    %v6703 = vsub.s32 %v6700, %v6702
    %v6704 = vrot.slane %v6690, %v6703
    %v6705 = vcombine.low %v6697, %v6704
    %v6706 = vcombine.low %v5371, %v5378
    %v6707 = vcombine.low %v5385, %v5392
    %v6709 = vunpack.c.l.s4 1983009808
    %v6710 = vunpack.c.0.s8 %v6709
    %v6711 = vlaneseq
    %v6712 = vshrl.u32 %v6711, 7
    %v6713 = vsub.s32 %v6710, %v6712
    %v6714 = vrot.slane %v6706, %v6713
    %v6716 = vunpack.c.l.s4 1983009808
    %v6717 = vunpack.c.0.s8 %v6716
    %v6718 = vlaneseq
    %v6719 = vshrl.u32 %v6718, 7
    %v6720 = vsub.s32 %v6717, %v6719
    %v6721 = vrot.slane %v6707, %v6720
    %v6722 = vcombine.low %v6714, %v6721
    %v6723 = vcombine.low %v5399, %v5406
    %v6724 = vcombine.low %v5413, %v5420
    %v6726 = vunpack.c.l.s4 1983009808
    %v6727 = vunpack.c.0.s8 %v6726
    %v6728 = vlaneseq
    %v6729 = vshrl.u32 %v6728, 7
    %v6730 = vsub.s32 %v6727, %v6729
    %v6731 = vrot.slane %v6723, %v6730
    %v6733 = vunpack.c.l.s4 1983009808
    %v6734 = vunpack.c.0.s8 %v6733
    %v6735 = vlaneseq
    %v6736 = vshrl.u32 %v6735, 7
    %v6737 = vsub.s32 %v6734, %v6736
    %v6738 = vrot.slane %v6724, %v6737
    %v6739 = vcombine.low %v6731, %v6738
    %v6740 = vcombine.low %v5427, %v5434
    %v6741 = vcombine.low %v5441, %v5448
    %v6743 = vunpack.c.l.s4 1983009808
    %v6744 = vunpack.c.0.s8 %v6743
    %v6745 = vlaneseq
    %v6746 = vshrl.u32 %v6745, 7
    %v6747 = vsub.s32 %v6744, %v6746
    %v6748 = vrot.slane %v6740, %v6747
    %v6750 = vunpack.c.l.s4 1983009808
    %v6751 = vunpack.c.0.s8 %v6750
    %v6752 = vlaneseq
    %v6753 = vshrl.u32 %v6752, 7
    %v6754 = vsub.s32 %v6751, %v6753
    %v6755 = vrot.slane %v6741, %v6754
    %v6756 = vcombine.low %v6748, %v6755
    %v6757 = vcombine.low %v5455, %v5462
    %v6758 = vcombine.low %v5469, %v5476
    %v6760 = vunpack.c.l.s4 1983009808
    %v6761 = vunpack.c.0.s8 %v6760
    %v6762 = vlaneseq
    %v6763 = vshrl.u32 %v6762, 7
    %v6764 = vsub.s32 %v6761, %v6763
    %v6765 = vrot.slane %v6757, %v6764
    %v6767 = vunpack.c.l.s4 1983009808
    %v6768 = vunpack.c.0.s8 %v6767
    %v6769 = vlaneseq
    %v6770 = vshrl.u32 %v6769, 7
    %v6771 = vsub.s32 %v6768, %v6770
    %v6772 = vrot.slane %v6758, %v6771
    %v6773 = vcombine.low %v6765, %v6772
    %v6774 = vcombine.low %v5483, %v5490
    %v6775 = vcombine.low %v5497, %v5504
    %v6777 = vunpack.c.l.s4 1983009808
    %v6778 = vunpack.c.0.s8 %v6777
    %v6779 = vlaneseq
    %v6780 = vshrl.u32 %v6779, 7
    %v6781 = vsub.s32 %v6778, %v6780
    %v6782 = vrot.slane %v6774, %v6781
    %v6784 = vunpack.c.l.s4 1983009808
    %v6785 = vunpack.c.0.s8 %v6784
    %v6786 = vlaneseq
    %v6787 = vshrl.u32 %v6786, 7
    %v6788 = vsub.s32 %v6785, %v6787
    %v6789 = vrot.slane %v6775, %v6788
    %v6790 = vcombine.low %v6782, %v6789
    %v6791 = vcombine.low %v5511, %v5518
    %v6792 = vcombine.low %v5525, %v5532
    %v6794 = vunpack.c.l.s4 1983009808
    %v6795 = vunpack.c.0.s8 %v6794
    %v6796 = vlaneseq
    %v6797 = vshrl.u32 %v6796, 7
    %v6798 = vsub.s32 %v6795, %v6797
    %v6799 = vrot.slane %v6791, %v6798
    %v6801 = vunpack.c.l.s4 1983009808
    %v6802 = vunpack.c.0.s8 %v6801
    %v6803 = vlaneseq
    %v6804 = vshrl.u32 %v6803, 7
    %v6805 = vsub.s32 %v6802, %v6804
    %v6806 = vrot.slane %v6792, %v6805
    %v6807 = vcombine.low %v6799, %v6806
    %v6808 = vcombine.low %v5539, %v5546
    %v6809 = vcombine.low %v5553, %v5560
    %v6811 = vunpack.c.l.s4 1983009808
    %v6812 = vunpack.c.0.s8 %v6811
    %v6813 = vlaneseq
    %v6814 = vshrl.u32 %v6813, 7
    %v6815 = vsub.s32 %v6812, %v6814
    %v6816 = vrot.slane %v6808, %v6815
    %v6818 = vunpack.c.l.s4 1983009808
    %v6819 = vunpack.c.0.s8 %v6818
    %v6820 = vlaneseq
    %v6821 = vshrl.u32 %v6820, 7
    %v6822 = vsub.s32 %v6819, %v6821
    %v6823 = vrot.slane %v6809, %v6822
    %v6824 = vcombine.low %v6816, %v6823
    %v6825 = vcombine.low %v5567, %v5574
    %v6826 = vcombine.low %v5581, %v5588
    %v6828 = vunpack.c.l.s4 1983009808
    %v6829 = vunpack.c.0.s8 %v6828
    %v6830 = vlaneseq
    %v6831 = vshrl.u32 %v6830, 7
    %v6832 = vsub.s32 %v6829, %v6831
    %v6833 = vrot.slane %v6825, %v6832
    %v6835 = vunpack.c.l.s4 1983009808
    %v6836 = vunpack.c.0.s8 %v6835
    %v6837 = vlaneseq
    %v6838 = vshrl.u32 %v6837, 7
    %v6839 = vsub.s32 %v6836, %v6838
    %v6840 = vrot.slane %v6826, %v6839
    %v6841 = vcombine.low %v6833, %v6840
    %v6842 = vcombine.low %v5595, %v5602
    %v6843 = vcombine.low %v5609, %v5616
    %v6845 = vunpack.c.l.s4 1983009808
    %v6846 = vunpack.c.0.s8 %v6845
    %v6847 = vlaneseq
    %v6848 = vshrl.u32 %v6847, 7
    %v6849 = vsub.s32 %v6846, %v6848
    %v6850 = vrot.slane %v6842, %v6849
    %v6852 = vunpack.c.l.s4 1983009808
    %v6853 = vunpack.c.0.s8 %v6852
    %v6854 = vlaneseq
    %v6855 = vshrl.u32 %v6854, 7
    %v6856 = vsub.s32 %v6853, %v6855
    %v6857 = vrot.slane %v6843, %v6856
    %v6858 = vcombine.low %v6850, %v6857
    %v6859 = vcombine.low %v5623, %v5630
    %v6860 = vcombine.low %v5637, %v5644
    %v6862 = vunpack.c.l.s4 1983009808
    %v6863 = vunpack.c.0.s8 %v6862
    %v6864 = vlaneseq
    %v6865 = vshrl.u32 %v6864, 7
    %v6866 = vsub.s32 %v6863, %v6865
    %v6867 = vrot.slane %v6859, %v6866
    %v6869 = vunpack.c.l.s4 1983009808
    %v6870 = vunpack.c.0.s8 %v6869
    %v6871 = vlaneseq
    %v6872 = vshrl.u32 %v6871, 7
    %v6873 = vsub.s32 %v6870, %v6872
    %v6874 = vrot.slane %v6860, %v6873
    %v6875 = vcombine.low %v6867, %v6874
    %v6876 = vcombine.low %v5651, %v5658
    %v6877 = vcombine.low %v5665, %v5672
    %v6879 = vunpack.c.l.s4 1983009808
    %v6880 = vunpack.c.0.s8 %v6879
    %v6881 = vlaneseq
    %v6882 = vshrl.u32 %v6881, 7
    %v6883 = vsub.s32 %v6880, %v6882
    %v6884 = vrot.slane %v6876, %v6883
    %v6886 = vunpack.c.l.s4 1983009808
    %v6887 = vunpack.c.0.s8 %v6886
    %v6888 = vlaneseq
    %v6889 = vshrl.u32 %v6888, 7
    %v6890 = vsub.s32 %v6887, %v6889
    %v6891 = vrot.slane %v6877, %v6890
    %v6892 = vcombine.low %v6884, %v6891
    %v6893 = vcombine.low %v5679, %v5686
    %v6894 = vcombine.low %v5693, %v5700
    %v6896 = vunpack.c.l.s4 1983009808
    %v6897 = vunpack.c.0.s8 %v6896
    %v6898 = vlaneseq
    %v6899 = vshrl.u32 %v6898, 7
    %v6900 = vsub.s32 %v6897, %v6899
    %v6901 = vrot.slane %v6893, %v6900
    %v6903 = vunpack.c.l.s4 1983009808
    %v6904 = vunpack.c.0.s8 %v6903
    %v6905 = vlaneseq
    %v6906 = vshrl.u32 %v6905, 7
    %v6907 = vsub.s32 %v6904, %v6906
    %v6908 = vrot.slane %v6894, %v6907
    %v6909 = vcombine.low %v6901, %v6908
    %v6910 = vcombine.low %v5707, %v5714
    %v6911 = vcombine.low %v5721, %v5728
    %v6913 = vunpack.c.l.s4 1983009808
    %v6914 = vunpack.c.0.s8 %v6913
    %v6915 = vlaneseq
    %v6916 = vshrl.u32 %v6915, 7
    %v6917 = vsub.s32 %v6914, %v6916
    %v6918 = vrot.slane %v6910, %v6917
    %v6920 = vunpack.c.l.s4 1983009808
    %v6921 = vunpack.c.0.s8 %v6920
    %v6922 = vlaneseq
    %v6923 = vshrl.u32 %v6922, 7
    %v6924 = vsub.s32 %v6921, %v6923
    %v6925 = vrot.slane %v6911, %v6924
    %v6926 = vcombine.low %v6918, %v6925
    %v6927 = vcombine.low %v5735, %v5742
    %v6928 = vcombine.low %v5749, %v5756
    %v6930 = vunpack.c.l.s4 1983009808
    %v6931 = vunpack.c.0.s8 %v6930
    %v6932 = vlaneseq
    %v6933 = vshrl.u32 %v6932, 7
    %v6934 = vsub.s32 %v6931, %v6933
    %v6935 = vrot.slane %v6927, %v6934
    %v6937 = vunpack.c.l.s4 1983009808
    %v6938 = vunpack.c.0.s8 %v6937
    %v6939 = vlaneseq
    %v6940 = vshrl.u32 %v6939, 7
    %v6941 = vsub.s32 %v6938, %v6940
    %v6942 = vrot.slane %v6928, %v6941
    %v6943 = vcombine.low %v6935, %v6942
    %v6944 = vcombine.low %v5763, %v5770
    %v6945 = vcombine.low %v5777, %v5784
    %v6947 = vunpack.c.l.s4 1983009808
    %v6948 = vunpack.c.0.s8 %v6947
    %v6949 = vlaneseq
    %v6950 = vshrl.u32 %v6949, 7
    %v6951 = vsub.s32 %v6948, %v6950
    %v6952 = vrot.slane %v6944, %v6951
    %v6954 = vunpack.c.l.s4 1983009808
    %v6955 = vunpack.c.0.s8 %v6954
    %v6956 = vlaneseq
    %v6957 = vshrl.u32 %v6956, 7
    %v6958 = vsub.s32 %v6955, %v6957
    %v6959 = vrot.slane %v6945, %v6958
    %v6960 = vcombine.low %v6952, %v6959
    %v6961 = vcombine.low %v5791, %v5798
    %v6962 = vcombine.low %v5805, %v5812
    %v6964 = vunpack.c.l.s4 1983009808
    %v6965 = vunpack.c.0.s8 %v6964
    %v6966 = vlaneseq
    %v6967 = vshrl.u32 %v6966, 7
    %v6968 = vsub.s32 %v6965, %v6967
    %v6969 = vrot.slane %v6961, %v6968
    %v6971 = vunpack.c.l.s4 1983009808
    %v6972 = vunpack.c.0.s8 %v6971
    %v6973 = vlaneseq
    %v6974 = vshrl.u32 %v6973, 7
    %v6975 = vsub.s32 %v6972, %v6974
    %v6976 = vrot.slane %v6962, %v6975
    %v6977 = vcombine.low %v6969, %v6976
    %v6978 = vcombine.low %v5819, %v5826
    %v6979 = vcombine.low %v5833, %v5840
    %v6981 = vunpack.c.l.s4 1983009808
    %v6982 = vunpack.c.0.s8 %v6981
    %v6983 = vlaneseq
    %v6984 = vshrl.u32 %v6983, 7
    %v6985 = vsub.s32 %v6982, %v6984
    %v6986 = vrot.slane %v6978, %v6985
    %v6988 = vunpack.c.l.s4 1983009808
    %v6989 = vunpack.c.0.s8 %v6988
    %v6990 = vlaneseq
    %v6991 = vshrl.u32 %v6990, 7
    %v6992 = vsub.s32 %v6989, %v6991
    %v6993 = vrot.slane %v6979, %v6992
    %v6994 = vcombine.low %v6986, %v6993
    %v6995 = vcombine.low %v5847, %v5854
    %v6996 = vcombine.low %v5861, %v5868
    %v6998 = vunpack.c.l.s4 1983009808
    %v6999 = vunpack.c.0.s8 %v6998
    %v7000 = vlaneseq
    %v7001 = vshrl.u32 %v7000, 7
    %v7002 = vsub.s32 %v6999, %v7001
    %v7003 = vrot.slane %v6995, %v7002
    %v7005 = vunpack.c.l.s4 1983009808
    %v7006 = vunpack.c.0.s8 %v7005
    %v7007 = vlaneseq
    %v7008 = vshrl.u32 %v7007, 7
    %v7009 = vsub.s32 %v7006, %v7008
    %v7010 = vrot.slane %v6996, %v7009
    %v7011 = vcombine.low %v7003, %v7010
    %v7012 = vcombine.low %v5875, %v5882
    %v7013 = vcombine.low %v5889, %v5896
    %v7015 = vunpack.c.l.s4 1983009808
    %v7016 = vunpack.c.0.s8 %v7015
    %v7017 = vlaneseq
    %v7018 = vshrl.u32 %v7017, 7
    %v7019 = vsub.s32 %v7016, %v7018
    %v7020 = vrot.slane %v7012, %v7019
    %v7022 = vunpack.c.l.s4 1983009808
    %v7023 = vunpack.c.0.s8 %v7022
    %v7024 = vlaneseq
    %v7025 = vshrl.u32 %v7024, 7
    %v7026 = vsub.s32 %v7023, %v7025
    %v7027 = vrot.slane %v7013, %v7026
    %v7028 = vcombine.low %v7020, %v7027
    %v7029 = vcombine.low %v5903, %v5910
    %v7030 = vcombine.low %v5917, %v5924
    %v7032 = vunpack.c.l.s4 1983009808
    %v7033 = vunpack.c.0.s8 %v7032
    %v7034 = vlaneseq
    %v7035 = vshrl.u32 %v7034, 7
    %v7036 = vsub.s32 %v7033, %v7035
    %v7037 = vrot.slane %v7029, %v7036
    %v7039 = vunpack.c.l.s4 1983009808
    %v7040 = vunpack.c.0.s8 %v7039
    %v7041 = vlaneseq
    %v7042 = vshrl.u32 %v7041, 7
    %v7043 = vsub.s32 %v7040, %v7042
    %v7044 = vrot.slane %v7030, %v7043
    %v7045 = vcombine.low %v7037, %v7044
    %v7046 = vcombine.low %v5931, %v5938
    %v7047 = vcombine.low %v5945, %v5952
    %v7049 = vunpack.c.l.s4 1983009808
    %v7050 = vunpack.c.0.s8 %v7049
    %v7051 = vlaneseq
    %v7052 = vshrl.u32 %v7051, 7
    %v7053 = vsub.s32 %v7050, %v7052
    %v7054 = vrot.slane %v7046, %v7053
    %v7056 = vunpack.c.l.s4 1983009808
    %v7057 = vunpack.c.0.s8 %v7056
    %v7058 = vlaneseq
    %v7059 = vshrl.u32 %v7058, 7
    %v7060 = vsub.s32 %v7057, %v7059
    %v7061 = vrot.slane %v7047, %v7060
    %v7062 = vcombine.low %v7054, %v7061
    %v7063 = vcombine.low %v5959, %v5966
    %v7064 = vcombine.low %v5973, %v5980
    %v7066 = vunpack.c.l.s4 1983009808
    %v7067 = vunpack.c.0.s8 %v7066
    %v7068 = vlaneseq
    %v7069 = vshrl.u32 %v7068, 7
    %v7070 = vsub.s32 %v7067, %v7069
    %v7071 = vrot.slane %v7063, %v7070
    %v7073 = vunpack.c.l.s4 1983009808
    %v7074 = vunpack.c.0.s8 %v7073
    %v7075 = vlaneseq
    %v7076 = vshrl.u32 %v7075, 7
    %v7077 = vsub.s32 %v7074, %v7076
    %v7078 = vrot.slane %v7064, %v7077
    %v7079 = vcombine.low %v7071, %v7078
    %v7080 = vcombine.low %v5987, %v5994
    %v7081 = vcombine.low %v6001, %v6008
    %v7083 = vunpack.c.l.s4 1983009808
    %v7084 = vunpack.c.0.s8 %v7083
    %v7085 = vlaneseq
    %v7086 = vshrl.u32 %v7085, 7
    %v7087 = vsub.s32 %v7084, %v7086
    %v7088 = vrot.slane %v7080, %v7087
    %v7090 = vunpack.c.l.s4 1983009808
    %v7091 = vunpack.c.0.s8 %v7090
    %v7092 = vlaneseq
    %v7093 = vshrl.u32 %v7092, 7
    %v7094 = vsub.s32 %v7091, %v7093
    %v7095 = vrot.slane %v7081, %v7094
    %v7096 = vcombine.low %v7088, %v7095
    %7097 = vset.pattern.permute.xlu0 0
    %7098 = vperm.xlu0 %7097, %v6025
    %v7099 = vpop.permute.xlu0 %7098
    %7100 = vset.pattern.permute.xlu0 0
    %7101 = vperm.xlu0 %7100, %v6042
    %v7102 = vpop.permute.xlu0 %7101
    %7103 = vset.pattern.permute.xlu0 0
    %7104 = vperm.xlu0 %7103, %v6059
    %v7105 = vpop.permute.xlu0 %7104
    %7106 = vset.pattern.permute.xlu0 0
    %7107 = vperm.xlu0 %7106, %v6076
    %v7108 = vpop.permute.xlu0 %7107
    %7109 = vset.pattern.permute.xlu0 0
    %7110 = vperm.xlu0 %7109, %v6093
    %v7111 = vpop.permute.xlu0 %7110
    %7112 = vset.pattern.permute.xlu0 0
    %7113 = vperm.xlu0 %7112, %v6110
    %v7114 = vpop.permute.xlu0 %7113
    %7115 = vset.pattern.permute.xlu0 0
    %7116 = vperm.xlu0 %7115, %v6127
    %v7117 = vpop.permute.xlu0 %7116
    %7118 = vset.pattern.permute.xlu0 0
    %7119 = vperm.xlu0 %7118, %v6144
    %v7120 = vpop.permute.xlu0 %7119
    %7121 = vset.pattern.permute.xlu0 0
    %7122 = vperm.xlu0 %7121, %v6161
    %v7123 = vpop.permute.xlu0 %7122
    %7124 = vset.pattern.permute.xlu0 0
    %7125 = vperm.xlu0 %7124, %v6178
    %v7126 = vpop.permute.xlu0 %7125
    %7127 = vset.pattern.permute.xlu0 0
    %7128 = vperm.xlu0 %7127, %v6195
    %v7129 = vpop.permute.xlu0 %7128
    %7130 = vset.pattern.permute.xlu0 0
    %7131 = vperm.xlu0 %7130, %v6212
    %v7132 = vpop.permute.xlu0 %7131
    %7133 = vset.pattern.permute.xlu0 0
    %7134 = vperm.xlu0 %7133, %v6229
    %v7135 = vpop.permute.xlu0 %7134
    %7136 = vset.pattern.permute.xlu0 0
    %7137 = vperm.xlu0 %7136, %v6246
    %v7138 = vpop.permute.xlu0 %7137
    %7139 = vset.pattern.permute.xlu0 0
    %7140 = vperm.xlu0 %7139, %v6263
    %v7141 = vpop.permute.xlu0 %7140
    %7142 = vset.pattern.permute.xlu0 0
    %7143 = vperm.xlu0 %7142, %v6280
    %v7144 = vpop.permute.xlu0 %7143
    %7145 = vset.pattern.permute.xlu0 0
    %7146 = vperm.xlu0 %7145, %v6297
    %v7147 = vpop.permute.xlu0 %7146
    %7148 = vset.pattern.permute.xlu0 0
    %7149 = vperm.xlu0 %7148, %v6314
    %v7150 = vpop.permute.xlu0 %7149
    %7151 = vset.pattern.permute.xlu0 0
    %7152 = vperm.xlu0 %7151, %v6331
    %v7153 = vpop.permute.xlu0 %7152
    %7154 = vset.pattern.permute.xlu0 0
    %7155 = vperm.xlu0 %7154, %v6348
    %v7156 = vpop.permute.xlu0 %7155
    %7157 = vset.pattern.permute.xlu0 0
    %7158 = vperm.xlu0 %7157, %v6365
    %v7159 = vpop.permute.xlu0 %7158
    %7160 = vset.pattern.permute.xlu0 0
    %7161 = vperm.xlu0 %7160, %v6382
    %v7162 = vpop.permute.xlu0 %7161
    %7163 = vset.pattern.permute.xlu0 0
    %7164 = vperm.xlu0 %7163, %v6399
    %v7165 = vpop.permute.xlu0 %7164
    %7166 = vset.pattern.permute.xlu0 0
    %7167 = vperm.xlu0 %7166, %v6416
    %v7168 = vpop.permute.xlu0 %7167
    %7169 = vset.pattern.permute.xlu0 0
    %7170 = vperm.xlu0 %7169, %v6433
    %v7171 = vpop.permute.xlu0 %7170
    %7172 = vset.pattern.permute.xlu0 0
    %7173 = vperm.xlu0 %7172, %v6450
    %v7174 = vpop.permute.xlu0 %7173
    %7175 = vset.pattern.permute.xlu0 0
    %7176 = vperm.xlu0 %7175, %v6467
    %v7177 = vpop.permute.xlu0 %7176
    %7178 = vset.pattern.permute.xlu0 0
    %7179 = vperm.xlu0 %7178, %v6484
    %v7180 = vpop.permute.xlu0 %7179
    %7181 = vset.pattern.permute.xlu0 0
    %7182 = vperm.xlu0 %7181, %v6501
    %v7183 = vpop.permute.xlu0 %7182
    %7184 = vset.pattern.permute.xlu0 0
    %7185 = vperm.xlu0 %7184, %v6518
    %v7186 = vpop.permute.xlu0 %7185
    %7187 = vset.pattern.permute.xlu0 0
    %7188 = vperm.xlu0 %7187, %v6535
    %v7189 = vpop.permute.xlu0 %7188
    %7190 = vset.pattern.permute.xlu0 0
    %7191 = vperm.xlu0 %7190, %v6552
    %v7192 = vpop.permute.xlu0 %7191
    %7193 = vset.pattern.permute.xlu0 0
    %7194 = vperm.xlu0 %7193, %v6569
    %v7195 = vpop.permute.xlu0 %7194
    %7196 = vset.pattern.permute.xlu0 0
    %7197 = vperm.xlu0 %7196, %v6586
    %v7198 = vpop.permute.xlu0 %7197
    %7199 = vset.pattern.permute.xlu0 0
    %7200 = vperm.xlu0 %7199, %v6603
    %v7201 = vpop.permute.xlu0 %7200
    %7202 = vset.pattern.permute.xlu0 0
    %7203 = vperm.xlu0 %7202, %v6620
    %v7204 = vpop.permute.xlu0 %7203
    %7205 = vset.pattern.permute.xlu0 0
    %7206 = vperm.xlu0 %7205, %v6637
    %v7207 = vpop.permute.xlu0 %7206
    %7208 = vset.pattern.permute.xlu0 0
    %7209 = vperm.xlu0 %7208, %v6654
    %v7210 = vpop.permute.xlu0 %7209
    %7211 = vset.pattern.permute.xlu0 0
    %7212 = vperm.xlu0 %7211, %v6671
    %v7213 = vpop.permute.xlu0 %7212
    %7214 = vset.pattern.permute.xlu0 0
    %7215 = vperm.xlu0 %7214, %v6688
    %v7216 = vpop.permute.xlu0 %7215
    %7217 = vset.pattern.permute.xlu0 0
    %7218 = vperm.xlu0 %7217, %v6705
    %v7219 = vpop.permute.xlu0 %7218
    %7220 = vset.pattern.permute.xlu0 0
    %7221 = vperm.xlu0 %7220, %v6722
    %v7222 = vpop.permute.xlu0 %7221
    %7223 = vset.pattern.permute.xlu0 0
    %7224 = vperm.xlu0 %7223, %v6739
    %v7225 = vpop.permute.xlu0 %7224
    %7226 = vset.pattern.permute.xlu0 0
    %7227 = vperm.xlu0 %7226, %v6756
    %v7228 = vpop.permute.xlu0 %7227
    %7229 = vset.pattern.permute.xlu0 0
    %7230 = vperm.xlu0 %7229, %v6773
    %v7231 = vpop.permute.xlu0 %7230
    %7232 = vset.pattern.permute.xlu0 0
    %7233 = vperm.xlu0 %7232, %v6790
    %v7234 = vpop.permute.xlu0 %7233
    %7235 = vset.pattern.permute.xlu0 0
    %7236 = vperm.xlu0 %7235, %v6807
    %v7237 = vpop.permute.xlu0 %7236
    %7238 = vset.pattern.permute.xlu0 0
    %7239 = vperm.xlu0 %7238, %v6824
    %v7240 = vpop.permute.xlu0 %7239
    %7241 = vset.pattern.permute.xlu0 0
    %7242 = vperm.xlu0 %7241, %v6841
    %v7243 = vpop.permute.xlu0 %7242
    %7244 = vset.pattern.permute.xlu0 0
    %7245 = vperm.xlu0 %7244, %v6858
    %v7246 = vpop.permute.xlu0 %7245
    %7247 = vset.pattern.permute.xlu0 0
    %7248 = vperm.xlu0 %7247, %v6875
    %v7249 = vpop.permute.xlu0 %7248
    %7250 = vset.pattern.permute.xlu0 0
    %7251 = vperm.xlu0 %7250, %v6892
    %v7252 = vpop.permute.xlu0 %7251
    %7253 = vset.pattern.permute.xlu0 0
    %7254 = vperm.xlu0 %7253, %v6909
    %v7255 = vpop.permute.xlu0 %7254
    %7256 = vset.pattern.permute.xlu0 0
    %7257 = vperm.xlu0 %7256, %v6926
    %v7258 = vpop.permute.xlu0 %7257
    %7259 = vset.pattern.permute.xlu0 0
    %7260 = vperm.xlu0 %7259, %v6943
    %v7261 = vpop.permute.xlu0 %7260
    %7262 = vset.pattern.permute.xlu0 0
    %7263 = vperm.xlu0 %7262, %v6960
    %v7264 = vpop.permute.xlu0 %7263
    %7265 = vset.pattern.permute.xlu0 0
    %7266 = vperm.xlu0 %7265, %v6977
    %v7267 = vpop.permute.xlu0 %7266
    %7268 = vset.pattern.permute.xlu0 0
    %7269 = vperm.xlu0 %7268, %v6994
    %v7270 = vpop.permute.xlu0 %7269
    %7271 = vset.pattern.permute.xlu0 0
    %7272 = vperm.xlu0 %7271, %v7011
    %v7273 = vpop.permute.xlu0 %7272
    %7274 = vset.pattern.permute.xlu0 0
    %7275 = vperm.xlu0 %7274, %v7028
    %v7276 = vpop.permute.xlu0 %7275
    %7277 = vset.pattern.permute.xlu0 0
    %7278 = vperm.xlu0 %7277, %v7045
    %v7279 = vpop.permute.xlu0 %7278
    %7280 = vset.pattern.permute.xlu0 0
    %7281 = vperm.xlu0 %7280, %v7062
    %v7282 = vpop.permute.xlu0 %7281
    %7283 = vset.pattern.permute.xlu0 0
    %7284 = vperm.xlu0 %7283, %v7079
    %v7285 = vpop.permute.xlu0 %7284
    %7286 = vset.pattern.permute.xlu0 0
    %7287 = vperm.xlu0 %7286, %v7096
    %v7288 = vpop.permute.xlu0 %7287
    %v7289 = vlaneseq
    %v7290 = vshrl.u32 %v7289, 7
    %v7291 = vsub.s32 %v3473, %v7290
    %v7292 = vrot.slane %v7099, %v7291
    %v7293 = vlaneseq
    %v7294 = vshrl.u32 %v7293, 7
    %v7295 = vsub.s32 %v3478, %v7294
    %v7296 = vrot.slane %v7102, %v7295
    %v7297 = vsel %vm3483, %v7296, %v7292
    %v7298 = vlaneseq
    %v7299 = vshrl.u32 %v7298, 7
    %v7300 = vsub.s32 %v3485, %v7299
    %v7301 = vrot.slane %v7105, %v7300
    %v7302 = vsel %vm3490, %v7301, %v7297
    %v7303 = vlaneseq
    %v7304 = vshrl.u32 %v7303, 7
    %v7305 = vsub.s32 %v3492, %v7304
    %v7306 = vrot.slane %v7108, %v7305
    %v7307 = vsel %vm3497, %v7306, %v7302
    %v7308 = vlaneseq
    %v7309 = vshrl.u32 %v7308, 7
    %v7310 = vsub.s32 %v3499, %v7309
    %v7311 = vrot.slane %v7111, %v7310
    %v7312 = vsel %vm3504, %v7311, %v7307
    %v7313 = vlaneseq
    %v7314 = vshrl.u32 %v7313, 7
    %v7315 = vsub.s32 %v3506, %v7314
    %v7316 = vrot.slane %v7114, %v7315
    %v7317 = vsel %vm3511, %v7316, %v7312
    %v7318 = vlaneseq
    %v7319 = vshrl.u32 %v7318, 7
    %v7320 = vsub.s32 %v3513, %v7319
    %v7321 = vrot.slane %v7117, %v7320
    %v7322 = vsel %vm3518, %v7321, %v7317
    %v7323 = vlaneseq
    %v7324 = vshrl.u32 %v7323, 7
    %v7325 = vsub.s32 %v3520, %v7324
    %v7326 = vrot.slane %v7120, %v7325
    %v7327 = vsel %vm3525, %v7326, %v7322
    %v7328 = vlaneseq
    %v7329 = vshrl.u32 %v7328, 7
    %v7330 = vsub.s32 %v3527, %v7329
    %v7331 = vrot.slane %v7123, %v7330
    %v7332 = vsel %vm3532, %v7331, %v7327
    %v7333 = vlaneseq
    %v7334 = vshrl.u32 %v7333, 7
    %v7335 = vsub.s32 %v3534, %v7334
    %v7336 = vrot.slane %v7126, %v7335
    %v7337 = vsel %vm3539, %v7336, %v7332
    %v7338 = vlaneseq
    %v7339 = vshrl.u32 %v7338, 7
    %v7340 = vsub.s32 %v3541, %v7339
    %v7341 = vrot.slane %v7129, %v7340
    %v7342 = vsel %vm3546, %v7341, %v7337
    %v7343 = vlaneseq
    %v7344 = vshrl.u32 %v7343, 7
    %v7345 = vsub.s32 %v3548, %v7344
    %v7346 = vrot.slane %v7132, %v7345
    %v7347 = vsel %vm3553, %v7346, %v7342
    %v7348 = vlaneseq
    %v7349 = vshrl.u32 %v7348, 7
    %v7350 = vsub.s32 %v3555, %v7349
    %v7351 = vrot.slane %v7135, %v7350
    %v7352 = vsel %vm3560, %v7351, %v7347
    %v7353 = vlaneseq
    %v7354 = vshrl.u32 %v7353, 7
    %v7355 = vsub.s32 %v3562, %v7354
    %v7356 = vrot.slane %v7138, %v7355
    %v7357 = vsel %vm3567, %v7356, %v7352
    %v7358 = vlaneseq
    %v7359 = vshrl.u32 %v7358, 7
    %v7360 = vsub.s32 %v3569, %v7359
    %v7361 = vrot.slane %v7141, %v7360
    %v7362 = vsel %vm3574, %v7361, %v7357
    %v7363 = vlaneseq
    %v7364 = vshrl.u32 %v7363, 7
    %v7365 = vsub.s32 %v3576, %v7364
    %v7366 = vrot.slane %v7144, %v7365
    %v7367 = vsel %vm3581, %v7366, %v7362
    %v7368 = vlaneseq
    %v7369 = vshrl.u32 %v7368, 7
    %v7370 = vsub.s32 %v3473, %v7369
    %v7371 = vrot.slane %v7147, %v7370
    %v7372 = vlaneseq
    %v7373 = vshrl.u32 %v7372, 7
    %v7374 = vsub.s32 %v3478, %v7373
    %v7375 = vrot.slane %v7150, %v7374
    %v7376 = vsel %vm3483, %v7375, %v7371
    %v7377 = vlaneseq
    %v7378 = vshrl.u32 %v7377, 7
    %v7379 = vsub.s32 %v3485, %v7378
    %v7380 = vrot.slane %v7153, %v7379
    %v7381 = vsel %vm3490, %v7380, %v7376
    %v7382 = vlaneseq
    %v7383 = vshrl.u32 %v7382, 7
    %v7384 = vsub.s32 %v3492, %v7383
    %v7385 = vrot.slane %v7156, %v7384
    %v7386 = vsel %vm3497, %v7385, %v7381
    %v7387 = vlaneseq
    %v7388 = vshrl.u32 %v7387, 7
    %v7389 = vsub.s32 %v3499, %v7388
    %v7390 = vrot.slane %v7159, %v7389
    %v7391 = vsel %vm3504, %v7390, %v7386
    %v7392 = vlaneseq
    %v7393 = vshrl.u32 %v7392, 7
    %v7394 = vsub.s32 %v3506, %v7393
    %v7395 = vrot.slane %v7162, %v7394
    %v7396 = vsel %vm3511, %v7395, %v7391
    %v7397 = vlaneseq
    %v7398 = vshrl.u32 %v7397, 7
    %v7399 = vsub.s32 %v3513, %v7398
    %v7400 = vrot.slane %v7165, %v7399
    %v7401 = vsel %vm3518, %v7400, %v7396
    %v7402 = vlaneseq
    %v7403 = vshrl.u32 %v7402, 7
    %v7404 = vsub.s32 %v3520, %v7403
    %v7405 = vrot.slane %v7168, %v7404
    %v7406 = vsel %vm3525, %v7405, %v7401
    %v7407 = vlaneseq
    %v7408 = vshrl.u32 %v7407, 7
    %v7409 = vsub.s32 %v3527, %v7408
    %v7410 = vrot.slane %v7171, %v7409
    %v7411 = vsel %vm3532, %v7410, %v7406
    %v7412 = vlaneseq
    %v7413 = vshrl.u32 %v7412, 7
    %v7414 = vsub.s32 %v3534, %v7413
    %v7415 = vrot.slane %v7174, %v7414
    %v7416 = vsel %vm3539, %v7415, %v7411
    %v7417 = vlaneseq
    %v7418 = vshrl.u32 %v7417, 7
    %v7419 = vsub.s32 %v3541, %v7418
    %v7420 = vrot.slane %v7177, %v7419
    %v7421 = vsel %vm3546, %v7420, %v7416
    %v7422 = vlaneseq
    %v7423 = vshrl.u32 %v7422, 7
    %v7424 = vsub.s32 %v3548, %v7423
    %v7425 = vrot.slane %v7180, %v7424
    %v7426 = vsel %vm3553, %v7425, %v7421
    %v7427 = vlaneseq
    %v7428 = vshrl.u32 %v7427, 7
    %v7429 = vsub.s32 %v3555, %v7428
    %v7430 = vrot.slane %v7183, %v7429
    %v7431 = vsel %vm3560, %v7430, %v7426
    %v7432 = vlaneseq
    %v7433 = vshrl.u32 %v7432, 7
    %v7434 = vsub.s32 %v3562, %v7433
    %v7435 = vrot.slane %v7186, %v7434
    %v7436 = vsel %vm3567, %v7435, %v7431
    %v7437 = vlaneseq
    %v7438 = vshrl.u32 %v7437, 7
    %v7439 = vsub.s32 %v3569, %v7438
    %v7440 = vrot.slane %v7189, %v7439
    %v7441 = vsel %vm3574, %v7440, %v7436
    %v7442 = vlaneseq
    %v7443 = vshrl.u32 %v7442, 7
    %v7444 = vsub.s32 %v3576, %v7443
    %v7445 = vrot.slane %v7192, %v7444
    %v7446 = vsel %vm3581, %v7445, %v7441
    %v7447 = vlaneseq
    %v7448 = vshrl.u32 %v7447, 7
    %v7449 = vsub.s32 %v3473, %v7448
    %v7450 = vrot.slane %v7195, %v7449
    %v7451 = vlaneseq
    %v7452 = vshrl.u32 %v7451, 7
    %v7453 = vsub.s32 %v3478, %v7452
    %v7454 = vrot.slane %v7198, %v7453
    %v7455 = vsel %vm3483, %v7454, %v7450
    %v7456 = vlaneseq
    %v7457 = vshrl.u32 %v7456, 7
    %v7458 = vsub.s32 %v3485, %v7457
    %v7459 = vrot.slane %v7201, %v7458
    %v7460 = vsel %vm3490, %v7459, %v7455
    %v7461 = vlaneseq
    %v7462 = vshrl.u32 %v7461, 7
    %v7463 = vsub.s32 %v3492, %v7462
    %v7464 = vrot.slane %v7204, %v7463
    %v7465 = vsel %vm3497, %v7464, %v7460
    %v7466 = vlaneseq
    %v7467 = vshrl.u32 %v7466, 7
    %v7468 = vsub.s32 %v3499, %v7467
    %v7469 = vrot.slane %v7207, %v7468
    %v7470 = vsel %vm3504, %v7469, %v7465
    %v7471 = vlaneseq
    %v7472 = vshrl.u32 %v7471, 7
    %v7473 = vsub.s32 %v3506, %v7472
    %v7474 = vrot.slane %v7210, %v7473
    %v7475 = vsel %vm3511, %v7474, %v7470
    %v7476 = vlaneseq
    %v7477 = vshrl.u32 %v7476, 7
    %v7478 = vsub.s32 %v3513, %v7477
    %v7479 = vrot.slane %v7213, %v7478
    %v7480 = vsel %vm3518, %v7479, %v7475
    %v7481 = vlaneseq
    %v7482 = vshrl.u32 %v7481, 7
    %v7483 = vsub.s32 %v3520, %v7482
    %v7484 = vrot.slane %v7216, %v7483
    %v7485 = vsel %vm3525, %v7484, %v7480
    %v7486 = vlaneseq
    %v7487 = vshrl.u32 %v7486, 7
    %v7488 = vsub.s32 %v3527, %v7487
    %v7489 = vrot.slane %v7219, %v7488
    %v7490 = vsel %vm3532, %v7489, %v7485
    %v7491 = vlaneseq
    %v7492 = vshrl.u32 %v7491, 7
    %v7493 = vsub.s32 %v3534, %v7492
    %v7494 = vrot.slane %v7222, %v7493
    %v7495 = vsel %vm3539, %v7494, %v7490
    %v7496 = vlaneseq
    %v7497 = vshrl.u32 %v7496, 7
    %v7498 = vsub.s32 %v3541, %v7497
    %v7499 = vrot.slane %v7225, %v7498
    %v7500 = vsel %vm3546, %v7499, %v7495
    %v7501 = vlaneseq
    %v7502 = vshrl.u32 %v7501, 7
    %v7503 = vsub.s32 %v3548, %v7502
    %v7504 = vrot.slane %v7228, %v7503
    %v7505 = vsel %vm3553, %v7504, %v7500
    %v7506 = vlaneseq
    %v7507 = vshrl.u32 %v7506, 7
    %v7508 = vsub.s32 %v3555, %v7507
    %v7509 = vrot.slane %v7231, %v7508
    %v7510 = vsel %vm3560, %v7509, %v7505
    %v7511 = vlaneseq
    %v7512 = vshrl.u32 %v7511, 7
    %v7513 = vsub.s32 %v3562, %v7512
    %v7514 = vrot.slane %v7234, %v7513
    %v7515 = vsel %vm3567, %v7514, %v7510
    %v7516 = vlaneseq
    %v7517 = vshrl.u32 %v7516, 7
    %v7518 = vsub.s32 %v3569, %v7517
    %v7519 = vrot.slane %v7237, %v7518
    %v7520 = vsel %vm3574, %v7519, %v7515
    %v7521 = vlaneseq
    %v7522 = vshrl.u32 %v7521, 7
    %v7523 = vsub.s32 %v3576, %v7522
    %v7524 = vrot.slane %v7240, %v7523
    %v7525 = vsel %vm3581, %v7524, %v7520
    %v7526 = vlaneseq
    %v7527 = vshrl.u32 %v7526, 7
    %v7528 = vsub.s32 %v3473, %v7527
    %v7529 = vrot.slane %v7243, %v7528
    %v7530 = vlaneseq
    %v7531 = vshrl.u32 %v7530, 7
    %v7532 = vsub.s32 %v3478, %v7531
    %v7533 = vrot.slane %v7246, %v7532
    %v7534 = vsel %vm3483, %v7533, %v7529
    %v7535 = vlaneseq
    %v7536 = vshrl.u32 %v7535, 7
    %v7537 = vsub.s32 %v3485, %v7536
    %v7538 = vrot.slane %v7249, %v7537
    %v7539 = vsel %vm3490, %v7538, %v7534
    %v7540 = vlaneseq
    %v7541 = vshrl.u32 %v7540, 7
    %v7542 = vsub.s32 %v3492, %v7541
    %v7543 = vrot.slane %v7252, %v7542
    %v7544 = vsel %vm3497, %v7543, %v7539
    %v7545 = vlaneseq
    %v7546 = vshrl.u32 %v7545, 7
    %v7547 = vsub.s32 %v3499, %v7546
    %v7548 = vrot.slane %v7255, %v7547
    %v7549 = vsel %vm3504, %v7548, %v7544
    %v7550 = vlaneseq
    %v7551 = vshrl.u32 %v7550, 7
    %v7552 = vsub.s32 %v3506, %v7551
    %v7553 = vrot.slane %v7258, %v7552
    %v7554 = vsel %vm3511, %v7553, %v7549
    %v7555 = vlaneseq
    %v7556 = vshrl.u32 %v7555, 7
    %v7557 = vsub.s32 %v3513, %v7556
    %v7558 = vrot.slane %v7261, %v7557
    %v7559 = vsel %vm3518, %v7558, %v7554
    %v7560 = vlaneseq
    %v7561 = vshrl.u32 %v7560, 7
    %v7562 = vsub.s32 %v3520, %v7561
    %v7563 = vrot.slane %v7264, %v7562
    %v7564 = vsel %vm3525, %v7563, %v7559
    %v7565 = vlaneseq
    %v7566 = vshrl.u32 %v7565, 7
    %v7567 = vsub.s32 %v3527, %v7566
    %v7568 = vrot.slane %v7267, %v7567
    %v7569 = vsel %vm3532, %v7568, %v7564
    %v7570 = vlaneseq
    %v7571 = vshrl.u32 %v7570, 7
    %v7572 = vsub.s32 %v3534, %v7571
    %v7573 = vrot.slane %v7270, %v7572
    %v7574 = vsel %vm3539, %v7573, %v7569
    %v7575 = vlaneseq
    %v7576 = vshrl.u32 %v7575, 7
    %v7577 = vsub.s32 %v3541, %v7576
    %v7578 = vrot.slane %v7273, %v7577
    %v7579 = vsel %vm3546, %v7578, %v7574
    %v7580 = vlaneseq
    %v7581 = vshrl.u32 %v7580, 7
    %v7582 = vsub.s32 %v3548, %v7581
    %v7583 = vrot.slane %v7276, %v7582
    %v7584 = vsel %vm3553, %v7583, %v7579
    %v7585 = vlaneseq
    %v7586 = vshrl.u32 %v7585, 7
    %v7587 = vsub.s32 %v3555, %v7586
    %v7588 = vrot.slane %v7279, %v7587
    %v7589 = vsel %vm3560, %v7588, %v7584
    %v7590 = vlaneseq
    %v7591 = vshrl.u32 %v7590, 7
    %v7592 = vsub.s32 %v3562, %v7591
    %v7593 = vrot.slane %v7282, %v7592
    %v7594 = vsel %vm3567, %v7593, %v7589
    %v7595 = vlaneseq
    %v7596 = vshrl.u32 %v7595, 7
    %v7597 = vsub.s32 %v3569, %v7596
    %v7598 = vrot.slane %v7285, %v7597
    %v7599 = vsel %vm3574, %v7598, %v7594
    %v7600 = vlaneseq
    %v7601 = vshrl.u32 %v7600, 7
    %v7602 = vsub.s32 %v3576, %v7601
    %v7603 = vrot.slane %v7288, %v7602
    %v7604 = vsel %vm3581, %v7603, %v7599
    %v7605 = vsel %vm3820, %v7525, %v7367
    %v7606 = vsel %vm3820, %v7604, %v7446
    %v7607 = vcombine.low %v7605, %v7606
    %v7609 = vunpack.c.l.s4 1983009808
    %v7610 = vunpack.c.0.s8 %v7609
    %v7611 = vlaneseq
    %v7612 = vshrl.u32 %v7611, 7
    %v7613 = vsub.s32 %v7610, %v7612
    %v7614 = vrot.slane %v7607, %v7613
    %7616 = vst [vmem:[#allocation4] sm:$0xf] %v7614
    // Predicated region
    $region10: #{tpu_custom_call.1} parent=1 // pred_check
      _
    $region11: #{tpu_custom_call.1} parent=1 // pred_check_branch
      %7618 = sbr.rel (0) target = $region13
    $region12: #{tpu_custom_call.1} parent=1 // pred_region
      %s7620 = ssub.s32 64, 64
      %7621 = vsyncadd [#allocation3], %s7620
      %s7623 = sshll.u32 [#allocation2], 4
      %s7624 = int_to_ptr.vmem [resolvable:$true] %s7623
      %7626 = dma.vmem_to_hbm [thread:$0]  %s7624, 64, %s2, [#allocation3]
    $region13: #{tpu_custom_call.1} parent=1 // pred_fallthru
      _
    // Predicated region
    $region14: #{tpu_custom_call.1} parent=1 // pred_check
      _
    $region15: #{tpu_custom_call.1} parent=1 // pred_check_branch
      %7628 = sbr.rel (0) target = $region17
    $region16: #{tpu_custom_call.1} parent=1 // pred_region
      %s7630 = ssub.s32 64, 64
      %7631 = vsyncadd [#allocation5], %s7630
      %s7633 = sshll.u32 [#allocation4], 4
      %s7634 = int_to_ptr.vmem [resolvable:$true] %s7633
      %7636 = dma.vmem_to_hbm [thread:$0]  %s7634, 64, %s3, [#allocation5]
    $region17: #{tpu_custom_call.1} parent=1 // pred_fallthru
      _
    // Predicated region
    $region18: #{tpu_custom_call.1} parent=1 // pred_check
      _
    $region19: #{tpu_custom_call.1} parent=1 // pred_check_branch
      %7638 = sbr.rel (0) target = $region21
    $region20: #{tpu_custom_call.1} parent=1 // pred_region
      %7639 = dma.done [#allocation3], 64
    $region21: #{tpu_custom_call.1} parent=1 // pred_fallthru
      _
    // Predicated region
    $region22: #{tpu_custom_call.1} parent=1 // pred_check
      _
    $region23: #{tpu_custom_call.1} parent=1 // pred_check_branch
      %7641 = sbr.rel (0) target = $region25
    $region24: #{tpu_custom_call.1} parent=1 // pred_region
      %7642 = dma.done [#allocation5], 64
    $region25: #{tpu_custom_call.1} parent=1 // pred_fallthru
      _
    %7643 = vsyncpa [#allocation3], 1
    %7644 = vsyncpa [#allocation5], 1

</llo_original>
